<compile_context>
chip_gen: v5e
topology: v5e:2x2
jax: 0.10.0
libtpu: 0.0.40
codegen_flags: <defaults>
</compile_context>

<pallas_src>
import functools

import jax
import jax.numpy as jnp
from jax import lax
from jax.experimental import pallas as pl
from jax.experimental.pallas import tpu as pltpu

LANE = 128                     # lane (channel) padding multiple
SUB = 8                        # sublane multiple for row / width tiling
COMPUTE_DTYPE = jnp.bfloat16   # MXU operand dtype (accumulation stays f32)
_VMEM_LIMIT = 32 * 1024 * 1024


# ------------------------------------------------------------------ helpers -
def _round_up(v, m):
    return (v + m - 1) // m * m


def _pad_last(x, to):
    c = x.shape[-1]
    if c == to:
        return x
    return jnp.pad(x, [(0, 0)] * (x.ndim - 1) + [(0, to - c)])


def _mish_f32(y):
    # mish(y) = y * tanh(softplus(y)) = y * (t^2 + 2t) / (t^2 + 2t + 2), t=e^y
    # One transcendental (exp); the divide is an EUP approx reciprocal.
    # exp arg clamped at 20: beyond that the ratio rounds to 1.0 in f32.
    t = jnp.exp(jnp.minimum(y, 20.0))
    num = t * (t + 2.0)
    return y * num * pl.reciprocal(num + 2.0, approx=True)


# ------------------------------------------------------------------ kernels -
def _make_matmul_kernel(n_in):
    """sum_i(x_i @ w_i) + bias -> Mish. Used for every 1x1 conv, including the
    fused split pair (wide N) and the fused concat conv (two inputs)."""

    def kernel(*refs):
        x_refs = refs[:n_in]
        w_refs = refs[n_in:2 * n_in]
        b_ref = refs[2 * n_in]
        o_ref = refs[2 * n_in + 1]

        acc = jnp.dot(x_refs[0][...], w_refs[0][...],
                      preferred_element_type=jnp.float32)
        for i in range(1, n_in):
            acc = acc + jnp.dot(x_refs[i][...], w_refs[i][...],
                                preferred_element_type=jnp.float32)
        y = _mish_f32(acc + b_ref[...])
        o_ref[...] = y.astype(o_ref.dtype)

    return kernel


def _make_spatial_kernel(kh, kw, ho, wo, has_res):
    """kh x kw stride-1 'valid' conv over a pre-padded NHWC block, computed as
    kh*kw shifted dots accumulated in f32 (no im2col slab), then bias -> Mish
    (-> + fused residual)."""

    def kernel(x_ref, w_ref, b_ref, *rest):
        if has_res:
            res_ref, o_ref = rest
        else:
            (o_ref,) = rest
        kp = x_ref.shape[-1]
        cp = o_ref.shape[-1]

        xin = x_ref[0]                                  # (ho+kh-1, wo+kw-1, kp)
        acc = jnp.zeros((ho * wo, cp), jnp.float32)
        for dy in range(kh):
            for dx in range(kw):
                tap = xin[dy:dy + ho, dx:dx + wo, :].reshape(ho * wo, kp)
                acc = acc + jnp.dot(tap, w_ref[dy * kw + dx],
                                    preferred_element_type=jnp.float32)
        y = _mish_f32(acc + b_ref[...]).reshape(ho, wo, cp)
        if has_res:
            y = y + res_ref[0].astype(jnp.float32)
        o_ref[0] = y.astype(o_ref.dtype)

    return kernel


# --------------------------------------------------------- pallas wrappers --
def _conv1x1_pallas(xs, wmats, bias, out_dtype, tm_target=512):
    """xs: list of NHWC activations (channel axis LANE-padded, bf16);
    wmats: matching list of (K_i, N) bf16 weights; bias: (1, N) f32."""
    B, H, W, _ = xs[0].shape
    n_out = wmats[0].shape[1]
    M = B * H * W
    flat = [x.reshape(M, x.shape[-1]).astype(COMPUTE_DTYPE) for x in xs]

    # Large row tiles amortize per-step overhead; cap so the row grid has at
    # least 2 steps (lets the "parallel" axis shard across both v7x TCs).
    tm = max(SUB, min(tm_target, _round_up((M + 1) // 2, SUB)))
    m_pad = _round_up(M, tm)
    if m_pad != M:
        flat = [jnp.pad(f, ((0, m_pad - M), (0, 0))) for f in flat]

    args, in_specs = [], []
    for f in flat:
        args.append(f)
        in_specs.append(pl.BlockSpec((tm, f.shape[1]), lambda i: (i, 0)))
    for wm in wmats:
        # NOTE: pipeline_mode=pl.Buffered(1) would single-buffer these
        # constant operands for large-channel layers; left default here.
        args.append(wm)
        in_specs.append(pl.BlockSpec(wm.shape, lambda i: (0, 0)))
    args.append(bias)
    in_specs.append(pl.BlockSpec(bias.shape, lambda i: (0, 0)))

    flops = 2 * m_pad * sum(wm.shape[0] for wm in wmats) * n_out
    bytes_acc = int(sum(a.size * a.dtype.itemsize for a in args)
                    + m_pad * n_out * jnp.dtype(out_dtype).itemsize)
    out = pl.pallas_call(
        _make_matmul_kernel(len(xs)),
        out_shape=jax.ShapeDtypeStruct((m_pad, n_out), out_dtype),
        grid=(m_pad // tm,),
        in_specs=in_specs,
        out_specs=pl.BlockSpec((tm, n_out), lambda i: (i, 0)),
        compiler_params=pltpu.CompilerParams(
            dimension_semantics=("parallel",),
            vmem_limit_bytes=_VMEM_LIMIT),
        cost_estimate=pl.CostEstimate(
            flops=flops, transcendentals=m_pad * n_out,
            bytes_accessed=bytes_acc),
    )(*args)

    if m_pad != M:
        out = out[:M]
    return out.reshape(B, H, W, n_out)


def _conv_spatial_pallas(x, wt, bias, kh, kw, ho, wo, residual, out_dtype):
    """x: (B, ho+kh-1, wo+kw-1, Kp) zero-padded NHWC bf16 input (whole image
    per grid step; row-tiling with halos would be added for large spatial);
    wt: (kh*kw, Kp, N) bf16; bias: (1, N) f32; residual: (B, ho, wo, N)|None."""
    B, hp, wp, kp = x.shape
    n_out = wt.shape[-1]
    has_res = residual is not None

    args = [x, wt, bias]
    in_specs = [
        pl.BlockSpec((1, hp, wp, kp), lambda b: (b, 0, 0, 0)),
        pl.BlockSpec((kh * kw, kp, n_out), lambda b: (0, 0, 0)),
        pl.BlockSpec((1, n_out), lambda b: (0, 0)),
    ]
    if has_res:
        args.append(residual.astype(COMPUTE_DTYPE))
        in_specs.append(pl.BlockSpec((1, ho, wo, n_out),
                                     lambda b: (b, 0, 0, 0)))

    flops = 2 * B * ho * wo * kh * kw * kp * n_out
    bytes_acc = int(sum(a.size * a.dtype.itemsize for a in args)
                    + B * ho * wo * n_out * jnp.dtype(out_dtype).itemsize)
    return pl.pallas_call(
        _make_spatial_kernel(kh, kw, ho, wo, has_res),
        out_shape=jax.ShapeDtypeStruct((B, ho, wo, n_out), out_dtype),
        grid=(B,),
        in_specs=in_specs,
        out_specs=pl.BlockSpec((1, ho, wo, n_out), lambda b: (b, 0, 0, 0)),
        compiler_params=pltpu.CompilerParams(
            dimension_semantics=("parallel",),
            vmem_limit_bytes=_VMEM_LIMIT),
        cost_estimate=pl.CostEstimate(
            flops=flops, transcendentals=B * ho * wo * n_out,
            bytes_accessed=bytes_acc),
    )(*args)


# ----------------------------------------------- folded/padded weight prep --
def _fold_1x1(p, kp):
    """BN scale folded into the 1x1 weight; padded to (kp, N_pad) lane-dense."""
    w = p["w"][:, :, 0, 0] * p["scale"][:, None]          # (Cout, Cin) f32
    cout, cin = w.shape
    n_pad = _round_up(cout, LANE)
    wmat = jnp.pad(w.T, ((0, kp - cin), (0, n_pad - cout)))
    bias = jnp.pad(p["bias"], (0, n_pad - cout)).reshape(1, -1)
    return wmat.astype(COMPUTE_DTYPE), bias.astype(jnp.float32), n_pad


def _fold_3x3(p, kp):
    """BN-folded 3x3 weight as (9, kp, N_pad) tap-stacked matrices."""
    w = p["w"] * p["scale"][:, None, None, None]          # (Cout, Cin, 3, 3)
    cout, cin, kh, kw = w.shape
    n_pad = _round_up(cout, LANE)
    wt = jnp.transpose(w, (2, 3, 1, 0)).reshape(kh * kw, cin, cout)
    wt = jnp.pad(wt, ((0, 0), (0, kp - cin), (0, n_pad - cout)))
    bias = jnp.pad(p["bias"], (0, n_pad - cout)).reshape(1, -1)
    return wt.astype(COMPUTE_DTYPE), bias.astype(jnp.float32), n_pad


def _fold_downsample(p, cin, kp):
    """3x3/stride-2 conv re-expressed as a 2x2/stride-1 conv over the
    space-to-depth (4-phase) input: tap (oy, ox) / phase group (ph, qw) gets
    the original tap w[:, :, 2*oy+ph, 2*ox+qw] (zero when that index >= 3)."""
    w = p["w"] * p["scale"][:, None, None, None]          # (Cout, Cin, 3, 3)
    cout = w.shape[0]
    n_pad = _round_up(cout, LANE)
    taps = []
    for oy in range(2):
        for ox in range(2):
            groups = []
            for ph in range(2):
                for qw in range(2):
                    dy, dx = 2 * oy + ph, 2 * ox + qw
                    if dy < 3 and dx < 3:
                        groups.append(jnp.transpose(w[:, :, dy, dx]))
                    else:
                        groups.append(jnp.zeros((cin, cout), w.dtype))
            taps.append(jnp.concatenate(groups, axis=0))  # (4*Cin, Cout)
    wt = jnp.stack(taps, axis=0)                          # (4, 4*Cin, Cout)
    wt = jnp.pad(wt, ((0, 0), (0, kp - 4 * cin), (0, n_pad - cout)))
    bias = jnp.pad(p["bias"], (0, n_pad - cout)).reshape(1, -1)
    return wt.astype(COMPUTE_DTYPE), bias.astype(jnp.float32), n_pad


# ------------------------------------------------------ fused BasicConv ops -
def basic_conv_1x1(x, p, out_dtype=COMPUTE_DTYPE):
    """1x1 BasicConv (conv + folded BN + Mish). x: NHWC, LANE-padded channels."""
    assert p["w"].shape[-1] == 1 and p["stride"] == 1
    wmat, bias, _ = _fold_1x1(p, x.shape[-1])
    return _conv1x1_pallas([x], [wmat], bias, out_dtype)


def basic_conv_split(x, p0, p1, out_dtype=COMPUTE_DTYPE):
    """split_conv0 / split_conv1 fused into ONE kernel (same input x)."""
    kp = x.shape[-1]
    w0, b0, n0 = _fold_1x1(p0, kp)
    w1, b1, _ = _fold_1x1(p1, kp)
    y = _conv1x1_pallas([x], [jnp.concatenate([w0, w1], axis=1)],
                        jnp.concatenate([b0, b1], axis=1), out_dtype)
    return y[..., :n0], y[..., n0:]                       # (x0, x1)


def basic_conv_concat(x1, x0, p, out_dtype):
    """cat([x1, x0], channel) -> 1x1 BasicConv fused as x1 @ W1 + x0 @ W0
    (the concatenated activation is never materialized in HBM)."""
    assert p["w"].shape[-1] == 1 and p["stride"] == 1
    w = p["w"][:, :, 0, 0] * p["scale"][:, None]          # (Cout, 2c)
    cout, cin2 = w.shape
    c = cin2 // 2
    n_pad = _round_up(cout, LANE)

    def half(cols, kp):
        wm = jnp.pad(w[:, cols].T, ((0, kp - c), (0, n_pad - cout)))
        return wm.astype(COMPUTE_DTYPE)

    bias = jnp.pad(p["bias"], (0, n_pad - cout)).reshape(1, -1)
    return _conv1x1_pallas(
        [x1, x0],
        [half(slice(0, c), x1.shape[-1]), half(slice(c, 2 * c), x0.shape[-1])],
        bias.astype(jnp.float32), out_dtype)


def basic_conv_3x3(x, p, residual=None, out_dtype=COMPUTE_DTYPE):
    """3x3 stride-1 'same' BasicConv with optional fused residual add."""
    assert p["w"].shape[-1] == 3 and p["stride"] == 1
    B, H, W, kp = x.shape
    ho, wo = H, W
    wo_pad = _round_up(wo, SUB)
    wt, bias, _ = _fold_3x3(p, kp)
    xp = jnp.pad(x.astype(COMPUTE_DTYPE),
                 ((0, 0), (1, 1), (1, 1 + wo_pad - wo), (0, 0)))
    res = residual
    if res is not None and wo_pad != wo:
        res = jnp.pad(res, ((0, 0), (0, 0), (0, wo_pad - wo), (0, 0)))
    y = _conv_spatial_pallas(xp, wt, bias, 3, 3, ho, wo_pad, res, out_dtype)
    return y[:, :, :wo, :] if wo_pad != wo else y


def basic_conv_downsample(x, p, out_dtype=COMPUTE_DTYPE):
    """3x3 stride-2 'same' BasicConv: space-to-depth + 2x2 stride-1 in-kernel
    conv (no im2col, ~1x HBM traffic)."""
    assert p["w"].shape[-1] == 3 and p["stride"] == 2
    B, H, W, cin = x.shape
    ho, wo = (H - 1) // 2 + 1, (W - 1) // 2 + 1
    wo_pad = _round_up(wo, SUB)
    kp = _round_up(4 * cin, LANE)
    wt, bias, _ = _fold_downsample(p, cin, kp)

    xb = x.astype(COMPUTE_DTYPE)
    xp = jnp.pad(xb, ((0, 0),
                      (1, 2 * ho + 1 - H),
                      (1, 2 * wo_pad + 1 - W),
                      (0, 0)))
    phases = [xp[:, ph::2, qw::2, :][:, :ho + 1, :wo_pad + 1, :]
              for ph in range(2) for qw in range(2)]
    xs2d = _pad_last(jnp.concatenate(phases, axis=-1), kp)
    y = _conv_spatial_pallas(xs2d, wt, bias, 2, 2, ho, wo_pad, None, out_dtype)
    return y[:, :, :wo, :] if wo_pad != wo else y


# ------------------------------------------------------------ param init ----
def _init_basic_conv(key, cin, cout, k, stride=1):
    kw_, kg, kb, km, kv = jax.random.split(key, 5)
    fan_in = cin * k * k
    w = jax.random.normal(kw_, (cout, cin, k, k), jnp.float32) * (fan_in ** -0.5)
    gamma = 1.0 + 0.2 * jax.random.normal(kg, (cout,), jnp.float32)
    beta = 0.1 * jax.random.normal(kb, (cout,), jnp.float32)
    mean = 0.1 * jax.random.normal(km, (cout,), jnp.float32)
    var = 0.5 + jax.random.uniform(kv, (cout,), jnp.float32)
    eps = 1e-5
    scale = gamma * lax.rsqrt(var + eps)   # folded BN: y = conv*scale + bias
    bias = beta - mean * scale
    return {"w": w, "scale": scale, "bias": bias, "stride": stride}


def init_resblock_body(key, in_channels, out_channels, num_blocks, first):
    keys = iter(jax.random.split(key, 16 + 2 * max(num_blocks, 1)))
    p = {}
    p["down"] = _init_basic_conv(next(keys), in_channels, out_channels, 3, stride=2)
    if first:
        c = out_channels
        p["split0"] = _init_basic_conv(next(keys), c, c, 1)
        p["split1"] = _init_basic_conv(next(keys), c, c, 1)
        p["blocks"] = [{
            "c1": _init_basic_conv(next(keys), c, c // 2, 1),
            "c2": _init_basic_conv(next(keys), c // 2, c, 3),
        }]
        p["blocks_out"] = _init_basic_conv(next(keys), c, c, 1)
        p["concat"] = _init_basic_conv(next(keys), c * 2, out_channels, 1)
    else:
        c = out_channels // 2
        p["split0"] = _init_basic_conv(next(keys), out_channels, c, 1)
        p["split1"] = _init_basic_conv(next(keys), out_channels, c, 1)
        p["blocks"] = [{
            "c1": _init_basic_conv(next(keys), c, c, 1),
            "c2": _init_basic_conv(next(keys), c, c, 3),
        } for _ in range(num_blocks)]
        p["blocks_out"] = _init_basic_conv(next(keys), c, c, 1)
        p["concat"] = _init_basic_conv(next(keys), out_channels, out_channels, 1)
    return p


# --------------------------------------------------- forward (Pallas path) --
def resblock_body_pallas(x_nchw, p):
    x = jnp.transpose(x_nchw, (0, 2, 3, 1))               # NCHW -> NHWC
    x = basic_conv_downsample(x, p["down"])                # 3x3 s2 (+BN+Mish)
    x0, x1 = basic_conv_split(x, p["split0"], p["split1"])  # fused 1x1 pair
    for blk in p["blocks"]:                                 # ResBlock(s)
        h = basic_conv_1x1(x1, blk["c1"])
        x1 = basic_conv_3x3(h, blk["c2"], residual=x1)      # residual fused
    x1 = basic_conv_1x1(x1, p["blocks_out"])
    y = basic_conv_concat(x1, x0, p["concat"], out_dtype=jnp.float32)
    cout = p["concat"]["w"].shape[0]
    return jnp.transpose(y[..., :cout], (0, 3, 1, 2))      # strip pad, NCHW


# -------------------------------------------------------- references --------
def _basic_conv_ref(x, p, matched, out_dtype):
    k = p["w"].shape[-1]
    pad = k // 2
    s = p["stride"]
    if matched:
        # Same precision policy as the Pallas path: BN scale folded into the
        # weight, bf16 operands, f32 accumulation / epilogue.
        w = (p["w"] * p["scale"][:, None, None, None]).astype(COMPUTE_DTYPE)
        y = lax.conv_general_dilated(
            x.astype(COMPUTE_DTYPE), w, (s, s), [(pad, pad), (pad, pad)],
            dimension_numbers=("NCHW", "OIHW", "NCHW"),
            preferred_element_type=jnp.float32)
        y = y + p["bias"][None, :, None, None]
    else:
        y = lax.conv_general_dilated(
            x, p["w"], (s, s), [(pad, pad), (pad, pad)],
            dimension_numbers=("NCHW", "OIHW", "NCHW"),
            precision=lax.Precision.HIGHEST)
        y = y * p["scale"][None, :, None, None] + p["bias"][None, :, None, None]
    y = y * jnp.tanh(jax.nn.softplus(y))
    return y.astype(out_dtype)


def resblock_body_ref(x, p, matched):
    dt = COMPUTE_DTYPE if matched else jnp.float32
    conv = functools.partial(_basic_conv_ref, matched=matched)
    x = conv(x, p["down"], out_dtype=dt)
    x0 = conv(x, p["split0"], out_dtype=dt)
    x1 = conv(x, p["split1"], out_dtype=dt)
    for blk in p["blocks"]:
        h = conv(x1, blk["c1"], out_dtype=dt)
        y2 = conv(h, blk["c2"], out_dtype=jnp.float32)
        x1 = (y2 + x1.astype(jnp.float32)).astype(dt)
    x1 = conv(x1, p["blocks_out"], out_dtype=dt)
    xc = jnp.concatenate([x1, x0], axis=1)
    return conv(xc, p["concat"], out_dtype=jnp.float32)


# --------------------------------------------------------------------- main -
if __name__ == "__main__":
    key = jax.random.PRNGKey(0)
    kx, kp = jax.random.split(key)

    # Small NCHW input matching the PyTorch module usage.
    x = jax.random.normal(kx, (2, 4, 16, 16), dtype=jnp.float32)
    params = init_resblock_body(kp, in_channels=4, out_channels=32,
                                num_blocks=2, first=False)

    fwd = jax.jit(lambda v: resblock_body_pallas(v, params))
    y = fwd(x)
    jax.block_until_ready(y)

    assert y.shape == (2, 32, 8, 8), y.shape
    assert y.dtype == jnp.float32

    # 1) Matched-precision reference (same bf16-storage / f32-accumulate policy
    #    and BN folding, via XLA convs): tight agreement expected; tolerance
    #    covers the approx-reciprocal Mish and bf16 rounding-boundary noise.
    y_matched = resblock_body_ref(x, params, matched=True)
    err_m = float(jnp.max(jnp.abs(y - y_matched)))
    assert jnp.allclose(y, y_matched, atol=2e-2, rtol=2e-2), err_m

    # 2) Full-f32 reference (original module semantics): looser bound covering
    #    the intentional bf16 operand/storage error across ~8 chained layers.
    y_f32 = resblock_body_ref(x, params, matched=False)
    err_f = float(jnp.max(jnp.abs(y - y_f32)))
    assert jnp.allclose(y, y_f32, atol=6e-2, rtol=6e-2), err_f

    print("KERNEL_OK")
</pallas_src>

<mosaic_0001>
module attributes {stable_mosaic.version = 11 : i64} {
  func.func @kernel(%arg0: i32, %arg1: memref<1x9x9x128xbf16, #tpu.memory_space<vmem>>, %arg2: memref<4x128x128xbf16, #tpu.memory_space<vmem>>, %arg3: memref<1x128xf32, #tpu.memory_space<vmem>>, %arg4: memref<1x8x8x128xbf16, #tpu.memory_space<vmem>>) attributes {dimension_semantics = [#tpu.dimension_semantics<parallel>], iteration_bounds = array<i64: 2>, scalar_prefetch = 0 : i64, scratch_operands = 0 : i64, tpu.core_type = #tpu.core_type<tc>, window_params = [{transform_indices = @transform_0, window_bounds = array<i64: 1, 9, 9, 128>}, {pipeline_mode = #tpu.pipeline_mode<synchronous>, transform_indices = @transform_1, window_bounds = array<i64: 4, 128, 128>}, {pipeline_mode = #tpu.pipeline_mode<synchronous>, transform_indices = @transform_2, window_bounds = array<i64: 1, 128>}, {transform_indices = @transform_3, window_bounds = array<i64: 1, 8, 8, 128>}]} {
    %c0 = arith.constant 0 : index
    %c0_0 = arith.constant 0 : index
    %c0_1 = arith.constant 0 : index
    %c0_2 = arith.constant 0 : index
    %0 = vector.load %arg1[%c0, %c0_0, %c0_1, %c0_2] : memref<1x9x9x128xbf16, #tpu.memory_space<vmem>>, vector<1x9x9x128xbf16>
    %1 = vector.shape_cast %0 : vector<1x9x9x128xbf16> to vector<9x9x128xbf16>
    %cst = arith.constant 0.000000e+00 : f32
    %2 = vector.broadcast %cst : f32 to vector<64x128xf32>
    %3 = vector.extract_strided_slice %1 {offsets = [0, 0, 0], sizes = [8, 8, 128], strides = [1, 1, 1]} : vector<9x9x128xbf16> to vector<8x8x128xbf16>
    %4 = vector.shape_cast %3 : vector<8x8x128xbf16> to vector<64x128xbf16>
    %c0_3 = arith.constant 0 : index
    %c0_4 = arith.constant 0 : index
    %c0_5 = arith.constant 0 : index
    %5 = vector.load %arg2[%c0_3, %c0_4, %c0_5] : memref<4x128x128xbf16, #tpu.memory_space<vmem>>, vector<1x128x128xbf16>
    %6 = vector.shape_cast %5 : vector<1x128x128xbf16> to vector<128x128xbf16>
    %cst_6 = arith.constant dense<0.000000e+00> : vector<64x128xf32>
    %7 = tpu.matmul %4, %6, %cst_6 {dimension_numbers = #tpu.dot_dimension_numbers<[1], [0], [0], [1], [0, 0, 1, 1], [], []>} : vector<64x128xbf16>, vector<128x128xbf16>, vector<64x128xf32> -> vector<64x128xf32>
    %8 = arith.addf %2, %7 : vector<64x128xf32>
    %9 = vector.extract_strided_slice %1 {offsets = [0, 1, 0], sizes = [8, 8, 128], strides = [1, 1, 1]} : vector<9x9x128xbf16> to vector<8x8x128xbf16>
    %10 = vector.shape_cast %9 : vector<8x8x128xbf16> to vector<64x128xbf16>
    %c1 = arith.constant 1 : index
    %c0_7 = arith.constant 0 : index
    %c0_8 = arith.constant 0 : index
    %11 = vector.load %arg2[%c1, %c0_7, %c0_8] : memref<4x128x128xbf16, #tpu.memory_space<vmem>>, vector<1x128x128xbf16>
    %12 = vector.shape_cast %11 : vector<1x128x128xbf16> to vector<128x128xbf16>
    %cst_9 = arith.constant dense<0.000000e+00> : vector<64x128xf32>
    %13 = tpu.matmul %10, %12, %cst_9 {dimension_numbers = #tpu.dot_dimension_numbers<[1], [0], [0], [1], [0, 0, 1, 1], [], []>} : vector<64x128xbf16>, vector<128x128xbf16>, vector<64x128xf32> -> vector<64x128xf32>
    %14 = arith.addf %8, %13 : vector<64x128xf32>
    %15 = vector.extract_strided_slice %1 {offsets = [1, 0, 0], sizes = [8, 8, 128], strides = [1, 1, 1]} : vector<9x9x128xbf16> to vector<8x8x128xbf16>
    %16 = vector.shape_cast %15 : vector<8x8x128xbf16> to vector<64x128xbf16>
    %c2 = arith.constant 2 : index
    %c0_10 = arith.constant 0 : index
    %c0_11 = arith.constant 0 : index
    %17 = vector.load %arg2[%c2, %c0_10, %c0_11] : memref<4x128x128xbf16, #tpu.memory_space<vmem>>, vector<1x128x128xbf16>
    %18 = vector.shape_cast %17 : vector<1x128x128xbf16> to vector<128x128xbf16>
    %cst_12 = arith.constant dense<0.000000e+00> : vector<64x128xf32>
    %19 = tpu.matmul %16, %18, %cst_12 {dimension_numbers = #tpu.dot_dimension_numbers<[1], [0], [0], [1], [0, 0, 1, 1], [], []>} : vector<64x128xbf16>, vector<128x128xbf16>, vector<64x128xf32> -> vector<64x128xf32>
    %20 = arith.addf %14, %19 : vector<64x128xf32>
    %21 = vector.extract_strided_slice %1 {offsets = [1, 1, 0], sizes = [8, 8, 128], strides = [1, 1, 1]} : vector<9x9x128xbf16> to vector<8x8x128xbf16>
    %22 = vector.shape_cast %21 : vector<8x8x128xbf16> to vector<64x128xbf16>
    %c3 = arith.constant 3 : index
    %c0_13 = arith.constant 0 : index
    %c0_14 = arith.constant 0 : index
    %23 = vector.load %arg2[%c3, %c0_13, %c0_14] : memref<4x128x128xbf16, #tpu.memory_space<vmem>>, vector<1x128x128xbf16>
    %24 = vector.shape_cast %23 : vector<1x128x128xbf16> to vector<128x128xbf16>
    %cst_15 = arith.constant dense<0.000000e+00> : vector<64x128xf32>
    %25 = tpu.matmul %22, %24, %cst_15 {dimension_numbers = #tpu.dot_dimension_numbers<[1], [0], [0], [1], [0, 0, 1, 1], [], []>} : vector<64x128xbf16>, vector<128x128xbf16>, vector<64x128xf32> -> vector<64x128xf32>
    %26 = arith.addf %20, %25 : vector<64x128xf32>
    %c0_16 = arith.constant 0 : index
    %c0_17 = arith.constant 0 : index
    %27 = vector.load %arg3[%c0_16, %c0_17] : memref<1x128xf32, #tpu.memory_space<vmem>>, vector<1x128xf32>
    %28 = vector.broadcast %27 : vector<1x128xf32> to vector<64x128xf32>
    %29 = arith.addf %26, %28 : vector<64x128xf32>
    %cst_18 = arith.constant 2.000000e+01 : f32
    %30 = vector.broadcast %cst_18 : f32 to vector<64x128xf32>
    %31 = arith.minimumf %29, %30 : vector<64x128xf32>
    %32 = math.exp %31 : vector<64x128xf32>
    %cst_19 = arith.constant 2.000000e+00 : f32
    %33 = vector.broadcast %cst_19 : f32 to vector<64x128xf32>
    %34 = arith.addf %32, %33 : vector<64x128xf32>
    %35 = arith.mulf %32, %34 : vector<64x128xf32>
    %36 = arith.mulf %29, %35 : vector<64x128xf32>
    %cst_20 = arith.constant 2.000000e+00 : f32
    %37 = vector.broadcast %cst_20 : f32 to vector<64x128xf32>
    %38 = arith.addf %35, %37 : vector<64x128xf32>
    %39 = tpu.reciprocal %38 {approx = true} : vector<64x128xf32> -> vector<64x128xf32>
    %40 = arith.mulf %36, %39 : vector<64x128xf32>
    %41 = vector.shape_cast %40 : vector<64x128xf32> to vector<8x8x128xf32>
    %42 = arith.truncf %41 : vector<8x8x128xf32> to vector<8x8x128xbf16>
    %c0_21 = arith.constant 0 : index
    %c0_22 = arith.constant 0 : index
    %c0_23 = arith.constant 0 : index
    %c0_24 = arith.constant 0 : index
    %43 = vector.load %arg4[%c0_21, %c0_22, %c0_23, %c0_24] : memref<1x8x8x128xbf16, #tpu.memory_space<vmem>>, vector<1x8x8x128xbf16>
    %44 = vector.shape_cast %43 : vector<1x8x8x128xbf16> to vector<8x8x128xbf16>
    %45 = vector.shape_cast %42 : vector<8x8x128xbf16> to vector<1x8x8x128xbf16>
    tpu.vector_store %arg4[%c0_21, %c0_22, %c0_23, %c0_24], %45 {strides = array<i32>} : memref<1x8x8x128xbf16, #tpu.memory_space<vmem>>, vector<1x8x8x128xbf16>,
    return
  }
  func.func @transform_0(%arg0: i32) -> (i32, i32, i32, i32) {
    %c0_i32 = arith.constant 0 : i32
    %c0_i32_0 = arith.constant 0 : i32
    %c0_i32_1 = arith.constant 0 : i32
    %c0_i32_2 = arith.constant 0 : i32
    return %arg0, %c0_i32, %c0_i32_0, %c0_i32_1 : i32, i32, i32, i32
  }
  func.func @transform_1(%arg0: i32) -> (i32, i32, i32) {
    %c0_i32 = arith.constant 0 : i32
    %c0_i32_0 = arith.constant 0 : i32
    %c0_i32_1 = arith.constant 0 : i32
    %c0_i32_2 = arith.constant 0 : i32
    return %c0_i32, %c0_i32_0, %c0_i32_1 : i32, i32, i32
  }
  func.func @transform_2(%arg0: i32) -> (i32, i32) {
    %c0_i32 = arith.constant 0 : i32
    %c0_i32_0 = arith.constant 0 : i32
    %c0_i32_1 = arith.constant 0 : i32
    return %c0_i32, %c0_i32_0 : i32, i32
  }
  func.func @transform_3(%arg0: i32) -> (i32, i32, i32, i32) {
    %c0_i32 = arith.constant 0 : i32
    %c0_i32_0 = arith.constant 0 : i32
    %c0_i32_1 = arith.constant 0 : i32
    %c0_i32_2 = arith.constant 0 : i32
    return %arg0, %c0_i32, %c0_i32_0, %c0_i32_1 : i32, i32, i32, i32
  }
}

module attributes {stable_mosaic.version = 11 : i64} {
  func.func @kernel(%arg0: i32, %arg1: memref<64x128xbf16, #tpu.memory_space<vmem>>, %arg2: memref<128x128xbf16, #tpu.memory_space<vmem>>, %arg3: memref<1x128xf32, #tpu.memory_space<vmem>>, %arg4: memref<64x128xbf16, #tpu.memory_space<vmem>>) attributes {dimension_semantics = [#tpu.dimension_semantics<parallel>], iteration_bounds = array<i64: 2>, scalar_prefetch = 0 : i64, scratch_operands = 0 : i64, tpu.core_type = #tpu.core_type<tc>, window_params = [{transform_indices = @transform_0, window_bounds = array<i64: 64, 128>}, {pipeline_mode = #tpu.pipeline_mode<synchronous>, transform_indices = @transform_1, window_bounds = array<i64: 128, 128>}, {pipeline_mode = #tpu.pipeline_mode<synchronous>, transform_indices = @transform_2, window_bounds = array<i64: 1, 128>}, {transform_indices = @transform_3, window_bounds = array<i64: 64, 128>}]} {
    %c0 = arith.constant 0 : index
    %c0_0 = arith.constant 0 : index
    %0 = vector.load %arg1[%c0, %c0_0] : memref<64x128xbf16, #tpu.memory_space<vmem>>, vector<64x128xbf16>
    %c0_1 = arith.constant 0 : index
    %c0_2 = arith.constant 0 : index
    %1 = vector.load %arg2[%c0_1, %c0_2] : memref<128x128xbf16, #tpu.memory_space<vmem>>, vector<128x128xbf16>
    %cst = arith.constant dense<0.000000e+00> : vector<64x128xf32>
    %2 = tpu.matmul %0, %1, %cst {dimension_numbers = #tpu.dot_dimension_numbers<[1], [0], [0], [1], [0, 0, 1, 1], [], []>} : vector<64x128xbf16>, vector<128x128xbf16>, vector<64x128xf32> -> vector<64x128xf32>
    %c0_3 = arith.constant 0 : index
    %c0_4 = arith.constant 0 : index
    %3 = vector.load %arg3[%c0_3, %c0_4] : memref<1x128xf32, #tpu.memory_space<vmem>>, vector<1x128xf32>
    %4 = vector.broadcast %3 : vector<1x128xf32> to vector<64x128xf32>
    %5 = arith.addf %2, %4 : vector<64x128xf32>
    %cst_5 = arith.constant 2.000000e+01 : f32
    %6 = vector.broadcast %cst_5 : f32 to vector<64x128xf32>
    %7 = arith.minimumf %5, %6 : vector<64x128xf32>
    %8 = math.exp %7 : vector<64x128xf32>
    %cst_6 = arith.constant 2.000000e+00 : f32
    %9 = vector.broadcast %cst_6 : f32 to vector<64x128xf32>
    %10 = arith.addf %8, %9 : vector<64x128xf32>
    %11 = arith.mulf %8, %10 : vector<64x128xf32>
    %12 = arith.mulf %5, %11 : vector<64x128xf32>
    %cst_7 = arith.constant 2.000000e+00 : f32
    %13 = vector.broadcast %cst_7 : f32 to vector<64x128xf32>
    %14 = arith.addf %11, %13 : vector<64x128xf32>
    %15 = tpu.reciprocal %14 {approx = true} : vector<64x128xf32> -> vector<64x128xf32>
    %16 = arith.mulf %12, %15 : vector<64x128xf32>
    %17 = arith.truncf %16 : vector<64x128xf32> to vector<64x128xbf16>
    %c0_8 = arith.constant 0 : index
    %c0_9 = arith.constant 0 : index
    %18 = vector.load %arg4[%c0_8, %c0_9] : memref<64x128xbf16, #tpu.memory_space<vmem>>, vector<64x128xbf16>
    tpu.vector_store %arg4[%c0_8, %c0_9], %17 {strides = array<i32>} : memref<64x128xbf16, #tpu.memory_space<vmem>>, vector<64x128xbf16>,
    return
  }
  func.func @transform_0(%arg0: i32) -> (i32, i32) {
    %c0_i32 = arith.constant 0 : i32
    %c0_i32_0 = arith.constant 0 : i32
    return %arg0, %c0_i32 : i32, i32
  }
  func.func @transform_1(%arg0: i32) -> (i32, i32) {
    %c0_i32 = arith.constant 0 : i32
    %c0_i32_0 = arith.constant 0 : i32
    %c0_i32_1 = arith.constant 0 : i32
    return %c0_i32, %c0_i32_0 : i32, i32
  }
  func.func @transform_2(%arg0: i32) -> (i32, i32) {
    %c0_i32 = arith.constant 0 : i32
    %c0_i32_0 = arith.constant 0 : i32
    %c0_i32_1 = arith.constant 0 : i32
    return %c0_i32, %c0_i32_0 : i32, i32
  }
  func.func @transform_3(%arg0: i32) -> (i32, i32) {
    %c0_i32 = arith.constant 0 : i32
    %c0_i32_0 = arith.constant 0 : i32
    return %arg0, %c0_i32 : i32, i32
  }
}

module attributes {stable_mosaic.version = 11 : i64} {
  func.func @kernel(%arg0: i32, %arg1: memref<64x128xbf16, #tpu.memory_space<vmem>>, %arg2: memref<128x256xbf16, #tpu.memory_space<vmem>>, %arg3: memref<1x256xf32, #tpu.memory_space<vmem>>, %arg4: memref<64x256xbf16, #tpu.memory_space<vmem>>) attributes {dimension_semantics = [#tpu.dimension_semantics<parallel>], iteration_bounds = array<i64: 2>, scalar_prefetch = 0 : i64, scratch_operands = 0 : i64, tpu.core_type = #tpu.core_type<tc>, window_params = [{transform_indices = @transform_0, window_bounds = array<i64: 64, 128>}, {pipeline_mode = #tpu.pipeline_mode<synchronous>, transform_indices = @transform_1, window_bounds = array<i64: 128, 256>}, {pipeline_mode = #tpu.pipeline_mode<synchronous>, transform_indices = @transform_2, window_bounds = array<i64: 1, 256>}, {transform_indices = @transform_3, window_bounds = array<i64: 64, 256>}]} {
    %c0 = arith.constant 0 : index
    %c0_0 = arith.constant 0 : index
    %0 = vector.load %arg1[%c0, %c0_0] : memref<64x128xbf16, #tpu.memory_space<vmem>>, vector<64x128xbf16>
    %c0_1 = arith.constant 0 : index
    %c0_2 = arith.constant 0 : index
    %1 = vector.load %arg2[%c0_1, %c0_2] : memref<128x256xbf16, #tpu.memory_space<vmem>>, vector<128x256xbf16>
    %cst = arith.constant dense<0.000000e+00> : vector<64x256xf32>
    %2 = tpu.matmul %0, %1, %cst {dimension_numbers = #tpu.dot_dimension_numbers<[1], [0], [0], [1], [0, 0, 1, 1], [], []>} : vector<64x128xbf16>, vector<128x256xbf16>, vector<64x256xf32> -> vector<64x256xf32>
    %c0_3 = arith.constant 0 : index
    %c0_4 = arith.constant 0 : index
    %3 = vector.load %arg3[%c0_3, %c0_4] : memref<1x256xf32, #tpu.memory_space<vmem>>, vector<1x256xf32>
    %4 = vector.broadcast %3 : vector<1x256xf32> to vector<64x256xf32>
    %5 = arith.addf %2, %4 : vector<64x256xf32>
    %cst_5 = arith.constant 2.000000e+01 : f32
    %6 = vector.broadcast %cst_5 : f32 to vector<64x256xf32>
    %7 = arith.minimumf %5, %6 : vector<64x256xf32>
    %8 = math.exp %7 : vector<64x256xf32>
    %cst_6 = arith.constant 2.000000e+00 : f32
    %9 = vector.broadcast %cst_6 : f32 to vector<64x256xf32>
    %10 = arith.addf %8, %9 : vector<64x256xf32>
    %11 = arith.mulf %8, %10 : vector<64x256xf32>
    %12 = arith.mulf %5, %11 : vector<64x256xf32>
    %cst_7 = arith.constant 2.000000e+00 : f32
    %13 = vector.broadcast %cst_7 : f32 to vector<64x256xf32>
    %14 = arith.addf %11, %13 : vector<64x256xf32>
    %15 = tpu.reciprocal %14 {approx = true} : vector<64x256xf32> -> vector<64x256xf32>
    %16 = arith.mulf %12, %15 : vector<64x256xf32>
    %17 = arith.truncf %16 : vector<64x256xf32> to vector<64x256xbf16>
    %c0_8 = arith.constant 0 : index
    %c0_9 = arith.constant 0 : index
    %18 = vector.load %arg4[%c0_8, %c0_9] : memref<64x256xbf16, #tpu.memory_space<vmem>>, vector<64x256xbf16>
    tpu.vector_store %arg4[%c0_8, %c0_9], %17 {strides = array<i32>} : memref<64x256xbf16, #tpu.memory_space<vmem>>, vector<64x256xbf16>,
    return
  }
  func.func @transform_0(%arg0: i32) -> (i32, i32) {
    %c0_i32 = arith.constant 0 : i32
    %c0_i32_0 = arith.constant 0 : i32
    return %arg0, %c0_i32 : i32, i32
  }
  func.func @transform_1(%arg0: i32) -> (i32, i32) {
    %c0_i32 = arith.constant 0 : i32
    %c0_i32_0 = arith.constant 0 : i32
    %c0_i32_1 = arith.constant 0 : i32
    return %c0_i32, %c0_i32_0 : i32, i32
  }
  func.func @transform_2(%arg0: i32) -> (i32, i32) {
    %c0_i32 = arith.constant 0 : i32
    %c0_i32_0 = arith.constant 0 : i32
    %c0_i32_1 = arith.constant 0 : i32
    return %c0_i32, %c0_i32_0 : i32, i32
  }
  func.func @transform_3(%arg0: i32) -> (i32, i32) {
    %c0_i32 = arith.constant 0 : i32
    %c0_i32_0 = arith.constant 0 : i32
    return %arg0, %c0_i32 : i32, i32
  }
}

module attributes {stable_mosaic.version = 11 : i64} {
  func.func @kernel(%arg0: i32, %arg1: memref<1x10x10x128xbf16, #tpu.memory_space<vmem>>, %arg2: memref<9x128x128xbf16, #tpu.memory_space<vmem>>, %arg3: memref<1x128xf32, #tpu.memory_space<vmem>>, %arg4: memref<1x8x8x128xbf16, #tpu.memory_space<vmem>>, %arg5: memref<1x8x8x128xbf16, #tpu.memory_space<vmem>>) attributes {dimension_semantics = [#tpu.dimension_semantics<parallel>], iteration_bounds = array<i64: 2>, scalar_prefetch = 0 : i64, scratch_operands = 0 : i64, tpu.core_type = #tpu.core_type<tc>, window_params = [{transform_indices = @transform_0, window_bounds = array<i64: 1, 10, 10, 128>}, {pipeline_mode = #tpu.pipeline_mode<synchronous>, transform_indices = @transform_1, window_bounds = array<i64: 9, 128, 128>}, {pipeline_mode = #tpu.pipeline_mode<synchronous>, transform_indices = @transform_2, window_bounds = array<i64: 1, 128>}, {transform_indices = @transform_3, window_bounds = array<i64: 1, 8, 8, 128>}, {transform_indices = @transform_4, window_bounds = array<i64: 1, 8, 8, 128>}]} {
    %c0 = arith.constant 0 : index
    %c0_0 = arith.constant 0 : index
    %c0_1 = arith.constant 0 : index
    %c0_2 = arith.constant 0 : index
    %0 = vector.load %arg1[%c0, %c0_0, %c0_1, %c0_2] : memref<1x10x10x128xbf16, #tpu.memory_space<vmem>>, vector<1x10x10x128xbf16>
    %1 = vector.shape_cast %0 : vector<1x10x10x128xbf16> to vector<10x10x128xbf16>
    %cst = arith.constant 0.000000e+00 : f32
    %2 = vector.broadcast %cst : f32 to vector<64x128xf32>
    %3 = vector.extract_strided_slice %1 {offsets = [0, 0, 0], sizes = [8, 8, 128], strides = [1, 1, 1]} : vector<10x10x128xbf16> to vector<8x8x128xbf16>
    %4 = vector.shape_cast %3 : vector<8x8x128xbf16> to vector<64x128xbf16>
    %c0_3 = arith.constant 0 : index
    %c0_4 = arith.constant 0 : index
    %c0_5 = arith.constant 0 : index
    %5 = vector.load %arg2[%c0_3, %c0_4, %c0_5] : memref<9x128x128xbf16, #tpu.memory_space<vmem>>, vector<1x128x128xbf16>
    %6 = vector.shape_cast %5 : vector<1x128x128xbf16> to vector<128x128xbf16>
    %cst_6 = arith.constant dense<0.000000e+00> : vector<64x128xf32>
    %7 = tpu.matmul %4, %6, %cst_6 {dimension_numbers = #tpu.dot_dimension_numbers<[1], [0], [0], [1], [0, 0, 1, 1], [], []>} : vector<64x128xbf16>, vector<128x128xbf16>, vector<64x128xf32> -> vector<64x128xf32>
    %8 = arith.addf %2, %7 : vector<64x128xf32>
    %9 = vector.extract_strided_slice %1 {offsets = [0, 1, 0], sizes = [8, 8, 128], strides = [1, 1, 1]} : vector<10x10x128xbf16> to vector<8x8x128xbf16>
    %10 = vector.shape_cast %9 : vector<8x8x128xbf16> to vector<64x128xbf16>
    %c1 = arith.constant 1 : index
    %c0_7 = arith.constant 0 : index
    %c0_8 = arith.constant 0 : index
    %11 = vector.load %arg2[%c1, %c0_7, %c0_8] : memref<9x128x128xbf16, #tpu.memory_space<vmem>>, vector<1x128x128xbf16>
    %12 = vector.shape_cast %11 : vector<1x128x128xbf16> to vector<128x128xbf16>
    %cst_9 = arith.constant dense<0.000000e+00> : vector<64x128xf32>
    %13 = tpu.matmul %10, %12, %cst_9 {dimension_numbers = #tpu.dot_dimension_numbers<[1], [0], [0], [1], [0, 0, 1, 1], [], []>} : vector<64x128xbf16>, vector<128x128xbf16>, vector<64x128xf32> -> vector<64x128xf32>
    %14 = arith.addf %8, %13 : vector<64x128xf32>
    %15 = vector.extract_strided_slice %1 {offsets = [0, 2, 0], sizes = [8, 8, 128], strides = [1, 1, 1]} : vector<10x10x128xbf16> to vector<8x8x128xbf16>
    %16 = vector.shape_cast %15 : vector<8x8x128xbf16> to vector<64x128xbf16>
    %c2 = arith.constant 2 : index
    %c0_10 = arith.constant 0 : index
    %c0_11 = arith.constant 0 : index
    %17 = vector.load %arg2[%c2, %c0_10, %c0_11] : memref<9x128x128xbf16, #tpu.memory_space<vmem>>, vector<1x128x128xbf16>
    %18 = vector.shape_cast %17 : vector<1x128x128xbf16> to vector<128x128xbf16>
    %cst_12 = arith.constant dense<0.000000e+00> : vector<64x128xf32>
    %19 = tpu.matmul %16, %18, %cst_12 {dimension_numbers = #tpu.dot_dimension_numbers<[1], [0], [0], [1], [0, 0, 1, 1], [], []>} : vector<64x128xbf16>, vector<128x128xbf16>, vector<64x128xf32> -> vector<64x128xf32>
    %20 = arith.addf %14, %19 : vector<64x128xf32>
    %21 = vector.extract_strided_slice %1 {offsets = [1, 0, 0], sizes = [8, 8, 128], strides = [1, 1, 1]} : vector<10x10x128xbf16> to vector<8x8x128xbf16>
    %22 = vector.shape_cast %21 : vector<8x8x128xbf16> to vector<64x128xbf16>
    %c3 = arith.constant 3 : index
    %c0_13 = arith.constant 0 : index
    %c0_14 = arith.constant 0 : index
    %23 = vector.load %arg2[%c3, %c0_13, %c0_14] : memref<9x128x128xbf16, #tpu.memory_space<vmem>>, vector<1x128x128xbf16>
    %24 = vector.shape_cast %23 : vector<1x128x128xbf16> to vector<128x128xbf16>
    %cst_15 = arith.constant dense<0.000000e+00> : vector<64x128xf32>
    %25 = tpu.matmul %22, %24, %cst_15 {dimension_numbers = #tpu.dot_dimension_numbers<[1], [0], [0], [1], [0, 0, 1, 1], [], []>} : vector<64x128xbf16>, vector<128x128xbf16>, vector<64x128xf32> -> vector<64x128xf32>
    %26 = arith.addf %20, %25 : vector<64x128xf32>
    %27 = vector.extract_strided_slice %1 {offsets = [1, 1, 0], sizes = [8, 8, 128], strides = [1, 1, 1]} : vector<10x10x128xbf16> to vector<8x8x128xbf16>
    %28 = vector.shape_cast %27 : vector<8x8x128xbf16> to vector<64x128xbf16>
    %c4 = arith.constant 4 : index
    %c0_16 = arith.constant 0 : index
    %c0_17 = arith.constant 0 : index
    %29 = vector.load %arg2[%c4, %c0_16, %c0_17] : memref<9x128x128xbf16, #tpu.memory_space<vmem>>, vector<1x128x128xbf16>
    %30 = vector.shape_cast %29 : vector<1x128x128xbf16> to vector<128x128xbf16>
    %cst_18 = arith.constant dense<0.000000e+00> : vector<64x128xf32>
    %31 = tpu.matmul %28, %30, %cst_18 {dimension_numbers = #tpu.dot_dimension_numbers<[1], [0], [0], [1], [0, 0, 1, 1], [], []>} : vector<64x128xbf16>, vector<128x128xbf16>, vector<64x128xf32> -> vector<64x128xf32>
    %32 = arith.addf %26, %31 : vector<64x128xf32>
    %33 = vector.extract_strided_slice %1 {offsets = [1, 2, 0], sizes = [8, 8, 128], strides = [1, 1, 1]} : vector<10x10x128xbf16> to vector<8x8x128xbf16>
    %34 = vector.shape_cast %33 : vector<8x8x128xbf16> to vector<64x128xbf16>
    %c5 = arith.constant 5 : index
    %c0_19 = arith.constant 0 : index
    %c0_20 = arith.constant 0 : index
    %35 = vector.load %arg2[%c5, %c0_19, %c0_20] : memref<9x128x128xbf16, #tpu.memory_space<vmem>>, vector<1x128x128xbf16>
    %36 = vector.shape_cast %35 : vector<1x128x128xbf16> to vector<128x128xbf16>
    %cst_21 = arith.constant dense<0.000000e+00> : vector<64x128xf32>
    %37 = tpu.matmul %34, %36, %cst_21 {dimension_numbers = #tpu.dot_dimension_numbers<[1], [0], [0], [1], [0, 0, 1, 1], [], []>} : vector<64x128xbf16>, vector<128x128xbf16>, vector<64x128xf32> -> vector<64x128xf32>
    %38 = arith.addf %32, %37 : vector<64x128xf32>
    %39 = vector.extract_strided_slice %1 {offsets = [2, 0, 0], sizes = [8, 8, 128], strides = [1, 1, 1]} : vector<10x10x128xbf16> to vector<8x8x128xbf16>
    %40 = vector.shape_cast %39 : vector<8x8x128xbf16> to vector<64x128xbf16>
    %c6 = arith.constant 6 : index
    %c0_22 = arith.constant 0 : index
    %c0_23 = arith.constant 0 : index
    %41 = vector.load %arg2[%c6, %c0_22, %c0_23] : memref<9x128x128xbf16, #tpu.memory_space<vmem>>, vector<1x128x128xbf16>
    %42 = vector.shape_cast %41 : vector<1x128x128xbf16> to vector<128x128xbf16>
    %cst_24 = arith.constant dense<0.000000e+00> : vector<64x128xf32>
    %43 = tpu.matmul %40, %42, %cst_24 {dimension_numbers = #tpu.dot_dimension_numbers<[1], [0], [0], [1], [0, 0, 1, 1], [], []>} : vector<64x128xbf16>, vector<128x128xbf16>, vector<64x128xf32> -> vector<64x128xf32>
    %44 = arith.addf %38, %43 : vector<64x128xf32>
    %45 = vector.extract_strided_slice %1 {offsets = [2, 1, 0], sizes = [8, 8, 128], strides = [1, 1, 1]} : vector<10x10x128xbf16> to vector<8x8x128xbf16>
    %46 = vector.shape_cast %45 : vector<8x8x128xbf16> to vector<64x128xbf16>
    %c7 = arith.constant 7 : index
    %c0_25 = arith.constant 0 : index
    %c0_26 = arith.constant 0 : index
    %47 = vector.load %arg2[%c7, %c0_25, %c0_26] : memref<9x128x128xbf16, #tpu.memory_space<vmem>>, vector<1x128x128xbf16>
    %48 = vector.shape_cast %47 : vector<1x128x128xbf16> to vector<128x128xbf16>
    %cst_27 = arith.constant dense<0.000000e+00> : vector<64x128xf32>
    %49 = tpu.matmul %46, %48, %cst_27 {dimension_numbers = #tpu.dot_dimension_numbers<[1], [0], [0], [1], [0, 0, 1, 1], [], []>} : vector<64x128xbf16>, vector<128x128xbf16>, vector<64x128xf32> -> vector<64x128xf32>
    %50 = arith.addf %44, %49 : vector<64x128xf32>
    %51 = vector.extract_strided_slice %1 {offsets = [2, 2, 0], sizes = [8, 8, 128], strides = [1, 1, 1]} : vector<10x10x128xbf16> to vector<8x8x128xbf16>
    %52 = vector.shape_cast %51 : vector<8x8x128xbf16> to vector<64x128xbf16>
    %c8 = arith.constant 8 : index
    %c0_28 = arith.constant 0 : index
    %c0_29 = arith.constant 0 : index
    %53 = vector.load %arg2[%c8, %c0_28, %c0_29] : memref<9x128x128xbf16, #tpu.memory_space<vmem>>, vector<1x128x128xbf16>
    %54 = vector.shape_cast %53 : vector<1x128x128xbf16> to vector<128x128xbf16>
    %cst_30 = arith.constant dense<0.000000e+00> : vector<64x128xf32>
    %55 = tpu.matmul %52, %54, %cst_30 {dimension_numbers = #tpu.dot_dimension_numbers<[1], [0], [0], [1], [0, 0, 1, 1], [], []>} : vector<64x128xbf16>, vector<128x128xbf16>, vector<64x128xf32> -> vector<64x128xf32>
    %56 = arith.addf %50, %55 : vector<64x128xf32>
    %c0_31 = arith.constant 0 : index
    %c0_32 = arith.constant 0 : index
    %57 = vector.load %arg3[%c0_31, %c0_32] : memref<1x128xf32, #tpu.memory_space<vmem>>, vector<1x128xf32>
    %58 = vector.broadcast %57 : vector<1x128xf32> to vector<64x128xf32>
    %59 = arith.addf %56, %58 : vector<64x128xf32>
    %cst_33 = arith.constant 2.000000e+01 : f32
    %60 = vector.broadcast %cst_33 : f32 to vector<64x128xf32>
    %61 = arith.minimumf %59, %60 : vector<64x128xf32>
    %62 = math.exp %61 : vector<64x128xf32>
    %cst_34 = arith.constant 2.000000e+00 : f32
    %63 = vector.broadcast %cst_34 : f32 to vector<64x128xf32>
    %64 = arith.addf %62, %63 : vector<64x128xf32>
    %65 = arith.mulf %62, %64 : vector<64x128xf32>
    %66 = arith.mulf %59, %65 : vector<64x128xf32>
    %cst_35 = arith.constant 2.000000e+00 : f32
    %67 = vector.broadcast %cst_35 : f32 to vector<64x128xf32>
    %68 = arith.addf %65, %67 : vector<64x128xf32>
    %69 = tpu.reciprocal %68 {approx = true} : vector<64x128xf32> -> vector<64x128xf32>
    %70 = arith.mulf %66, %69 : vector<64x128xf32>
    %71 = vector.shape_cast %70 : vector<64x128xf32> to vector<8x8x128xf32>
    %c0_36 = arith.constant 0 : index
    %c0_37 = arith.constant 0 : index
    %c0_38 = arith.constant 0 : index
    %c0_39 = arith.constant 0 : index
    %72 = vector.load %arg4[%c0_36, %c0_37, %c0_38, %c0_39] : memref<1x8x8x128xbf16, #tpu.memory_space<vmem>>, vector<1x8x8x128xbf16>
    %73 = vector.shape_cast %72 : vector<1x8x8x128xbf16> to vector<8x8x128xbf16>
    %74 = arith.extf %73 : vector<8x8x128xbf16> to vector<8x8x128xf32>
    %75 = arith.addf %71, %74 : vector<8x8x128xf32>
    %76 = arith.truncf %75 : vector<8x8x128xf32> to vector<8x8x128xbf16>
    %c0_40 = arith.constant 0 : index
    %c0_41 = arith.constant 0 : index
    %c0_42 = arith.constant 0 : index
    %c0_43 = arith.constant 0 : index
    %77 = vector.load %arg5[%c0_40, %c0_41, %c0_42, %c0_43] : memref<1x8x8x128xbf16, #tpu.memory_space<vmem>>, vector<1x8x8x128xbf16>
    %78 = vector.shape_cast %77 : vector<1x8x8x128xbf16> to vector<8x8x128xbf16>
    %79 = vector.shape_cast %76 : vector<8x8x128xbf16> to vector<1x8x8x128xbf16>
    tpu.vector_store %arg5[%c0_40, %c0_41, %c0_42, %c0_43], %79 {strides = array<i32>} : memref<1x8x8x128xbf16, #tpu.memory_space<vmem>>, vector<1x8x8x128xbf16>,
    return
  }
  func.func @transform_0(%arg0: i32) -> (i32, i32, i32, i32) {
    %c0_i32 = arith.constant 0 : i32
    %c0_i32_0 = arith.constant 0 : i32
    %c0_i32_1 = arith.constant 0 : i32
    %c0_i32_2 = arith.constant 0 : i32
    return %arg0, %c0_i32, %c0_i32_0, %c0_i32_1 : i32, i32, i32, i32
  }
  func.func @transform_1(%arg0: i32) -> (i32, i32, i32) {
    %c0_i32 = arith.constant 0 : i32
    %c0_i32_0 = arith.constant 0 : i32
    %c0_i32_1 = arith.constant 0 : i32
    %c0_i32_2 = arith.constant 0 : i32
    return %c0_i32, %c0_i32_0, %c0_i32_1 : i32, i32, i32
  }
  func.func @transform_2(%arg0: i32) -> (i32, i32) {
    %c0_i32 = arith.constant 0 : i32
    %c0_i32_0 = arith.constant 0 : i32
    %c0_i32_1 = arith.constant 0 : i32
    return %c0_i32, %c0_i32_0 : i32, i32
  }
  func.func @transform_3(%arg0: i32) -> (i32, i32, i32, i32) {
    %c0_i32 = arith.constant 0 : i32
    %c0_i32_0 = arith.constant 0 : i32
    %c0_i32_1 = arith.constant 0 : i32
    %c0_i32_2 = arith.constant 0 : i32
    return %arg0, %c0_i32, %c0_i32_0, %c0_i32_1 : i32, i32, i32, i32
  }
  func.func @transform_4(%arg0: i32) -> (i32, i32, i32, i32) {
    %c0_i32 = arith.constant 0 : i32
    %c0_i32_0 = arith.constant 0 : i32
    %c0_i32_1 = arith.constant 0 : i32
    %c0_i32_2 = arith.constant 0 : i32
    return %arg0, %c0_i32, %c0_i32_0, %c0_i32_1 : i32, i32, i32, i32
  }
}

module attributes {stable_mosaic.version = 11 : i64} {
  func.func @kernel(%arg0: i32, %arg1: memref<64x128xbf16, #tpu.memory_space<vmem>>, %arg2: memref<64x128xbf16, #tpu.memory_space<vmem>>, %arg3: memref<128x128xbf16, #tpu.memory_space<vmem>>, %arg4: memref<128x128xbf16, #tpu.memory_space<vmem>>, %arg5: memref<1x128xf32, #tpu.memory_space<vmem>>, %arg6: memref<64x128xf32, #tpu.memory_space<vmem>>) attributes {dimension_semantics = [#tpu.dimension_semantics<parallel>], iteration_bounds = array<i64: 2>, scalar_prefetch = 0 : i64, scratch_operands = 0 : i64, tpu.core_type = #tpu.core_type<tc>, window_params = [{transform_indices = @transform_0, window_bounds = array<i64: 64, 128>}, {transform_indices = @transform_1, window_bounds = array<i64: 64, 128>}, {pipeline_mode = #tpu.pipeline_mode<synchronous>, transform_indices = @transform_2, window_bounds = array<i64: 128, 128>}, {pipeline_mode = #tpu.pipeline_mode<synchronous>, transform_indices = @transform_3, window_bounds = array<i64: 128, 128>}, {pipeline_mode = #tpu.pipeline_mode<synchronous>, transform_indices = @transform_4, window_bounds = array<i64: 1, 128>}, {transform_indices = @transform_5, window_bounds = array<i64: 64, 128>}]} {
    %c0 = arith.constant 0 : index
    %c0_0 = arith.constant 0 : index
    %0 = vector.load %arg1[%c0, %c0_0] : memref<64x128xbf16, #tpu.memory_space<vmem>>, vector<64x128xbf16>
    %c0_1 = arith.constant 0 : index
    %c0_2 = arith.constant 0 : index
    %1 = vector.load %arg3[%c0_1, %c0_2] : memref<128x128xbf16, #tpu.memory_space<vmem>>, vector<128x128xbf16>
    %cst = arith.constant dense<0.000000e+00> : vector<64x128xf32>
    %2 = tpu.matmul %0, %1, %cst {dimension_numbers = #tpu.dot_dimension_numbers<[1], [0], [0], [1], [0, 0, 1, 1], [], []>} : vector<64x128xbf16>, vector<128x128xbf16>, vector<64x128xf32> -> vector<64x128xf32>
    %c0_3 = arith.constant 0 : index
    %c0_4 = arith.constant 0 : index
    %3 = vector.load %arg2[%c0_3, %c0_4] : memref<64x128xbf16, #tpu.memory_space<vmem>>, vector<64x128xbf16>
    %c0_5 = arith.constant 0 : index
    %c0_6 = arith.constant 0 : index
    %4 = vector.load %arg4[%c0_5, %c0_6] : memref<128x128xbf16, #tpu.memory_space<vmem>>, vector<128x128xbf16>
    %cst_7 = arith.constant dense<0.000000e+00> : vector<64x128xf32>
    %5 = tpu.matmul %3, %4, %cst_7 {dimension_numbers = #tpu.dot_dimension_numbers<[1], [0], [0], [1], [0, 0, 1, 1], [], []>} : vector<64x128xbf16>, vector<128x128xbf16>, vector<64x128xf32> -> vector<64x128xf32>
    %6 = arith.addf %2, %5 : vector<64x128xf32>
    %c0_8 = arith.constant 0 : index
    %c0_9 = arith.constant 0 : index
    %7 = vector.load %arg5[%c0_8, %c0_9] : memref<1x128xf32, #tpu.memory_space<vmem>>, vector<1x128xf32>
    %8 = vector.broadcast %7 : vector<1x128xf32> to vector<64x128xf32>
    %9 = arith.addf %6, %8 : vector<64x128xf32>
    %cst_10 = arith.constant 2.000000e+01 : f32
    %10 = vector.broadcast %cst_10 : f32 to vector<64x128xf32>
    %11 = arith.minimumf %9, %10 : vector<64x128xf32>
    %12 = math.exp %11 : vector<64x128xf32>
    %cst_11 = arith.constant 2.000000e+00 : f32
    %13 = vector.broadcast %cst_11 : f32 to vector<64x128xf32>
    %14 = arith.addf %12, %13 : vector<64x128xf32>
    %15 = arith.mulf %12, %14 : vector<64x128xf32>
    %16 = arith.mulf %9, %15 : vector<64x128xf32>
    %cst_12 = arith.constant 2.000000e+00 : f32
    %17 = vector.broadcast %cst_12 : f32 to vector<64x128xf32>
    %18 = arith.addf %15, %17 : vector<64x128xf32>
    %19 = tpu.reciprocal %18 {approx = true} : vector<64x128xf32> -> vector<64x128xf32>
    %20 = arith.mulf %16, %19 : vector<64x128xf32>
    %c0_13 = arith.constant 0 : index
    %c0_14 = arith.constant 0 : index
    %21 = vector.load %arg6[%c0_13, %c0_14] : memref<64x128xf32, #tpu.memory_space<vmem>>, vector<64x128xf32>
    tpu.vector_store %arg6[%c0_13, %c0_14], %20 {strides = array<i32>} : memref<64x128xf32, #tpu.memory_space<vmem>>, vector<64x128xf32>,
    return
  }
  func.func @transform_0(%arg0: i32) -> (i32, i32) {
    %c0_i32 = arith.constant 0 : i32
    %c0_i32_0 = arith.constant 0 : i32
    return %arg0, %c0_i32 : i32, i32
  }
  func.func @transform_1(%arg0: i32) -> (i32, i32) {
    %c0_i32 = arith.constant 0 : i32
    %c0_i32_0 = arith.constant 0 : i32
    return %arg0, %c0_i32 : i32, i32
  }
  func.func @transform_2(%arg0: i32) -> (i32, i32) {
    %c0_i32 = arith.constant 0 : i32
    %c0_i32_0 = arith.constant 0 : i32
    %c0_i32_1 = arith.constant 0 : i32
    return %c0_i32, %c0_i32_0 : i32, i32
  }
  func.func @transform_3(%arg0: i32) -> (i32, i32) {
    %c0_i32 = arith.constant 0 : i32
    %c0_i32_0 = arith.constant 0 : i32
    %c0_i32_1 = arith.constant 0 : i32
    return %c0_i32, %c0_i32_0 : i32, i32
  }
  func.func @transform_4(%arg0: i32) -> (i32, i32) {
    %c0_i32 = arith.constant 0 : i32
    %c0_i32_0 = arith.constant 0 : i32
    %c0_i32_1 = arith.constant 0 : i32
    return %c0_i32, %c0_i32_0 : i32, i32
  }
  func.func @transform_5(%arg0: i32) -> (i32, i32) {
    %c0_i32 = arith.constant 0 : i32
    %c0_i32_0 = arith.constant 0 : i32
    return %arg0, %c0_i32 : i32, i32
  }
}

</mosaic_0001>

<llo_original>
// kernel: _lambda_.9
$region0: #{_lambda_.9}
  #allocation0 [shape = 'u32[]', space=smem, size = 0x4, offset = 0x4, fixed_abs, tag = 'smem constant byte address 0x4 - core index']
  #allocation1 [shape = 'u32[72,128]{1,0:T(1,128)}', space=vmem, size = 0x9000, scoped, tag = 'internal scratch']
  %s0 = inlined_call_operand.vmem [shape: bf16[128,128], index: 0, kind: input, shape index: {}]
  %s1 = inlined_call_operand.vmem [shape: bf16[128,256], index: 1, kind: input, shape index: {}]
  %s2 = inlined_call_operand.vmem [shape: f32[1,256], index: 2, kind: input, shape index: {}]
  %s3 = inlined_call_operand.vmem [shape: bf16[128,256], index: 3, kind: output, shape index: {}]
  %s4 = sld [smem:[#allocation0]]
  $region45: #{_lambda_.9} parent=0
    _
  %s6 = ssub.s32 1, %s4
  %s7 = scalar_select 0, %s6, %s4
  loop: start=0, step=1, limit=4
  $region2: #{_lambda_.9} parent=0 // loop_pre_header
    _
  $region3: #{_lambda_.9} parent=0 // loop_header
    %s9 = sphi 0, %s13
    %p10 = scmp.ge.s32.totalorder %s9, 4
    %s19 = sphi 0, %s21
    %s22 = sphi 0, %s19
    %s23 = sphi 0, %s22
    %s39 = sphi 0, %s23
    %s43 = sphi 0, %s43
    %s45 = sphi 0, %s43
    %s46 = sphi 0, %s45
    %s60 = sphi 0, %s46
    %s64 = sphi 0, %s64
    %s66 = sphi 0, %s64
    %s67 = sphi 0, %s66
    %s81 = sphi 0, %s67
    %s87 = sphi 0, %s89
    %s90 = sphi 0, %s87
    %s91 = sphi 0, %s90
    %s107 = sphi 0, %s91
  $region4: #{_lambda_.9} parent=0 // loop_header_branch
    %12 = sbr.rel (%p10) target = $region8
  $region5: #{_lambda_.9} parent=0 // loop_body
    %s14 = ssub.s32 %s9, 1
    %s15 = ssub.s32 %s9, 2
    %s16 = sadd.s32 %s9, 1
    %s17 = ssub.s32 %s9, %s16
    %p18 = scmp.eq.s32.totalorder %s17, 0
    %s20 = sadd.s32 %s19, 1
    %s21 = scalar_select %p18, %s19, %s20
    %p24 = pneg %p18
    %p25 = scmp.eq.s32.totalorder %s9, 1
    %p26 = por %p24, %p25
    %p27 = scmp.ne.s32.totalorder %s19, %s22
    %p28 = scmp.eq.s32.totalorder %s9, 0
    %p29 = por %p27, %p28
    %p30 = scmp.ne.s32.totalorder %s19, %s22
    %p31 = scmp.eq.s32.totalorder %s14, 1
    %p32 = por %p30, %p31
    %p33 = scmp.ne.s32.totalorder %s22, %s23
    %p34 = scmp.eq.s32.totalorder %s14, 0
    %p35 = por %p33, %p34
    %p36 = scmp.ne.s32.totalorder %s22, %s23
    %p37 = scmp.eq.s32.totalorder %s15, 1
    %p38 = por %p36, %p37
    %p40 = scmp.ne.s32.totalorder %s23, %s39
    %p41 = scmp.eq.s32.totalorder %s15, 0
    %p42 = por %p40, %p41
    %s44 = sadd.s32 %s43, 1
    %p47 = scmp.eq.s32.totalorder %s9, 1
    %p48 = scmp.ne.s32.totalorder %s43, %s45
    %p49 = scmp.eq.s32.totalorder %s9, 0
    %p50 = por %p48, %p49
    %p51 = scmp.ne.s32.totalorder %s43, %s45
    %p52 = scmp.eq.s32.totalorder %s14, 1
    %p53 = por %p51, %p52
    %p54 = scmp.ne.s32.totalorder %s45, %s46
    %p55 = scmp.eq.s32.totalorder %s14, 0
    %p56 = por %p54, %p55
    %p57 = scmp.ne.s32.totalorder %s45, %s46
    %p58 = scmp.eq.s32.totalorder %s15, 1
    %p59 = por %p57, %p58
    %p61 = scmp.ne.s32.totalorder %s46, %s60
    %p62 = scmp.eq.s32.totalorder %s15, 0
    %p63 = por %p61, %p62
    %s65 = sadd.s32 %s64, 1
    %p68 = scmp.eq.s32.totalorder %s9, 1
    %p69 = scmp.ne.s32.totalorder %s64, %s66
    %p70 = scmp.eq.s32.totalorder %s9, 0
    %p71 = por %p69, %p70
    %p72 = scmp.ne.s32.totalorder %s64, %s66
    %p73 = scmp.eq.s32.totalorder %s14, 1
    %p74 = por %p72, %p73
    %p75 = scmp.ne.s32.totalorder %s66, %s67
    %p76 = scmp.eq.s32.totalorder %s14, 0
    %p77 = por %p75, %p76
    %p78 = scmp.ne.s32.totalorder %s66, %s67
    %p79 = scmp.eq.s32.totalorder %s15, 1
    %p80 = por %p78, %p79
    %p82 = scmp.ne.s32.totalorder %s67, %s81
    %p83 = scmp.eq.s32.totalorder %s15, 0
    %p84 = por %p82, %p83
    %s85 = ssub.s32 %s9, %s16
    %p86 = scmp.eq.s32.totalorder %s85, 0
    %s88 = sadd.s32 %s87, 1
    %s89 = scalar_select %p86, %s87, %s88
    %p92 = pneg %p86
    %p93 = scmp.eq.s32.totalorder %s9, 1
    %p94 = por %p92, %p93
    %p95 = scmp.ne.s32.totalorder %s87, %s90
    %p96 = scmp.eq.s32.totalorder %s9, 0
    %p97 = por %p95, %p96
    %p98 = scmp.ne.s32.totalorder %s87, %s90
    %p99 = scmp.eq.s32.totalorder %s14, 1
    %p100 = por %p98, %p99
    %p101 = scmp.ne.s32.totalorder %s90, %s91
    %p102 = scmp.eq.s32.totalorder %s14, 0
    %p103 = por %p101, %p102
    %p104 = scmp.ne.s32.totalorder %s90, %s91
    %p105 = scmp.eq.s32.totalorder %s15, 1
    %p106 = por %p104, %p105
    %p108 = scmp.ne.s32.totalorder %s91, %s107
    %p109 = scmp.eq.s32.totalorder %s15, 0
    %p110 = por %p108, %p109
    %p111 = scmp.le.s32.totalorder 1, %s9
    %p112 = scmp.lt.s32.totalorder %s9, 3
    %p113 = pnand %p111, %p112
    %p114 = pneg %p113
    // Predicated region
    $region9: #{_lambda_.9} parent=5 // pred_check
      _
    $region10: #{_lambda_.9} parent=5 // pred_check_branch
      %116 = sbr.rel (%p113) target = $region12
    $region11: #{_lambda_.9} parent=5 // pred_region
      %s117 = ssub.s32 %s9, 1
      // Predicated region
      $region13: #{_lambda_.9} parent=11 // pred_check
        %p118 = pneg %p56
      $region14: #{_lambda_.9} parent=11 // pred_check_branch
        %120 = sbr.rel (%p118) target = $region16
      $region15: #{_lambda_.9} parent=11 // pred_region
        _
      $region16: #{_lambda_.9} parent=11 // pred_fallthru
        _
      // Predicated region
      $region17: #{_lambda_.9} parent=11 // pred_check
        %p121 = pneg %p77
      $region18: #{_lambda_.9} parent=11 // pred_check_branch
        %123 = sbr.rel (%p121) target = $region20
      $region19: #{_lambda_.9} parent=11 // pred_region
        _
      $region20: #{_lambda_.9} parent=11 // pred_fallthru
        _
    $region12: #{_lambda_.9} parent=5 // pred_fallthru
      _
    %p124 = scmp.lt.s32.totalorder %s9, 2
    // Predicated region
    $region21: #{_lambda_.9} parent=5 // pred_check
      %p125 = pneg %p124
    $region22: #{_lambda_.9} parent=5 // pred_check_branch
      %127 = sbr.rel (%p125) target = $region24
    $region23: #{_lambda_.9} parent=5 // pred_region
      // Predicated region
      $region25: #{_lambda_.9} parent=23 // pred_check
        %p128 = pneg %p29
      $region26: #{_lambda_.9} parent=23 // pred_check_branch
        %130 = sbr.rel (%p128) target = $region28
      $region27: #{_lambda_.9} parent=23 // pred_region
        %s131 = smul.u32 8, %s9
        %p132 = scmp.lt.s32.totalorder %s131, 15
        %s133 = scalar_select %p132, %s131, 15
        %s134 = smul.addr %s133, 4
        %s135 = scalar_lea.vmem %s0, %s134
        %s136 = smul.u32 8, %s9
      $region28: #{_lambda_.9} parent=23 // pred_fallthru
        _
    $region24: #{_lambda_.9} parent=5 // pred_fallthru
      _
    %p137 = scmp.le.s32.totalorder 1, %s9
    %p138 = scmp.lt.s32.totalorder %s9, 3
    %p139 = pnand %p137, %p138
    %p140 = pneg %p139
    // Predicated region
    $region29: #{_lambda_.9} parent=5 // pred_check
      _
    $region30: #{_lambda_.9} parent=5 // pred_check_branch
      %142 = sbr.rel (%p139) target = $region32
    $region31: #{_lambda_.9} parent=5 // pred_region
      %s143 = ssub.s32 %s9, 1
      %s144 = smul.u32 8, %s14
      %p145 = scmp.lt.s32.totalorder %s144, 15
      %s146 = scalar_select %p145, %s144, 15
      %s147 = smul.addr %s146, 4
      %s148 = scalar_lea.vmem %s0, %s147
      %p149 = pneg %p35
      %p150 = pneg %p32
      %p151 = pneg %p56
      %p152 = pneg %p53
      %p153 = pneg %p77
      %p154 = pneg %p74
      %p155 = pneg %p103
      %p156 = pneg %p100
      %s157 = smul.u32 8, %s14
      %p158 = scmp.lt.s32.totalorder %s157, 15
      %s159 = scalar_select %p158, %s157, 15
      %s160 = smul.addr %s159, 2
      %s161 = smul.addr %s160, 4
      %s162 = scalar_lea.vmem %s3, %s161
      %s163 = smul.u32 8, %s14
      %p164 = scmp.lt.s32.totalorder %s163, 15
      %s165 = scalar_select %p164, %s163, 15
      %s166 = smul.addr %s165, 4
      %s167 = scalar_lea.vmem %s0, %s166
      %s168 = smul.u32 8, %s14
      %s169 = smul.u32 8, %s14
      %p170 = scmp.lt.s32.totalorder %s169, 15
      %s171 = scalar_select %p170, %s169, 15
      %s172 = smul.addr %s171, 2
      %s173 = smul.addr %s172, 4
      %s174 = scalar_lea.vmem %s3, %s173
      %s175 = smul.u32 8, %s14
      %v176 = vld [vmem:[%s167] sm:$0xf]
      %v177 = vld [vmem:[%s167 + $0x4] sm:$0xf]
      %v178 = vld [vmem:[%s167 + $0x8] sm:$0xf]
      %v179 = vld [vmem:[%s167 + $0xc] sm:$0xf]
      %v180 = vld [vmem:[%s167 + $0x10] sm:$0xf]
      %v181 = vld [vmem:[%s167 + $0x14] sm:$0xf]
      %v182 = vld [vmem:[%s167 + $0x18] sm:$0xf]
      %v183 = vld [vmem:[%s167 + $0x1c] sm:$0xf]
      %v184 = vld [vmem:[%s1] sm:$0xff]
      %v185 = vld [vmem:[%s1 + $0x8] sm:$0xff]
      %v186 = vld [vmem:[%s1 + $0x10] sm:$0xff]
      %v187 = vld [vmem:[%s1 + $0x18] sm:$0xff]
      %v188 = vld [vmem:[%s1 + $0x20] sm:$0xff]
      %v189 = vld [vmem:[%s1 + $0x28] sm:$0xff]
      %v190 = vld [vmem:[%s1 + $0x30] sm:$0xff]
      %v191 = vld [vmem:[%s1 + $0x38] sm:$0xff]
      %v192 = vld [vmem:[%s1 + $0x40] sm:$0xff]
      %v193 = vld [vmem:[%s1 + $0x48] sm:$0xff]
      %v194 = vld [vmem:[%s1 + $0x50] sm:$0xff]
      %v195 = vld [vmem:[%s1 + $0x58] sm:$0xff]
      %v196 = vld [vmem:[%s1 + $0x60] sm:$0xff]
      %v197 = vld [vmem:[%s1 + $0x68] sm:$0xff]
      %v198 = vld [vmem:[%s1 + $0x70] sm:$0xff]
      %v199 = vld [vmem:[%s1 + $0x78] sm:$0xff]
      %v200 = vld [vmem:[%s2] sm:$0x3]
      %v202 = vperm.slane %v200, 0
      %v203 = vperm.slane %v200, 1
      %v214 = vunpack.c.l.b16 %v176
      %v215 = vunpack.c.l.b16 %v177
      %v216 = vunpack.c.l.b16 %v178
      %v217 = vunpack.c.l.b16 %v179
      %v218 = vunpack.c.l.b16 %v180
      %v219 = vunpack.c.l.b16 %v181
      %v220 = vunpack.c.l.b16 %v182
      %v221 = vunpack.c.l.b16 %v183
      %v222 = vpack.c.b16 %v215, %v214
      %v223 = vpack.c.b16 %v217, %v216
      %v224 = vpack.c.b16 %v219, %v218
      %v225 = vpack.c.b16 %v221, %v220
      %v246 = vunpack.c.l.b16 %v184
      %v247 = vunpack.c.h.b16 %v184
      %v248 = vunpack.c.l.b16 %v185
      %v249 = vunpack.c.h.b16 %v185
      %v250 = vunpack.c.l.b16 %v186
      %v251 = vunpack.c.h.b16 %v186
      %v252 = vunpack.c.l.b16 %v187
      %v253 = vunpack.c.h.b16 %v187
      %v254 = vunpack.c.l.b16 %v188
      %v255 = vunpack.c.h.b16 %v188
      %v256 = vunpack.c.l.b16 %v189
      %v257 = vunpack.c.h.b16 %v189
      %v258 = vunpack.c.l.b16 %v190
      %v259 = vunpack.c.h.b16 %v190
      %v260 = vunpack.c.l.b16 %v191
      %v261 = vunpack.c.h.b16 %v191
      %v262 = vunpack.c.l.b16 %v192
      %v263 = vunpack.c.h.b16 %v192
      %v264 = vunpack.c.l.b16 %v193
      %v265 = vunpack.c.h.b16 %v193
      %v266 = vunpack.c.l.b16 %v194
      %v267 = vunpack.c.h.b16 %v194
      %v268 = vunpack.c.l.b16 %v195
      %v269 = vunpack.c.h.b16 %v195
      %v270 = vunpack.c.l.b16 %v196
      %v271 = vunpack.c.h.b16 %v196
      %v272 = vunpack.c.l.b16 %v197
      %v273 = vunpack.c.h.b16 %v197
      %v274 = vunpack.c.l.b16 %v198
      %v275 = vunpack.c.h.b16 %v198
      %v276 = vunpack.c.l.b16 %v199
      %v277 = vunpack.c.h.b16 %v199
      %v278 = vpack.c.b16 %v248, %v246
      %v279 = vpack.c.b16 %v249, %v247
      %v280 = vpack.c.b16 %v252, %v250
      %v281 = vpack.c.b16 %v253, %v251
      %v282 = vpack.c.b16 %v256, %v254
      %v283 = vpack.c.b16 %v257, %v255
      %v284 = vpack.c.b16 %v260, %v258
      %v285 = vpack.c.b16 %v261, %v259
      %v286 = vpack.c.b16 %v264, %v262
      %v287 = vpack.c.b16 %v265, %v263
      %v288 = vpack.c.b16 %v268, %v266
      %v289 = vpack.c.b16 %v269, %v267
      %v290 = vpack.c.b16 %v272, %v270
      %v291 = vpack.c.b16 %v273, %v271
      %v292 = vpack.c.b16 %v276, %v274
      %v293 = vpack.c.b16 %v277, %v275
      %310 = vmatpush.bf16.msra.mxu0 %v292
      %311 = vmatpush.bf16.msra.mxu0 %v290
      %312 = vmatpush.bf16.msra.mxu0 %v288
      %313 = vmatpush.bf16.msra.mxu0 %v286
      %314 = vmatpush.bf16.msra.mxu0 %v284
      %315 = vmatpush.bf16.msra.mxu0 %v282
      %316 = vmatpush.bf16.msra.mxu0 %v280
      %317 = vmatpush.bf16.msra.mxu0 %v278
      %318 = vmatmul.bf16.gmra.mxu0 %v222
      %v319 = vpop.f32.mrf.mxu0
      %v320 = vadd.f32 %v202, %v319
      %v321 = vpop.f32.mrf.mxu0
      %v322 = vadd.f32 %v202, %v321
      %323 = vmatmul.bf16.gmra.mxu0 %v223
      %v324 = vpop.f32.mrf.mxu0
      %v325 = vadd.f32 %v202, %v324
      %v326 = vpop.f32.mrf.mxu0
      %v327 = vadd.f32 %v202, %v326
      %328 = vmatmul.bf16.gmra.mxu0 %v224
      %v329 = vpop.f32.mrf.mxu0
      %v330 = vadd.f32 %v202, %v329
      %v331 = vpop.f32.mrf.mxu0
      %v332 = vadd.f32 %v202, %v331
      %333 = vmatmul.bf16.gmra.mxu0 %v225
      %v334 = vpop.f32.mrf.mxu0
      %v335 = vadd.f32 %v202, %v334
      %v336 = vpop.f32.mrf.mxu0
      %v337 = vadd.f32 %v202, %v336
      %338 = vdwg.mxu0
      %339 = vmatpush.bf16.msra.mxu0 %v293
      %340 = vmatpush.bf16.msra.mxu0 %v291
      %341 = vmatpush.bf16.msra.mxu0 %v289
      %342 = vmatpush.bf16.msra.mxu0 %v287
      %343 = vmatpush.bf16.msra.mxu0 %v285
      %344 = vmatpush.bf16.msra.mxu0 %v283
      %345 = vmatpush.bf16.msra.mxu0 %v281
      %346 = vmatpush.bf16.msra.mxu0 %v279
      %347 = vmatmul.bf16.gmra.mxu0 %v222
      %v348 = vpop.f32.mrf.mxu0
      %v349 = vadd.f32 %v203, %v348
      %v350 = vpop.f32.mrf.mxu0
      %v351 = vadd.f32 %v203, %v350
      %352 = vmatmul.bf16.gmra.mxu0 %v223
      %v353 = vpop.f32.mrf.mxu0
      %v354 = vadd.f32 %v203, %v353
      %v355 = vpop.f32.mrf.mxu0
      %v356 = vadd.f32 %v203, %v355
      %357 = vmatmul.bf16.gmra.mxu0 %v224
      %v358 = vpop.f32.mrf.mxu0
      %v359 = vadd.f32 %v203, %v358
      %v360 = vpop.f32.mrf.mxu0
      %v361 = vadd.f32 %v203, %v360
      %362 = vmatmul.bf16.gmra.mxu0 %v225
      %v363 = vpop.f32.mrf.mxu0
      %v364 = vadd.f32 %v203, %v363
      %v365 = vpop.f32.mrf.mxu0
      %v366 = vadd.f32 %v203, %v365
      %367 = vdwg.mxu0
      %v368 = vmin.f32 %v320, 20.0
      %v369 = vmin.f32 %v349, 20.0
      %v370 = vmin.f32 %v322, 20.0
      %v371 = vmin.f32 %v351, 20.0
      %v372 = vmin.f32 %v325, 20.0
      %v373 = vmin.f32 %v354, 20.0
      %v374 = vmin.f32 %v327, 20.0
      %v375 = vmin.f32 %v356, 20.0
      %v376 = vmin.f32 %v330, 20.0
      %v377 = vmin.f32 %v359, 20.0
      %v378 = vmin.f32 %v332, 20.0
      %v379 = vmin.f32 %v361, 20.0
      %v380 = vmin.f32 %v335, 20.0
      %v381 = vmin.f32 %v364, 20.0
      %v382 = vmin.f32 %v337, 20.0
      %v383 = vmin.f32 %v366, 20.0
      %v384 = vmul.f32 %v368, 1.442695
      %v385 = vpow.pop %v384
      %v386 = vmul.f32 %v369, 1.442695
      %v387 = vpow.pop %v386
      %v388 = vmul.f32 %v370, 1.442695
      %v389 = vpow.pop %v388
      %v390 = vmul.f32 %v371, 1.442695
      %v391 = vpow.pop %v390
      %v392 = vmul.f32 %v372, 1.442695
      %v393 = vpow.pop %v392
      %v394 = vmul.f32 %v373, 1.442695
      %v395 = vpow.pop %v394
      %v396 = vmul.f32 %v374, 1.442695
      %v397 = vpow.pop %v396
      %v398 = vmul.f32 %v375, 1.442695
      %v399 = vpow.pop %v398
      %v400 = vmul.f32 %v376, 1.442695
      %v401 = vpow.pop %v400
      %v402 = vmul.f32 %v377, 1.442695
      %v403 = vpow.pop %v402
      %v404 = vmul.f32 %v378, 1.442695
      %v405 = vpow.pop %v404
      %v406 = vmul.f32 %v379, 1.442695
      %v407 = vpow.pop %v406
      %v408 = vmul.f32 %v380, 1.442695
      %v409 = vpow.pop %v408
      %v410 = vmul.f32 %v381, 1.442695
      %v411 = vpow.pop %v410
      %v412 = vmul.f32 %v382, 1.442695
      %v413 = vpow.pop %v412
      %v414 = vmul.f32 %v383, 1.442695
      %v415 = vpow.pop %v414
      %v416 = vadd.f32 %v385, 2.0
      %v417 = vadd.f32 %v387, 2.0
      %v418 = vadd.f32 %v389, 2.0
      %v419 = vadd.f32 %v391, 2.0
      %v420 = vadd.f32 %v393, 2.0
      %v421 = vadd.f32 %v395, 2.0
      %v422 = vadd.f32 %v397, 2.0
      %v423 = vadd.f32 %v399, 2.0
      %v424 = vadd.f32 %v401, 2.0
      %v425 = vadd.f32 %v403, 2.0
      %v426 = vadd.f32 %v405, 2.0
      %v427 = vadd.f32 %v407, 2.0
      %v428 = vadd.f32 %v409, 2.0
      %v429 = vadd.f32 %v411, 2.0
      %v430 = vadd.f32 %v413, 2.0
      %v431 = vadd.f32 %v415, 2.0
      %v432 = vmul.f32 %v385, %v416
      %v433 = vmul.f32 %v387, %v417
      %v434 = vmul.f32 %v389, %v418
      %v435 = vmul.f32 %v391, %v419
      %v436 = vmul.f32 %v393, %v420
      %v437 = vmul.f32 %v395, %v421
      %v438 = vmul.f32 %v397, %v422
      %v439 = vmul.f32 %v399, %v423
      %v440 = vmul.f32 %v401, %v424
      %v441 = vmul.f32 %v403, %v425
      %v442 = vmul.f32 %v405, %v426
      %v443 = vmul.f32 %v407, %v427
      %v444 = vmul.f32 %v409, %v428
      %v445 = vmul.f32 %v411, %v429
      %v446 = vmul.f32 %v413, %v430
      %v447 = vmul.f32 %v415, %v431
      %v448 = vmul.f32 %v320, %v432
      %v449 = vmul.f32 %v349, %v433
      %v450 = vmul.f32 %v322, %v434
      %v451 = vmul.f32 %v351, %v435
      %v452 = vmul.f32 %v325, %v436
      %v453 = vmul.f32 %v354, %v437
      %v454 = vmul.f32 %v327, %v438
      %v455 = vmul.f32 %v356, %v439
      %v456 = vmul.f32 %v330, %v440
      %v457 = vmul.f32 %v359, %v441
      %v458 = vmul.f32 %v332, %v442
      %v459 = vmul.f32 %v361, %v443
      %v460 = vmul.f32 %v335, %v444
      %v461 = vmul.f32 %v364, %v445
      %v462 = vmul.f32 %v337, %v446
      %v463 = vmul.f32 %v366, %v447
      %v464 = vadd.f32 %v432, 2.0
      %v465 = vadd.f32 %v433, 2.0
      %v466 = vadd.f32 %v434, 2.0
      %v467 = vadd.f32 %v435, 2.0
      %v468 = vadd.f32 %v436, 2.0
      %v469 = vadd.f32 %v437, 2.0
      %v470 = vadd.f32 %v438, 2.0
      %v471 = vadd.f32 %v439, 2.0
      %v472 = vadd.f32 %v440, 2.0
      %v473 = vadd.f32 %v441, 2.0
      %v474 = vadd.f32 %v442, 2.0
      %v475 = vadd.f32 %v443, 2.0
      %v476 = vadd.f32 %v444, 2.0
      %v477 = vadd.f32 %v445, 2.0
      %v478 = vadd.f32 %v446, 2.0
      %v479 = vadd.f32 %v447, 2.0
      %v480 = vrcp.pop %v464
      %v481 = vrcp.pop %v465
      %v482 = vrcp.pop %v466
      %v483 = vrcp.pop %v467
      %v484 = vrcp.pop %v468
      %v485 = vrcp.pop %v469
      %v486 = vrcp.pop %v470
      %v487 = vrcp.pop %v471
      %v488 = vrcp.pop %v472
      %v489 = vrcp.pop %v473
      %v490 = vrcp.pop %v474
      %v491 = vrcp.pop %v475
      %v492 = vrcp.pop %v476
      %v493 = vrcp.pop %v477
      %v494 = vrcp.pop %v478
      %v495 = vrcp.pop %v479
      %v496 = vmul.f32 %v448, %v480
      %v497 = vmul.f32 %v449, %v481
      %v498 = vmul.f32 %v450, %v482
      %v499 = vmul.f32 %v451, %v483
      %v500 = vmul.f32 %v452, %v484
      %v501 = vmul.f32 %v453, %v485
      %v502 = vmul.f32 %v454, %v486
      %v503 = vmul.f32 %v455, %v487
      %v504 = vmul.f32 %v456, %v488
      %v505 = vmul.f32 %v457, %v489
      %v506 = vmul.f32 %v458, %v490
      %v507 = vmul.f32 %v459, %v491
      %v508 = vmul.f32 %v460, %v492
      %v509 = vmul.f32 %v461, %v493
      %v510 = vmul.f32 %v462, %v494
      %v511 = vmul.f32 %v463, %v495
      %v512 = vpack.c.bf16 %v497, %v496
      %v513 = vpack.c.bf16 %v499, %v498
      %v514 = vpack.c.bf16 %v501, %v500
      %v515 = vpack.c.bf16 %v503, %v502
      %v516 = vpack.c.bf16 %v505, %v504
      %v517 = vpack.c.bf16 %v507, %v506
      %v518 = vpack.c.bf16 %v509, %v508
      %v519 = vpack.c.bf16 %v511, %v510
      %520 = vst [vmem:[%s174] sm:$0xff] %v512
      %521 = vst [vmem:[%s174 + $0x8] sm:$0xff] %v513
      %522 = vst [vmem:[%s174 + $0x10] sm:$0xff] %v514
      %523 = vst [vmem:[%s174 + $0x18] sm:$0xff] %v515
      %524 = vst [vmem:[%s174 + $0x20] sm:$0xff] %v516
      %525 = vst [vmem:[%s174 + $0x28] sm:$0xff] %v517
      %526 = vst [vmem:[%s174 + $0x30] sm:$0xff] %v518
      %527 = vst [vmem:[%s174 + $0x38] sm:$0xff] %v519
      %s528 = smul.u32 8, %s14
      %p529 = scmp.lt.s32.totalorder %s528, 15
      %s530 = scalar_select %p529, %s528, 15
      %s531 = smul.addr %s530, 2
      %s532 = smul.addr %s531, 4
      %s533 = scalar_lea.vmem %s3, %s532
      // Predicated region
      $region33: #{_lambda_.9} parent=31 // pred_check
        %p534 = pneg %p100
      $region34: #{_lambda_.9} parent=31 // pred_check_branch
        %536 = sbr.rel (%p534) target = $region36
      $region35: #{_lambda_.9} parent=31 // pred_region
        %s537 = smul.u32 8, %s14
      $region36: #{_lambda_.9} parent=31 // pred_fallthru
        _
    $region32: #{_lambda_.9} parent=5 // pred_fallthru
      _
    %p538 = scmp.le.s32.totalorder 2, %s9
    // Predicated region
    $region37: #{_lambda_.9} parent=5 // pred_check
      %p539 = pneg %p538
    $region38: #{_lambda_.9} parent=5 // pred_check_branch
      %541 = sbr.rel (%p539) target = $region40
    $region39: #{_lambda_.9} parent=5 // pred_region
      %s542 = ssub.s32 %s9, 2
      // Predicated region
      $region41: #{_lambda_.9} parent=39 // pred_check
        %p543 = pneg %p106
      $region42: #{_lambda_.9} parent=39 // pred_check_branch
        %545 = sbr.rel (%p543) target = $region44
      $region43: #{_lambda_.9} parent=39 // pred_region
        %s546 = smul.u32 8, %s15
        %p547 = scmp.lt.s32.totalorder %s546, 15
        %s548 = scalar_select %p547, %s546, 15
        %s549 = smul.addr %s548, 2
        %s550 = smul.addr %s549, 4
        %s551 = scalar_lea.vmem %s3, %s550
      $region44: #{_lambda_.9} parent=39 // pred_fallthru
        _
    $region40: #{_lambda_.9} parent=5 // pred_fallthru
      _
  $region6: #{_lambda_.9} parent=0 // loop_footer
    %s13 = sadd.s32 1, %s9
  $region7: #{_lambda_.9} parent=0 // loop_footer_branch
    %8 = sbr.rel target = $region3
  $region8: #{_lambda_.9} parent=0 // loop_exit
    _

// kernel: _lambda_.10
$region0: #{_lambda_.10}
  #allocation0 [shape = 'u32[]', space=smem, size = 0x4, offset = 0x4, fixed_abs, tag = 'smem constant byte address 0x4 - core index']
  #allocation1 [shape = 'u32[72,128]{1,0:T(1,128)}', space=vmem, size = 0x9000, scoped, tag = 'internal scratch']
  %s0 = inlined_call_operand.vmem [shape: bf16[128,128], index: 0, kind: input, shape index: {}]
  %s1 = inlined_call_operand.vmem [shape: bf16[128,128], index: 1, kind: input, shape index: {}]
  %s2 = inlined_call_operand.vmem [shape: f32[1,128], index: 2, kind: input, shape index: {}]
  %s3 = inlined_call_operand.vmem [shape: bf16[128,128], index: 3, kind: output, shape index: {}]
  %s4 = sld [smem:[#allocation0]]
  $region45: #{_lambda_.10} parent=0
    _
  %s6 = ssub.s32 1, %s4
  %s7 = scalar_select 0, %s6, %s4
  loop: start=0, step=1, limit=4
  $region2: #{_lambda_.10} parent=0 // loop_pre_header
    _
  $region3: #{_lambda_.10} parent=0 // loop_header
    %s9 = sphi 0, %s13
    %p10 = scmp.ge.s32.totalorder %s9, 4
    %s19 = sphi 0, %s21
    %s22 = sphi 0, %s19
    %s23 = sphi 0, %s22
    %s39 = sphi 0, %s23
    %s43 = sphi 0, %s43
    %s45 = sphi 0, %s43
    %s46 = sphi 0, %s45
    %s60 = sphi 0, %s46
    %s64 = sphi 0, %s64
    %s66 = sphi 0, %s64
    %s67 = sphi 0, %s66
    %s81 = sphi 0, %s67
    %s87 = sphi 0, %s89
    %s90 = sphi 0, %s87
    %s91 = sphi 0, %s90
    %s107 = sphi 0, %s91
  $region4: #{_lambda_.10} parent=0 // loop_header_branch
    %12 = sbr.rel (%p10) target = $region8
  $region5: #{_lambda_.10} parent=0 // loop_body
    %s14 = ssub.s32 %s9, 1
    %s15 = ssub.s32 %s9, 2
    %s16 = sadd.s32 %s9, 1
    %s17 = ssub.s32 %s9, %s16
    %p18 = scmp.eq.s32.totalorder %s17, 0
    %s20 = sadd.s32 %s19, 1
    %s21 = scalar_select %p18, %s19, %s20
    %p24 = pneg %p18
    %p25 = scmp.eq.s32.totalorder %s9, 1
    %p26 = por %p24, %p25
    %p27 = scmp.ne.s32.totalorder %s19, %s22
    %p28 = scmp.eq.s32.totalorder %s9, 0
    %p29 = por %p27, %p28
    %p30 = scmp.ne.s32.totalorder %s19, %s22
    %p31 = scmp.eq.s32.totalorder %s14, 1
    %p32 = por %p30, %p31
    %p33 = scmp.ne.s32.totalorder %s22, %s23
    %p34 = scmp.eq.s32.totalorder %s14, 0
    %p35 = por %p33, %p34
    %p36 = scmp.ne.s32.totalorder %s22, %s23
    %p37 = scmp.eq.s32.totalorder %s15, 1
    %p38 = por %p36, %p37
    %p40 = scmp.ne.s32.totalorder %s23, %s39
    %p41 = scmp.eq.s32.totalorder %s15, 0
    %p42 = por %p40, %p41
    %s44 = sadd.s32 %s43, 1
    %p47 = scmp.eq.s32.totalorder %s9, 1
    %p48 = scmp.ne.s32.totalorder %s43, %s45
    %p49 = scmp.eq.s32.totalorder %s9, 0
    %p50 = por %p48, %p49
    %p51 = scmp.ne.s32.totalorder %s43, %s45
    %p52 = scmp.eq.s32.totalorder %s14, 1
    %p53 = por %p51, %p52
    %p54 = scmp.ne.s32.totalorder %s45, %s46
    %p55 = scmp.eq.s32.totalorder %s14, 0
    %p56 = por %p54, %p55
    %p57 = scmp.ne.s32.totalorder %s45, %s46
    %p58 = scmp.eq.s32.totalorder %s15, 1
    %p59 = por %p57, %p58
    %p61 = scmp.ne.s32.totalorder %s46, %s60
    %p62 = scmp.eq.s32.totalorder %s15, 0
    %p63 = por %p61, %p62
    %s65 = sadd.s32 %s64, 1
    %p68 = scmp.eq.s32.totalorder %s9, 1
    %p69 = scmp.ne.s32.totalorder %s64, %s66
    %p70 = scmp.eq.s32.totalorder %s9, 0
    %p71 = por %p69, %p70
    %p72 = scmp.ne.s32.totalorder %s64, %s66
    %p73 = scmp.eq.s32.totalorder %s14, 1
    %p74 = por %p72, %p73
    %p75 = scmp.ne.s32.totalorder %s66, %s67
    %p76 = scmp.eq.s32.totalorder %s14, 0
    %p77 = por %p75, %p76
    %p78 = scmp.ne.s32.totalorder %s66, %s67
    %p79 = scmp.eq.s32.totalorder %s15, 1
    %p80 = por %p78, %p79
    %p82 = scmp.ne.s32.totalorder %s67, %s81
    %p83 = scmp.eq.s32.totalorder %s15, 0
    %p84 = por %p82, %p83
    %s85 = ssub.s32 %s9, %s16
    %p86 = scmp.eq.s32.totalorder %s85, 0
    %s88 = sadd.s32 %s87, 1
    %s89 = scalar_select %p86, %s87, %s88
    %p92 = pneg %p86
    %p93 = scmp.eq.s32.totalorder %s9, 1
    %p94 = por %p92, %p93
    %p95 = scmp.ne.s32.totalorder %s87, %s90
    %p96 = scmp.eq.s32.totalorder %s9, 0
    %p97 = por %p95, %p96
    %p98 = scmp.ne.s32.totalorder %s87, %s90
    %p99 = scmp.eq.s32.totalorder %s14, 1
    %p100 = por %p98, %p99
    %p101 = scmp.ne.s32.totalorder %s90, %s91
    %p102 = scmp.eq.s32.totalorder %s14, 0
    %p103 = por %p101, %p102
    %p104 = scmp.ne.s32.totalorder %s90, %s91
    %p105 = scmp.eq.s32.totalorder %s15, 1
    %p106 = por %p104, %p105
    %p108 = scmp.ne.s32.totalorder %s91, %s107
    %p109 = scmp.eq.s32.totalorder %s15, 0
    %p110 = por %p108, %p109
    %p111 = scmp.le.s32.totalorder 1, %s9
    %p112 = scmp.lt.s32.totalorder %s9, 3
    %p113 = pnand %p111, %p112
    %p114 = pneg %p113
    // Predicated region
    $region9: #{_lambda_.10} parent=5 // pred_check
      _
    $region10: #{_lambda_.10} parent=5 // pred_check_branch
      %116 = sbr.rel (%p113) target = $region12
    $region11: #{_lambda_.10} parent=5 // pred_region
      %s117 = ssub.s32 %s9, 1
      // Predicated region
      $region13: #{_lambda_.10} parent=11 // pred_check
        %p118 = pneg %p56
      $region14: #{_lambda_.10} parent=11 // pred_check_branch
        %120 = sbr.rel (%p118) target = $region16
      $region15: #{_lambda_.10} parent=11 // pred_region
        _
      $region16: #{_lambda_.10} parent=11 // pred_fallthru
        _
      // Predicated region
      $region17: #{_lambda_.10} parent=11 // pred_check
        %p121 = pneg %p77
      $region18: #{_lambda_.10} parent=11 // pred_check_branch
        %123 = sbr.rel (%p121) target = $region20
      $region19: #{_lambda_.10} parent=11 // pred_region
        _
      $region20: #{_lambda_.10} parent=11 // pred_fallthru
        _
    $region12: #{_lambda_.10} parent=5 // pred_fallthru
      _
    %p124 = scmp.lt.s32.totalorder %s9, 2
    // Predicated region
    $region21: #{_lambda_.10} parent=5 // pred_check
      %p125 = pneg %p124
    $region22: #{_lambda_.10} parent=5 // pred_check_branch
      %127 = sbr.rel (%p125) target = $region24
    $region23: #{_lambda_.10} parent=5 // pred_region
      // Predicated region
      $region25: #{_lambda_.10} parent=23 // pred_check
        %p128 = pneg %p29
      $region26: #{_lambda_.10} parent=23 // pred_check_branch
        %130 = sbr.rel (%p128) target = $region28
      $region27: #{_lambda_.10} parent=23 // pred_region
        %s131 = smul.u32 8, %s9
        %p132 = scmp.lt.s32.totalorder %s131, 15
        %s133 = scalar_select %p132, %s131, 15
        %s134 = smul.addr %s133, 4
        %s135 = scalar_lea.vmem %s0, %s134
        %s136 = smul.u32 8, %s9
      $region28: #{_lambda_.10} parent=23 // pred_fallthru
        _
    $region24: #{_lambda_.10} parent=5 // pred_fallthru
      _
    %p137 = scmp.le.s32.totalorder 1, %s9
    %p138 = scmp.lt.s32.totalorder %s9, 3
    %p139 = pnand %p137, %p138
    %p140 = pneg %p139
    // Predicated region
    $region29: #{_lambda_.10} parent=5 // pred_check
      _
    $region30: #{_lambda_.10} parent=5 // pred_check_branch
      %142 = sbr.rel (%p139) target = $region32
    $region31: #{_lambda_.10} parent=5 // pred_region
      %s143 = ssub.s32 %s9, 1
      %s144 = smul.u32 8, %s14
      %p145 = scmp.lt.s32.totalorder %s144, 15
      %s146 = scalar_select %p145, %s144, 15
      %s147 = smul.addr %s146, 4
      %s148 = scalar_lea.vmem %s0, %s147
      %p149 = pneg %p35
      %p150 = pneg %p32
      %p151 = pneg %p56
      %p152 = pneg %p53
      %p153 = pneg %p77
      %p154 = pneg %p74
      %p155 = pneg %p103
      %p156 = pneg %p100
      %s157 = smul.u32 8, %s14
      %p158 = scmp.lt.s32.totalorder %s157, 15
      %s159 = scalar_select %p158, %s157, 15
      %s160 = smul.addr %s159, 4
      %s161 = scalar_lea.vmem %s3, %s160
      %s162 = smul.u32 8, %s14
      %p163 = scmp.lt.s32.totalorder %s162, 15
      %s164 = scalar_select %p163, %s162, 15
      %s165 = smul.addr %s164, 4
      %s166 = scalar_lea.vmem %s0, %s165
      %s167 = smul.u32 8, %s14
      %s168 = smul.u32 8, %s14
      %p169 = scmp.lt.s32.totalorder %s168, 15
      %s170 = scalar_select %p169, %s168, 15
      %s171 = smul.addr %s170, 4
      %s172 = scalar_lea.vmem %s3, %s171
      %s173 = smul.u32 8, %s14
      %v174 = vld [vmem:[%s166] sm:$0xf]
      %v175 = vld [vmem:[%s166 + $0x4] sm:$0xf]
      %v176 = vld [vmem:[%s166 + $0x8] sm:$0xf]
      %v177 = vld [vmem:[%s166 + $0xc] sm:$0xf]
      %v178 = vld [vmem:[%s166 + $0x10] sm:$0xf]
      %v179 = vld [vmem:[%s166 + $0x14] sm:$0xf]
      %v180 = vld [vmem:[%s166 + $0x18] sm:$0xf]
      %v181 = vld [vmem:[%s166 + $0x1c] sm:$0xf]
      %v182 = vld [vmem:[%s1] sm:$0xf]
      %v183 = vld [vmem:[%s1 + $0x4] sm:$0xf]
      %v184 = vld [vmem:[%s1 + $0x8] sm:$0xf]
      %v185 = vld [vmem:[%s1 + $0xc] sm:$0xf]
      %v186 = vld [vmem:[%s1 + $0x10] sm:$0xf]
      %v187 = vld [vmem:[%s1 + $0x14] sm:$0xf]
      %v188 = vld [vmem:[%s1 + $0x18] sm:$0xf]
      %v189 = vld [vmem:[%s1 + $0x1c] sm:$0xf]
      %v190 = vld [vmem:[%s1 + $0x20] sm:$0xf]
      %v191 = vld [vmem:[%s1 + $0x24] sm:$0xf]
      %v192 = vld [vmem:[%s1 + $0x28] sm:$0xf]
      %v193 = vld [vmem:[%s1 + $0x2c] sm:$0xf]
      %v194 = vld [vmem:[%s1 + $0x30] sm:$0xf]
      %v195 = vld [vmem:[%s1 + $0x34] sm:$0xf]
      %v196 = vld [vmem:[%s1 + $0x38] sm:$0xf]
      %v197 = vld [vmem:[%s1 + $0x3c] sm:$0xf]
      %v198 = vld [vmem:[%s2] sm:$0x1]
      %v200 = vperm.slane %v198, 0
      %v210 = vunpack.c.l.b16 %v174
      %v211 = vunpack.c.l.b16 %v175
      %v212 = vunpack.c.l.b16 %v176
      %v213 = vunpack.c.l.b16 %v177
      %v214 = vunpack.c.l.b16 %v178
      %v215 = vunpack.c.l.b16 %v179
      %v216 = vunpack.c.l.b16 %v180
      %v217 = vunpack.c.l.b16 %v181
      %v218 = vpack.c.b16 %v211, %v210
      %v219 = vpack.c.b16 %v213, %v212
      %v220 = vpack.c.b16 %v215, %v214
      %v221 = vpack.c.b16 %v217, %v216
      %v242 = vunpack.c.l.b16 %v182
      %v243 = vunpack.c.l.b16 %v183
      %v244 = vunpack.c.l.b16 %v184
      %v245 = vunpack.c.l.b16 %v185
      %v246 = vunpack.c.l.b16 %v186
      %v247 = vunpack.c.l.b16 %v187
      %v248 = vunpack.c.l.b16 %v188
      %v249 = vunpack.c.l.b16 %v189
      %v250 = vunpack.c.l.b16 %v190
      %v251 = vunpack.c.l.b16 %v191
      %v252 = vunpack.c.l.b16 %v192
      %v253 = vunpack.c.l.b16 %v193
      %v254 = vunpack.c.l.b16 %v194
      %v255 = vunpack.c.l.b16 %v195
      %v256 = vunpack.c.l.b16 %v196
      %v257 = vunpack.c.l.b16 %v197
      %v258 = vpack.c.b16 %v243, %v242
      %v259 = vpack.c.b16 %v245, %v244
      %v260 = vpack.c.b16 %v247, %v246
      %v261 = vpack.c.b16 %v249, %v248
      %v262 = vpack.c.b16 %v251, %v250
      %v263 = vpack.c.b16 %v253, %v252
      %v264 = vpack.c.b16 %v255, %v254
      %v265 = vpack.c.b16 %v257, %v256
      %274 = vmatpush.bf16.msra.mxu0 %v265
      %275 = vmatpush.bf16.msra.mxu0 %v264
      %276 = vmatpush.bf16.msra.mxu0 %v263
      %277 = vmatpush.bf16.msra.mxu0 %v262
      %278 = vmatpush.bf16.msra.mxu0 %v261
      %279 = vmatpush.bf16.msra.mxu0 %v260
      %280 = vmatpush.bf16.msra.mxu0 %v259
      %281 = vmatpush.bf16.msra.mxu0 %v258
      %282 = vmatmul.bf16.gmra.mxu0 %v218
      %v283 = vpop.f32.mrf.mxu0
      %v284 = vadd.f32 %v200, %v283
      %v285 = vpop.f32.mrf.mxu0
      %v286 = vadd.f32 %v200, %v285
      %287 = vmatmul.bf16.gmra.mxu0 %v219
      %v288 = vpop.f32.mrf.mxu0
      %v289 = vadd.f32 %v200, %v288
      %v290 = vpop.f32.mrf.mxu0
      %v291 = vadd.f32 %v200, %v290
      %292 = vmatmul.bf16.gmra.mxu0 %v220
      %v293 = vpop.f32.mrf.mxu0
      %v294 = vadd.f32 %v200, %v293
      %v295 = vpop.f32.mrf.mxu0
      %v296 = vadd.f32 %v200, %v295
      %297 = vmatmul.bf16.gmra.mxu0 %v221
      %v298 = vpop.f32.mrf.mxu0
      %v299 = vadd.f32 %v200, %v298
      %v300 = vpop.f32.mrf.mxu0
      %v301 = vadd.f32 %v200, %v300
      %302 = vdwg.mxu0
      %v303 = vmin.f32 %v284, 20.0
      %v304 = vmin.f32 %v286, 20.0
      %v305 = vmin.f32 %v289, 20.0
      %v306 = vmin.f32 %v291, 20.0
      %v307 = vmin.f32 %v294, 20.0
      %v308 = vmin.f32 %v296, 20.0
      %v309 = vmin.f32 %v299, 20.0
      %v310 = vmin.f32 %v301, 20.0
      %v311 = vmul.f32 %v303, 1.442695
      %v312 = vpow.pop %v311
      %v313 = vmul.f32 %v304, 1.442695
      %v314 = vpow.pop %v313
      %v315 = vmul.f32 %v305, 1.442695
      %v316 = vpow.pop %v315
      %v317 = vmul.f32 %v306, 1.442695
      %v318 = vpow.pop %v317
      %v319 = vmul.f32 %v307, 1.442695
      %v320 = vpow.pop %v319
      %v321 = vmul.f32 %v308, 1.442695
      %v322 = vpow.pop %v321
      %v323 = vmul.f32 %v309, 1.442695
      %v324 = vpow.pop %v323
      %v325 = vmul.f32 %v310, 1.442695
      %v326 = vpow.pop %v325
      %v327 = vadd.f32 %v312, 2.0
      %v328 = vadd.f32 %v314, 2.0
      %v329 = vadd.f32 %v316, 2.0
      %v330 = vadd.f32 %v318, 2.0
      %v331 = vadd.f32 %v320, 2.0
      %v332 = vadd.f32 %v322, 2.0
      %v333 = vadd.f32 %v324, 2.0
      %v334 = vadd.f32 %v326, 2.0
      %v335 = vmul.f32 %v312, %v327
      %v336 = vmul.f32 %v314, %v328
      %v337 = vmul.f32 %v316, %v329
      %v338 = vmul.f32 %v318, %v330
      %v339 = vmul.f32 %v320, %v331
      %v340 = vmul.f32 %v322, %v332
      %v341 = vmul.f32 %v324, %v333
      %v342 = vmul.f32 %v326, %v334
      %v343 = vmul.f32 %v284, %v335
      %v344 = vmul.f32 %v286, %v336
      %v345 = vmul.f32 %v289, %v337
      %v346 = vmul.f32 %v291, %v338
      %v347 = vmul.f32 %v294, %v339
      %v348 = vmul.f32 %v296, %v340
      %v349 = vmul.f32 %v299, %v341
      %v350 = vmul.f32 %v301, %v342
      %v351 = vadd.f32 %v335, 2.0
      %v352 = vadd.f32 %v336, 2.0
      %v353 = vadd.f32 %v337, 2.0
      %v354 = vadd.f32 %v338, 2.0
      %v355 = vadd.f32 %v339, 2.0
      %v356 = vadd.f32 %v340, 2.0
      %v357 = vadd.f32 %v341, 2.0
      %v358 = vadd.f32 %v342, 2.0
      %v359 = vrcp.pop %v351
      %v360 = vrcp.pop %v352
      %v361 = vrcp.pop %v353
      %v362 = vrcp.pop %v354
      %v363 = vrcp.pop %v355
      %v364 = vrcp.pop %v356
      %v365 = vrcp.pop %v357
      %v366 = vrcp.pop %v358
      %v367 = vmul.f32 %v343, %v359
      %v368 = vmul.f32 %v344, %v360
      %v369 = vmul.f32 %v345, %v361
      %v370 = vmul.f32 %v346, %v362
      %v371 = vmul.f32 %v347, %v363
      %v372 = vmul.f32 %v348, %v364
      %v373 = vmul.f32 %v349, %v365
      %v374 = vmul.f32 %v350, %v366
      %v375 = vpack.c.bf16 %v367, %v367
      %v376 = vpack.c.bf16 %v368, %v368
      %v377 = vpack.c.bf16 %v369, %v369
      %v378 = vpack.c.bf16 %v370, %v370
      %v379 = vpack.c.bf16 %v371, %v371
      %v380 = vpack.c.bf16 %v372, %v372
      %v381 = vpack.c.bf16 %v373, %v373
      %v382 = vpack.c.bf16 %v374, %v374
      %383 = vst [vmem:[%s172] sm:$0xf] %v375
      %384 = vst [vmem:[%s172 + $0x4] sm:$0xf] %v376
      %385 = vst [vmem:[%s172 + $0x8] sm:$0xf] %v377
      %386 = vst [vmem:[%s172 + $0xc] sm:$0xf] %v378
      %387 = vst [vmem:[%s172 + $0x10] sm:$0xf] %v379
      %388 = vst [vmem:[%s172 + $0x14] sm:$0xf] %v380
      %389 = vst [vmem:[%s172 + $0x18] sm:$0xf] %v381
      %390 = vst [vmem:[%s172 + $0x1c] sm:$0xf] %v382
      %s391 = smul.u32 8, %s14
      %p392 = scmp.lt.s32.totalorder %s391, 15
      %s393 = scalar_select %p392, %s391, 15
      %s394 = smul.addr %s393, 4
      %s395 = scalar_lea.vmem %s3, %s394
      // Predicated region
      $region33: #{_lambda_.10} parent=31 // pred_check
        %p396 = pneg %p100
      $region34: #{_lambda_.10} parent=31 // pred_check_branch
        %398 = sbr.rel (%p396) target = $region36
      $region35: #{_lambda_.10} parent=31 // pred_region
        %s399 = smul.u32 8, %s14
      $region36: #{_lambda_.10} parent=31 // pred_fallthru
        _
    $region32: #{_lambda_.10} parent=5 // pred_fallthru
      _
    %p400 = scmp.le.s32.totalorder 2, %s9
    // Predicated region
    $region37: #{_lambda_.10} parent=5 // pred_check
      %p401 = pneg %p400
    $region38: #{_lambda_.10} parent=5 // pred_check_branch
      %403 = sbr.rel (%p401) target = $region40
    $region39: #{_lambda_.10} parent=5 // pred_region
      %s404 = ssub.s32 %s9, 2
      // Predicated region
      $region41: #{_lambda_.10} parent=39 // pred_check
        %p405 = pneg %p106
      $region42: #{_lambda_.10} parent=39 // pred_check_branch
        %407 = sbr.rel (%p405) target = $region44
      $region43: #{_lambda_.10} parent=39 // pred_region
        %s408 = smul.u32 8, %s15
        %p409 = scmp.lt.s32.totalorder %s408, 15
        %s410 = scalar_select %p409, %s408, 15
        %s411 = smul.addr %s410, 4
        %s412 = scalar_lea.vmem %s3, %s411
      $region44: #{_lambda_.10} parent=39 // pred_fallthru
        _
    $region40: #{_lambda_.10} parent=5 // pred_fallthru
      _
  $region6: #{_lambda_.10} parent=0 // loop_footer
    %s13 = sadd.s32 1, %s9
  $region7: #{_lambda_.10} parent=0 // loop_footer_branch
    %8 = sbr.rel target = $region3
  $region8: #{_lambda_.10} parent=0 // loop_exit
    _

// kernel: _lambda_.8
$region0: #{_lambda_.8}
  #allocation0 [shape = 'u32[]', space=smem, size = 0x4, offset = 0x4, fixed_abs, tag = 'smem constant byte address 0x4 - core index']
  #allocation1 [shape = 'u32[72,128]{1,0:T(1,128)}', space=vmem, size = 0x9000, scoped, tag = 'internal scratch']
  %s0 = inlined_call_operand.vmem [shape: bf16[2,9,9,128], index: 0, kind: input, shape index: {}]
  %s1 = inlined_call_operand.vmem [shape: bf16[4,128,128], index: 1, kind: input, shape index: {}]
  %s2 = inlined_call_operand.vmem [shape: f32[1,128], index: 2, kind: input, shape index: {}]
  %s3 = inlined_call_operand.vmem [shape: bf16[2,8,8,128], index: 3, kind: output, shape index: {}]
  %s4 = sld [smem:[#allocation0]]
  $region45: #{_lambda_.8} parent=0
    _
  %s6 = ssub.s32 1, %s4
  %s7 = scalar_select 0, %s6, %s4
  loop: start=0, step=1, limit=4
  $region2: #{_lambda_.8} parent=0 // loop_pre_header
    _
  $region3: #{_lambda_.8} parent=0 // loop_header
    %s9 = sphi 0, %s13
    %p10 = scmp.ge.s32.totalorder %s9, 4
    %s19 = sphi 0, %s21
    %s22 = sphi 0, %s19
    %s23 = sphi 0, %s22
    %s39 = sphi 0, %s23
    %s43 = sphi 0, %s43
    %s45 = sphi 0, %s43
    %s46 = sphi 0, %s45
    %s60 = sphi 0, %s46
    %s64 = sphi 0, %s64
    %s66 = sphi 0, %s64
    %s67 = sphi 0, %s66
    %s81 = sphi 0, %s67
    %s87 = sphi 0, %s89
    %s90 = sphi 0, %s87
    %s91 = sphi 0, %s90
    %s107 = sphi 0, %s91
  $region4: #{_lambda_.8} parent=0 // loop_header_branch
    %12 = sbr.rel (%p10) target = $region8
  $region5: #{_lambda_.8} parent=0 // loop_body
    %s14 = ssub.s32 %s9, 1
    %s15 = ssub.s32 %s9, 2
    %s16 = sadd.s32 %s9, 1
    %s17 = ssub.s32 %s9, %s16
    %p18 = scmp.eq.s32.totalorder %s17, 0
    %s20 = sadd.s32 %s19, 1
    %s21 = scalar_select %p18, %s19, %s20
    %p24 = pneg %p18
    %p25 = scmp.eq.s32.totalorder %s9, 1
    %p26 = por %p24, %p25
    %p27 = scmp.ne.s32.totalorder %s19, %s22
    %p28 = scmp.eq.s32.totalorder %s9, 0
    %p29 = por %p27, %p28
    %p30 = scmp.ne.s32.totalorder %s19, %s22
    %p31 = scmp.eq.s32.totalorder %s14, 1
    %p32 = por %p30, %p31
    %p33 = scmp.ne.s32.totalorder %s22, %s23
    %p34 = scmp.eq.s32.totalorder %s14, 0
    %p35 = por %p33, %p34
    %p36 = scmp.ne.s32.totalorder %s22, %s23
    %p37 = scmp.eq.s32.totalorder %s15, 1
    %p38 = por %p36, %p37
    %p40 = scmp.ne.s32.totalorder %s23, %s39
    %p41 = scmp.eq.s32.totalorder %s15, 0
    %p42 = por %p40, %p41
    %s44 = sadd.s32 %s43, 1
    %p47 = scmp.eq.s32.totalorder %s9, 1
    %p48 = scmp.ne.s32.totalorder %s43, %s45
    %p49 = scmp.eq.s32.totalorder %s9, 0
    %p50 = por %p48, %p49
    %p51 = scmp.ne.s32.totalorder %s43, %s45
    %p52 = scmp.eq.s32.totalorder %s14, 1
    %p53 = por %p51, %p52
    %p54 = scmp.ne.s32.totalorder %s45, %s46
    %p55 = scmp.eq.s32.totalorder %s14, 0
    %p56 = por %p54, %p55
    %p57 = scmp.ne.s32.totalorder %s45, %s46
    %p58 = scmp.eq.s32.totalorder %s15, 1
    %p59 = por %p57, %p58
    %p61 = scmp.ne.s32.totalorder %s46, %s60
    %p62 = scmp.eq.s32.totalorder %s15, 0
    %p63 = por %p61, %p62
    %s65 = sadd.s32 %s64, 1
    %p68 = scmp.eq.s32.totalorder %s9, 1
    %p69 = scmp.ne.s32.totalorder %s64, %s66
    %p70 = scmp.eq.s32.totalorder %s9, 0
    %p71 = por %p69, %p70
    %p72 = scmp.ne.s32.totalorder %s64, %s66
    %p73 = scmp.eq.s32.totalorder %s14, 1
    %p74 = por %p72, %p73
    %p75 = scmp.ne.s32.totalorder %s66, %s67
    %p76 = scmp.eq.s32.totalorder %s14, 0
    %p77 = por %p75, %p76
    %p78 = scmp.ne.s32.totalorder %s66, %s67
    %p79 = scmp.eq.s32.totalorder %s15, 1
    %p80 = por %p78, %p79
    %p82 = scmp.ne.s32.totalorder %s67, %s81
    %p83 = scmp.eq.s32.totalorder %s15, 0
    %p84 = por %p82, %p83
    %s85 = ssub.s32 %s9, %s16
    %p86 = scmp.eq.s32.totalorder %s85, 0
    %s88 = sadd.s32 %s87, 1
    %s89 = scalar_select %p86, %s87, %s88
    %p92 = pneg %p86
    %p93 = scmp.eq.s32.totalorder %s9, 1
    %p94 = por %p92, %p93
    %p95 = scmp.ne.s32.totalorder %s87, %s90
    %p96 = scmp.eq.s32.totalorder %s9, 0
    %p97 = por %p95, %p96
    %p98 = scmp.ne.s32.totalorder %s87, %s90
    %p99 = scmp.eq.s32.totalorder %s14, 1
    %p100 = por %p98, %p99
    %p101 = scmp.ne.s32.totalorder %s90, %s91
    %p102 = scmp.eq.s32.totalorder %s14, 0
    %p103 = por %p101, %p102
    %p104 = scmp.ne.s32.totalorder %s90, %s91
    %p105 = scmp.eq.s32.totalorder %s15, 1
    %p106 = por %p104, %p105
    %p108 = scmp.ne.s32.totalorder %s91, %s107
    %p109 = scmp.eq.s32.totalorder %s15, 0
    %p110 = por %p108, %p109
    %p111 = scmp.le.s32.totalorder 1, %s9
    %p112 = scmp.lt.s32.totalorder %s9, 3
    %p113 = pnand %p111, %p112
    %p114 = pneg %p113
    // Predicated region
    $region9: #{_lambda_.8} parent=5 // pred_check
      _
    $region10: #{_lambda_.8} parent=5 // pred_check_branch
      %116 = sbr.rel (%p113) target = $region12
    $region11: #{_lambda_.8} parent=5 // pred_region
      %s117 = ssub.s32 %s9, 1
      // Predicated region
      $region13: #{_lambda_.8} parent=11 // pred_check
        %p118 = pneg %p56
      $region14: #{_lambda_.8} parent=11 // pred_check_branch
        %120 = sbr.rel (%p118) target = $region16
      $region15: #{_lambda_.8} parent=11 // pred_region
        _
      $region16: #{_lambda_.8} parent=11 // pred_fallthru
        _
      // Predicated region
      $region17: #{_lambda_.8} parent=11 // pred_check
        %p121 = pneg %p77
      $region18: #{_lambda_.8} parent=11 // pred_check_branch
        %123 = sbr.rel (%p121) target = $region20
      $region19: #{_lambda_.8} parent=11 // pred_region
        _
      $region20: #{_lambda_.8} parent=11 // pred_fallthru
        _
    $region12: #{_lambda_.8} parent=5 // pred_fallthru
      _
    %p124 = scmp.lt.s32.totalorder %s9, 2
    // Predicated region
    $region21: #{_lambda_.8} parent=5 // pred_check
      %p125 = pneg %p124
    $region22: #{_lambda_.8} parent=5 // pred_check_branch
      %127 = sbr.rel (%p125) target = $region24
    $region23: #{_lambda_.8} parent=5 // pred_region
      // Predicated region
      $region25: #{_lambda_.8} parent=23 // pred_check
        %p128 = pneg %p29
      $region26: #{_lambda_.8} parent=23 // pred_check_branch
        %130 = sbr.rel (%p128) target = $region28
      $region27: #{_lambda_.8} parent=23 // pred_region
        %p131 = scmp.lt.s32.totalorder %s9, 1
        %s132 = scalar_select %p131, %s9, 1
        %s133 = smul.addr %s132, 18
        %s134 = smul.addr %s133, 4
        %s135 = scalar_lea.vmem %s0, %s134
      $region28: #{_lambda_.8} parent=23 // pred_fallthru
        _
    $region24: #{_lambda_.8} parent=5 // pred_fallthru
      _
    %p136 = scmp.le.s32.totalorder 1, %s9
    %p137 = scmp.lt.s32.totalorder %s9, 3
    %p138 = pnand %p136, %p137
    %p139 = pneg %p138
    // Predicated region
    $region29: #{_lambda_.8} parent=5 // pred_check
      _
    $region30: #{_lambda_.8} parent=5 // pred_check_branch
      %141 = sbr.rel (%p138) target = $region32
    $region31: #{_lambda_.8} parent=5 // pred_region
      %s142 = ssub.s32 %s9, 1
      %p143 = scmp.lt.s32.totalorder %s14, 1
      %s144 = scalar_select %p143, %s14, 1
      %s145 = smul.addr %s144, 18
      %s146 = smul.addr %s145, 4
      %s147 = scalar_lea.vmem %s0, %s146
      %p148 = pneg %p35
      %p149 = pneg %p32
      %p150 = pneg %p56
      %p151 = pneg %p53
      %p152 = pneg %p77
      %p153 = pneg %p74
      %p154 = pneg %p103
      %p155 = pneg %p100
      %p156 = scmp.lt.s32.totalorder %s14, 1
      %s157 = scalar_select %p156, %s14, 1
      %s158 = smul.addr %s157, 8
      %s159 = smul.addr %s158, 4
      %s160 = scalar_lea.vmem %s3, %s159
      %p161 = scmp.lt.s32.totalorder %s14, 1
      %s162 = scalar_select %p161, %s14, 1
      %s163 = smul.addr %s162, 18
      %s164 = smul.addr %s163, 4
      %s165 = scalar_lea.vmem %s0, %s164
      %p166 = scmp.lt.s32.totalorder %s14, 1
      %s167 = scalar_select %p166, %s14, 1
      %s168 = smul.addr %s167, 8
      %s169 = smul.addr %s168, 4
      %s170 = scalar_lea.vmem %s3, %s169
      %v171 = vld [vmem:[%s165] sm:$0xf]
      %v172 = vld [vmem:[%s165 + $0x4] sm:$0x1]
      %v173 = vld [vmem:[%s165 + $0x8] sm:$0xf]
      %v174 = vld [vmem:[%s165 + $0xc] sm:$0x1]
      %v175 = vld [vmem:[%s165 + $0x10] sm:$0xf]
      %v176 = vld [vmem:[%s165 + $0x14] sm:$0x1]
      %v177 = vld [vmem:[%s165 + $0x18] sm:$0xf]
      %v178 = vld [vmem:[%s165 + $0x1c] sm:$0x1]
      %v179 = vld [vmem:[%s165 + $0x20] sm:$0xf]
      %v180 = vld [vmem:[%s165 + $0x24] sm:$0x1]
      %v181 = vld [vmem:[%s165 + $0x28] sm:$0xf]
      %v182 = vld [vmem:[%s165 + $0x2c] sm:$0x1]
      %v183 = vld [vmem:[%s165 + $0x30] sm:$0xf]
      %v184 = vld [vmem:[%s165 + $0x34] sm:$0x1]
      %v185 = vld [vmem:[%s165 + $0x38] sm:$0xf]
      %v186 = vld [vmem:[%s165 + $0x3c] sm:$0x1]
      %v187 = vld [vmem:[%s165 + $0x40] sm:$0xf]
      %v188 = vld [vmem:[%s165 + $0x44] sm:$0x1]
      %v189 = vld [vmem:[%s1] sm:$0xf]
      %v190 = vld [vmem:[%s1 + $0x4] sm:$0xf]
      %v191 = vld [vmem:[%s1 + $0x8] sm:$0xf]
      %v192 = vld [vmem:[%s1 + $0xc] sm:$0xf]
      %v193 = vld [vmem:[%s1 + $0x10] sm:$0xf]
      %v194 = vld [vmem:[%s1 + $0x14] sm:$0xf]
      %v195 = vld [vmem:[%s1 + $0x18] sm:$0xf]
      %v196 = vld [vmem:[%s1 + $0x1c] sm:$0xf]
      %v197 = vld [vmem:[%s1 + $0x20] sm:$0xf]
      %v198 = vld [vmem:[%s1 + $0x24] sm:$0xf]
      %v199 = vld [vmem:[%s1 + $0x28] sm:$0xf]
      %v200 = vld [vmem:[%s1 + $0x2c] sm:$0xf]
      %v201 = vld [vmem:[%s1 + $0x30] sm:$0xf]
      %v202 = vld [vmem:[%s1 + $0x34] sm:$0xf]
      %v203 = vld [vmem:[%s1 + $0x38] sm:$0xf]
      %v204 = vld [vmem:[%s1 + $0x3c] sm:$0xf]
      %vm205 = vsmask.f32 3328
      %vm206 = vsmask.f32 7440
      %vm207 = vmor %vm205, %vm206
      %v209 = vshrl.u32 %v171, 16
      %v211 = vrot.slane %v209, 4
      %v212 = vshll.u32 %v171, 16
      %v214 = vrot.slane %v212, 5
      %v215 = vor.u32 %v211, %v214
      %v216 = vrot.slane %v215, 4
      %v218 = vshll.u32 %v172, 16
      %v220 = vrot.slane %v218, 5
      %v221 = vsel %vm207, %v216, %v220
      %v223 = vshrl.u32 %v173, 16
      %v225 = vrot.slane %v223, 4
      %v226 = vshll.u32 %v173, 16
      %v228 = vrot.slane %v226, 5
      %v229 = vor.u32 %v225, %v228
      %v230 = vrot.slane %v229, 4
      %v232 = vshll.u32 %v174, 16
      %v234 = vrot.slane %v232, 5
      %v235 = vsel %vm207, %v230, %v234
      %v237 = vshrl.u32 %v175, 16
      %v239 = vrot.slane %v237, 4
      %v240 = vshll.u32 %v175, 16
      %v242 = vrot.slane %v240, 5
      %v243 = vor.u32 %v239, %v242
      %v244 = vrot.slane %v243, 4
      %v246 = vshll.u32 %v176, 16
      %v248 = vrot.slane %v246, 5
      %v249 = vsel %vm207, %v244, %v248
      %v251 = vshrl.u32 %v177, 16
      %v253 = vrot.slane %v251, 4
      %v254 = vshll.u32 %v177, 16
      %v256 = vrot.slane %v254, 5
      %v257 = vor.u32 %v253, %v256
      %v258 = vrot.slane %v257, 4
      %v260 = vshll.u32 %v178, 16
      %v262 = vrot.slane %v260, 5
      %v263 = vsel %vm207, %v258, %v262
      %v265 = vshrl.u32 %v179, 16
      %v267 = vrot.slane %v265, 4
      %v268 = vshll.u32 %v179, 16
      %v270 = vrot.slane %v268, 5
      %v271 = vor.u32 %v267, %v270
      %v272 = vrot.slane %v271, 4
      %v274 = vshll.u32 %v180, 16
      %v276 = vrot.slane %v274, 5
      %v277 = vsel %vm207, %v272, %v276
      %v279 = vshrl.u32 %v181, 16
      %v281 = vrot.slane %v279, 4
      %v282 = vshll.u32 %v181, 16
      %v284 = vrot.slane %v282, 5
      %v285 = vor.u32 %v281, %v284
      %v286 = vrot.slane %v285, 4
      %v288 = vshll.u32 %v182, 16
      %v290 = vrot.slane %v288, 5
      %v291 = vsel %vm207, %v286, %v290
      %v293 = vshrl.u32 %v183, 16
      %v295 = vrot.slane %v293, 4
      %v296 = vshll.u32 %v183, 16
      %v298 = vrot.slane %v296, 5
      %v299 = vor.u32 %v295, %v298
      %v300 = vrot.slane %v299, 4
      %v302 = vshll.u32 %v184, 16
      %v304 = vrot.slane %v302, 5
      %v305 = vsel %vm207, %v300, %v304
      %v307 = vshrl.u32 %v185, 16
      %v309 = vrot.slane %v307, 4
      %v310 = vshll.u32 %v185, 16
      %v312 = vrot.slane %v310, 5
      %v313 = vor.u32 %v309, %v312
      %v314 = vrot.slane %v313, 4
      %v316 = vshll.u32 %v186, 16
      %v318 = vrot.slane %v316, 5
      %v319 = vsel %vm207, %v314, %v318
      %s320 = scalar_lea.vmem %s1, 64
      %v321 = vld [vmem:[%s320] sm:$0xf]
      %v322 = vld [vmem:[%s320 + $0x4] sm:$0xf]
      %v323 = vld [vmem:[%s320 + $0x8] sm:$0xf]
      %v324 = vld [vmem:[%s320 + $0xc] sm:$0xf]
      %v325 = vld [vmem:[%s320 + $0x10] sm:$0xf]
      %v326 = vld [vmem:[%s320 + $0x14] sm:$0xf]
      %v327 = vld [vmem:[%s320 + $0x18] sm:$0xf]
      %v328 = vld [vmem:[%s320 + $0x1c] sm:$0xf]
      %v329 = vld [vmem:[%s320 + $0x20] sm:$0xf]
      %v330 = vld [vmem:[%s320 + $0x24] sm:$0xf]
      %v331 = vld [vmem:[%s320 + $0x28] sm:$0xf]
      %v332 = vld [vmem:[%s320 + $0x2c] sm:$0xf]
      %v333 = vld [vmem:[%s320 + $0x30] sm:$0xf]
      %v334 = vld [vmem:[%s320 + $0x34] sm:$0xf]
      %v335 = vld [vmem:[%s320 + $0x38] sm:$0xf]
      %v336 = vld [vmem:[%s320 + $0x3c] sm:$0xf]
      %v337 = vunpack.c.l.b16 %v221
      %v338 = vunpack.c.l.b16 %v235
      %v339 = vunpack.c.l.b16 %v249
      %v340 = vunpack.c.l.b16 %v263
      %v341 = vunpack.c.l.b16 %v277
      %v342 = vunpack.c.l.b16 %v291
      %v343 = vunpack.c.l.b16 %v305
      %v344 = vunpack.c.l.b16 %v319
      %v345 = vpack.c.b16 %v338, %v337
      %v346 = vpack.c.b16 %v340, %v339
      %v347 = vpack.c.b16 %v342, %v341
      %v348 = vpack.c.b16 %v344, %v343
      %v369 = vunpack.c.l.b16 %v321
      %v370 = vunpack.c.l.b16 %v322
      %v371 = vunpack.c.l.b16 %v323
      %v372 = vunpack.c.l.b16 %v324
      %v373 = vunpack.c.l.b16 %v325
      %v374 = vunpack.c.l.b16 %v326
      %v375 = vunpack.c.l.b16 %v327
      %v376 = vunpack.c.l.b16 %v328
      %v377 = vunpack.c.l.b16 %v329
      %v378 = vunpack.c.l.b16 %v330
      %v379 = vunpack.c.l.b16 %v331
      %v380 = vunpack.c.l.b16 %v332
      %v381 = vunpack.c.l.b16 %v333
      %v382 = vunpack.c.l.b16 %v334
      %v383 = vunpack.c.l.b16 %v335
      %v384 = vunpack.c.l.b16 %v336
      %v385 = vpack.c.b16 %v370, %v369
      %v386 = vpack.c.b16 %v372, %v371
      %v387 = vpack.c.b16 %v374, %v373
      %v388 = vpack.c.b16 %v376, %v375
      %v389 = vpack.c.b16 %v378, %v377
      %v390 = vpack.c.b16 %v380, %v379
      %v391 = vpack.c.b16 %v382, %v381
      %v392 = vpack.c.b16 %v384, %v383
      %401 = vmatpush.bf16.msra.mxu0 %v392
      %402 = vmatpush.bf16.msra.mxu0 %v391
      %403 = vmatpush.bf16.msra.mxu0 %v390
      %404 = vmatpush.bf16.msra.mxu0 %v389
      %405 = vmatpush.bf16.msra.mxu0 %v388
      %406 = vmatpush.bf16.msra.mxu0 %v387
      %407 = vmatpush.bf16.msra.mxu0 %v386
      %408 = vmatpush.bf16.msra.mxu0 %v385
      %409 = vmatmul.bf16.gmra.mxu0 %v345
      %v410 = vpop.f32.mrf.mxu0
      %v411 = vadd.f32 0.0, %v410
      %v412 = vpop.f32.mrf.mxu0
      %v413 = vadd.f32 0.0, %v412
      %414 = vmatmul.bf16.gmra.mxu0 %v346
      %v415 = vpop.f32.mrf.mxu0
      %v416 = vadd.f32 0.0, %v415
      %v417 = vpop.f32.mrf.mxu0
      %v418 = vadd.f32 0.0, %v417
      %419 = vmatmul.bf16.gmra.mxu0 %v347
      %v420 = vpop.f32.mrf.mxu0
      %v421 = vadd.f32 0.0, %v420
      %v422 = vpop.f32.mrf.mxu0
      %v423 = vadd.f32 0.0, %v422
      %424 = vmatmul.bf16.gmra.mxu0 %v348
      %v425 = vpop.f32.mrf.mxu0
      %v426 = vadd.f32 0.0, %v425
      %v427 = vpop.f32.mrf.mxu0
      %v428 = vadd.f32 0.0, %v427
      %429 = vdwg.mxu0
      %v438 = vunpack.c.l.b16 %v171
      %v439 = vunpack.c.l.b16 %v173
      %v440 = vunpack.c.l.b16 %v175
      %v441 = vunpack.c.l.b16 %v177
      %v442 = vunpack.c.l.b16 %v179
      %v443 = vunpack.c.l.b16 %v181
      %v444 = vunpack.c.l.b16 %v183
      %v445 = vunpack.c.l.b16 %v185
      %v446 = vpack.c.b16 %v439, %v438
      %v447 = vpack.c.b16 %v441, %v440
      %v448 = vpack.c.b16 %v443, %v442
      %v449 = vpack.c.b16 %v445, %v444
      %v470 = vunpack.c.l.b16 %v189
      %v471 = vunpack.c.l.b16 %v190
      %v472 = vunpack.c.l.b16 %v191
      %v473 = vunpack.c.l.b16 %v192
      %v474 = vunpack.c.l.b16 %v193
      %v475 = vunpack.c.l.b16 %v194
      %v476 = vunpack.c.l.b16 %v195
      %v477 = vunpack.c.l.b16 %v196
      %v478 = vunpack.c.l.b16 %v197
      %v479 = vunpack.c.l.b16 %v198
      %v480 = vunpack.c.l.b16 %v199
      %v481 = vunpack.c.l.b16 %v200
      %v482 = vunpack.c.l.b16 %v201
      %v483 = vunpack.c.l.b16 %v202
      %v484 = vunpack.c.l.b16 %v203
      %v485 = vunpack.c.l.b16 %v204
      %v486 = vpack.c.b16 %v471, %v470
      %v487 = vpack.c.b16 %v473, %v472
      %v488 = vpack.c.b16 %v475, %v474
      %v489 = vpack.c.b16 %v477, %v476
      %v490 = vpack.c.b16 %v479, %v478
      %v491 = vpack.c.b16 %v481, %v480
      %v492 = vpack.c.b16 %v483, %v482
      %v493 = vpack.c.b16 %v485, %v484
      %502 = vmatpush.bf16.msra.mxu0 %v493
      %503 = vmatpush.bf16.msra.mxu0 %v492
      %504 = vmatpush.bf16.msra.mxu0 %v491
      %505 = vmatpush.bf16.msra.mxu0 %v490
      %506 = vmatpush.bf16.msra.mxu0 %v489
      %507 = vmatpush.bf16.msra.mxu0 %v488
      %508 = vmatpush.bf16.msra.mxu0 %v487
      %509 = vmatpush.bf16.msra.mxu0 %v486
      %510 = vmatmul.bf16.gmra.mxu0 %v446
      %v511 = vpop.f32.mrf.mxu0
      %v512 = vadd.f32 %v411, %v511
      %v513 = vpop.f32.mrf.mxu0
      %v514 = vadd.f32 %v413, %v513
      %515 = vmatmul.bf16.gmra.mxu0 %v447
      %v516 = vpop.f32.mrf.mxu0
      %v517 = vadd.f32 %v416, %v516
      %v518 = vpop.f32.mrf.mxu0
      %v519 = vadd.f32 %v418, %v518
      %520 = vmatmul.bf16.gmra.mxu0 %v448
      %v521 = vpop.f32.mrf.mxu0
      %v522 = vadd.f32 %v421, %v521
      %v523 = vpop.f32.mrf.mxu0
      %v524 = vadd.f32 %v423, %v523
      %525 = vmatmul.bf16.gmra.mxu0 %v449
      %v526 = vpop.f32.mrf.mxu0
      %v527 = vadd.f32 %v426, %v526
      %v528 = vpop.f32.mrf.mxu0
      %v529 = vadd.f32 %v428, %v528
      %530 = vdwg.mxu0
      %s531 = scalar_lea.vmem %s1, 128
      %v532 = vld [vmem:[%s531] sm:$0xf]
      %v533 = vld [vmem:[%s531 + $0x4] sm:$0xf]
      %v534 = vld [vmem:[%s531 + $0x8] sm:$0xf]
      %v535 = vld [vmem:[%s531 + $0xc] sm:$0xf]
      %v536 = vld [vmem:[%s531 + $0x10] sm:$0xf]
      %v537 = vld [vmem:[%s531 + $0x14] sm:$0xf]
      %v538 = vld [vmem:[%s531 + $0x18] sm:$0xf]
      %v539 = vld [vmem:[%s531 + $0x1c] sm:$0xf]
      %v540 = vld [vmem:[%s531 + $0x20] sm:$0xf]
      %v541 = vld [vmem:[%s531 + $0x24] sm:$0xf]
      %v542 = vld [vmem:[%s531 + $0x28] sm:$0xf]
      %v543 = vld [vmem:[%s531 + $0x2c] sm:$0xf]
      %v544 = vld [vmem:[%s531 + $0x30] sm:$0xf]
      %v545 = vld [vmem:[%s531 + $0x34] sm:$0xf]
      %v546 = vld [vmem:[%s531 + $0x38] sm:$0xf]
      %v547 = vld [vmem:[%s531 + $0x3c] sm:$0xf]
      %v549 = vunpack.c.l.b16 %v187
      %v550 = vpack.c.b16 %v440, %v439
      %v551 = vpack.c.b16 %v442, %v441
      %v552 = vpack.c.b16 %v444, %v443
      %v553 = vpack.c.b16 %v549, %v445
      %v574 = vunpack.c.l.b16 %v532
      %v575 = vunpack.c.l.b16 %v533
      %v576 = vunpack.c.l.b16 %v534
      %v577 = vunpack.c.l.b16 %v535
      %v578 = vunpack.c.l.b16 %v536
      %v579 = vunpack.c.l.b16 %v537
      %v580 = vunpack.c.l.b16 %v538
      %v581 = vunpack.c.l.b16 %v539
      %v582 = vunpack.c.l.b16 %v540
      %v583 = vunpack.c.l.b16 %v541
      %v584 = vunpack.c.l.b16 %v542
      %v585 = vunpack.c.l.b16 %v543
      %v586 = vunpack.c.l.b16 %v544
      %v587 = vunpack.c.l.b16 %v545
      %v588 = vunpack.c.l.b16 %v546
      %v589 = vunpack.c.l.b16 %v547
      %v590 = vpack.c.b16 %v575, %v574
      %v591 = vpack.c.b16 %v577, %v576
      %v592 = vpack.c.b16 %v579, %v578
      %v593 = vpack.c.b16 %v581, %v580
      %v594 = vpack.c.b16 %v583, %v582
      %v595 = vpack.c.b16 %v585, %v584
      %v596 = vpack.c.b16 %v587, %v586
      %v597 = vpack.c.b16 %v589, %v588
      %606 = vmatpush.bf16.msra.mxu0 %v597
      %607 = vmatpush.bf16.msra.mxu0 %v596
      %608 = vmatpush.bf16.msra.mxu0 %v595
      %609 = vmatpush.bf16.msra.mxu0 %v594
      %610 = vmatpush.bf16.msra.mxu0 %v593
      %611 = vmatpush.bf16.msra.mxu0 %v592
      %612 = vmatpush.bf16.msra.mxu0 %v591
      %613 = vmatpush.bf16.msra.mxu0 %v590
      %614 = vmatmul.bf16.gmra.mxu0 %v550
      %v615 = vpop.f32.mrf.mxu0
      %v616 = vadd.f32 0.0, %v615
      %v617 = vpop.f32.mrf.mxu0
      %v618 = vadd.f32 0.0, %v617
      %619 = vmatmul.bf16.gmra.mxu0 %v551
      %v620 = vpop.f32.mrf.mxu0
      %v621 = vadd.f32 0.0, %v620
      %v622 = vpop.f32.mrf.mxu0
      %v623 = vadd.f32 0.0, %v622
      %624 = vmatmul.bf16.gmra.mxu0 %v552
      %v625 = vpop.f32.mrf.mxu0
      %v626 = vadd.f32 0.0, %v625
      %v627 = vpop.f32.mrf.mxu0
      %v628 = vadd.f32 0.0, %v627
      %629 = vmatmul.bf16.gmra.mxu0 %v553
      %v630 = vpop.f32.mrf.mxu0
      %v631 = vadd.f32 0.0, %v630
      %v632 = vpop.f32.mrf.mxu0
      %v633 = vadd.f32 0.0, %v632
      %634 = vdwg.mxu0
      %v635 = vadd.f32 %v512, %v616
      %v636 = vadd.f32 %v514, %v618
      %v637 = vadd.f32 %v517, %v621
      %v638 = vadd.f32 %v519, %v623
      %v639 = vadd.f32 %v522, %v626
      %v640 = vadd.f32 %v524, %v628
      %v641 = vadd.f32 %v527, %v631
      %v642 = vadd.f32 %v529, %v633
      %v644 = vshrl.u32 %v187, 16
      %v646 = vrot.slane %v644, 4
      %v647 = vshll.u32 %v187, 16
      %v649 = vrot.slane %v647, 5
      %v650 = vor.u32 %v646, %v649
      %v651 = vrot.slane %v650, 4
      %v653 = vshll.u32 %v188, 16
      %v655 = vrot.slane %v653, 5
      %v656 = vsel %vm207, %v651, %v655
      %s657 = scalar_lea.vmem %s1, 192
      %v658 = vld [vmem:[%s657] sm:$0xf]
      %v659 = vld [vmem:[%s657 + $0x4] sm:$0xf]
      %v660 = vld [vmem:[%s657 + $0x8] sm:$0xf]
      %v661 = vld [vmem:[%s657 + $0xc] sm:$0xf]
      %v662 = vld [vmem:[%s657 + $0x10] sm:$0xf]
      %v663 = vld [vmem:[%s657 + $0x14] sm:$0xf]
      %v664 = vld [vmem:[%s657 + $0x18] sm:$0xf]
      %v665 = vld [vmem:[%s657 + $0x1c] sm:$0xf]
      %v666 = vld [vmem:[%s657 + $0x20] sm:$0xf]
      %v667 = vld [vmem:[%s657 + $0x24] sm:$0xf]
      %v668 = vld [vmem:[%s657 + $0x28] sm:$0xf]
      %v669 = vld [vmem:[%s657 + $0x2c] sm:$0xf]
      %v670 = vld [vmem:[%s657 + $0x30] sm:$0xf]
      %v671 = vld [vmem:[%s657 + $0x34] sm:$0xf]
      %v672 = vld [vmem:[%s657 + $0x38] sm:$0xf]
      %v673 = vld [vmem:[%s657 + $0x3c] sm:$0xf]
      %v674 = vunpack.c.l.b16 %v656
      %v675 = vpack.c.b16 %v339, %v338
      %v676 = vpack.c.b16 %v341, %v340
      %v677 = vpack.c.b16 %v343, %v342
      %v678 = vpack.c.b16 %v674, %v344
      %v699 = vunpack.c.l.b16 %v658
      %v700 = vunpack.c.l.b16 %v659
      %v701 = vunpack.c.l.b16 %v660
      %v702 = vunpack.c.l.b16 %v661
      %v703 = vunpack.c.l.b16 %v662
      %v704 = vunpack.c.l.b16 %v663
      %v705 = vunpack.c.l.b16 %v664
      %v706 = vunpack.c.l.b16 %v665
      %v707 = vunpack.c.l.b16 %v666
      %v708 = vunpack.c.l.b16 %v667
      %v709 = vunpack.c.l.b16 %v668
      %v710 = vunpack.c.l.b16 %v669
      %v711 = vunpack.c.l.b16 %v670
      %v712 = vunpack.c.l.b16 %v671
      %v713 = vunpack.c.l.b16 %v672
      %v714 = vunpack.c.l.b16 %v673
      %v715 = vpack.c.b16 %v700, %v699
      %v716 = vpack.c.b16 %v702, %v701
      %v717 = vpack.c.b16 %v704, %v703
      %v718 = vpack.c.b16 %v706, %v705
      %v719 = vpack.c.b16 %v708, %v707
      %v720 = vpack.c.b16 %v710, %v709
      %v721 = vpack.c.b16 %v712, %v711
      %v722 = vpack.c.b16 %v714, %v713
      %731 = vmatpush.bf16.msra.mxu0 %v722
      %732 = vmatpush.bf16.msra.mxu0 %v721
      %733 = vmatpush.bf16.msra.mxu0 %v720
      %734 = vmatpush.bf16.msra.mxu0 %v719
      %735 = vmatpush.bf16.msra.mxu0 %v718
      %736 = vmatpush.bf16.msra.mxu0 %v717
      %737 = vmatpush.bf16.msra.mxu0 %v716
      %738 = vmatpush.bf16.msra.mxu0 %v715
      %739 = vmatmul.bf16.gmra.mxu0 %v675
      %v740 = vpop.f32.mrf.mxu0
      %v741 = vadd.f32 0.0, %v740
      %v742 = vpop.f32.mrf.mxu0
      %v743 = vadd.f32 0.0, %v742
      %744 = vmatmul.bf16.gmra.mxu0 %v676
      %v745 = vpop.f32.mrf.mxu0
      %v746 = vadd.f32 0.0, %v745
      %v747 = vpop.f32.mrf.mxu0
      %v748 = vadd.f32 0.0, %v747
      %749 = vmatmul.bf16.gmra.mxu0 %v677
      %v750 = vpop.f32.mrf.mxu0
      %v751 = vadd.f32 0.0, %v750
      %v752 = vpop.f32.mrf.mxu0
      %v753 = vadd.f32 0.0, %v752
      %754 = vmatmul.bf16.gmra.mxu0 %v678
      %v755 = vpop.f32.mrf.mxu0
      %v756 = vadd.f32 0.0, %v755
      %v757 = vpop.f32.mrf.mxu0
      %v758 = vadd.f32 0.0, %v757
      %759 = vdwg.mxu0
      %v760 = vadd.f32 %v635, %v741
      %v761 = vadd.f32 %v636, %v743
      %v762 = vadd.f32 %v637, %v746
      %v763 = vadd.f32 %v638, %v748
      %v764 = vadd.f32 %v639, %v751
      %v765 = vadd.f32 %v640, %v753
      %v766 = vadd.f32 %v641, %v756
      %v767 = vadd.f32 %v642, %v758
      %v768 = vld [vmem:[%s2] sm:$0x1]
      %v770 = vperm.slane %v768, 0
      %v772 = vadd.f32 %v760, %v770
      %v773 = vadd.f32 %v761, %v770
      %v774 = vadd.f32 %v762, %v770
      %v775 = vadd.f32 %v763, %v770
      %v776 = vadd.f32 %v764, %v770
      %v777 = vadd.f32 %v765, %v770
      %v778 = vadd.f32 %v766, %v770
      %v779 = vadd.f32 %v767, %v770
      %v780 = vmin.f32 %v772, 20.0
      %v781 = vmin.f32 %v773, 20.0
      %v782 = vmin.f32 %v774, 20.0
      %v783 = vmin.f32 %v775, 20.0
      %v784 = vmin.f32 %v776, 20.0
      %v785 = vmin.f32 %v777, 20.0
      %v786 = vmin.f32 %v778, 20.0
      %v787 = vmin.f32 %v779, 20.0
      %v788 = vmul.f32 %v780, 1.442695
      %v789 = vpow.pop %v788
      %v790 = vmul.f32 %v781, 1.442695
      %v791 = vpow.pop %v790
      %v792 = vmul.f32 %v782, 1.442695
      %v793 = vpow.pop %v792
      %v794 = vmul.f32 %v783, 1.442695
      %v795 = vpow.pop %v794
      %v796 = vmul.f32 %v784, 1.442695
      %v797 = vpow.pop %v796
      %v798 = vmul.f32 %v785, 1.442695
      %v799 = vpow.pop %v798
      %v800 = vmul.f32 %v786, 1.442695
      %v801 = vpow.pop %v800
      %v802 = vmul.f32 %v787, 1.442695
      %v803 = vpow.pop %v802
      %v804 = vadd.f32 %v789, 2.0
      %v805 = vadd.f32 %v791, 2.0
      %v806 = vadd.f32 %v793, 2.0
      %v807 = vadd.f32 %v795, 2.0
      %v808 = vadd.f32 %v797, 2.0
      %v809 = vadd.f32 %v799, 2.0
      %v810 = vadd.f32 %v801, 2.0
      %v811 = vadd.f32 %v803, 2.0
      %v812 = vmul.f32 %v789, %v804
      %v813 = vmul.f32 %v791, %v805
      %v814 = vmul.f32 %v793, %v806
      %v815 = vmul.f32 %v795, %v807
      %v816 = vmul.f32 %v797, %v808
      %v817 = vmul.f32 %v799, %v809
      %v818 = vmul.f32 %v801, %v810
      %v819 = vmul.f32 %v803, %v811
      %v820 = vmul.f32 %v772, %v812
      %v821 = vmul.f32 %v773, %v813
      %v822 = vmul.f32 %v774, %v814
      %v823 = vmul.f32 %v775, %v815
      %v824 = vmul.f32 %v776, %v816
      %v825 = vmul.f32 %v777, %v817
      %v826 = vmul.f32 %v778, %v818
      %v827 = vmul.f32 %v779, %v819
      %v828 = vadd.f32 %v812, 2.0
      %v829 = vadd.f32 %v813, 2.0
      %v830 = vadd.f32 %v814, 2.0
      %v831 = vadd.f32 %v815, 2.0
      %v832 = vadd.f32 %v816, 2.0
      %v833 = vadd.f32 %v817, 2.0
      %v834 = vadd.f32 %v818, 2.0
      %v835 = vadd.f32 %v819, 2.0
      %v836 = vrcp.pop %v828
      %v837 = vrcp.pop %v829
      %v838 = vrcp.pop %v830
      %v839 = vrcp.pop %v831
      %v840 = vrcp.pop %v832
      %v841 = vrcp.pop %v833
      %v842 = vrcp.pop %v834
      %v843 = vrcp.pop %v835
      %v844 = vmul.f32 %v820, %v836
      %v845 = vmul.f32 %v821, %v837
      %v846 = vmul.f32 %v822, %v838
      %v847 = vmul.f32 %v823, %v839
      %v848 = vmul.f32 %v824, %v840
      %v849 = vmul.f32 %v825, %v841
      %v850 = vmul.f32 %v826, %v842
      %v851 = vmul.f32 %v827, %v843
      %v852 = vpack.c.bf16 %v844, %v844
      %v853 = vpack.c.bf16 %v845, %v845
      %v854 = vpack.c.bf16 %v846, %v846
      %v855 = vpack.c.bf16 %v847, %v847
      %v856 = vpack.c.bf16 %v848, %v848
      %v857 = vpack.c.bf16 %v849, %v849
      %v858 = vpack.c.bf16 %v850, %v850
      %v859 = vpack.c.bf16 %v851, %v851
      %860 = vst [vmem:[%s170] sm:$0xf] %v852
      %861 = vst [vmem:[%s170 + $0x4] sm:$0xf] %v853
      %862 = vst [vmem:[%s170 + $0x8] sm:$0xf] %v854
      %863 = vst [vmem:[%s170 + $0xc] sm:$0xf] %v855
      %864 = vst [vmem:[%s170 + $0x10] sm:$0xf] %v856
      %865 = vst [vmem:[%s170 + $0x14] sm:$0xf] %v857
      %866 = vst [vmem:[%s170 + $0x18] sm:$0xf] %v858
      %867 = vst [vmem:[%s170 + $0x1c] sm:$0xf] %v859
      %p868 = scmp.lt.s32.totalorder %s14, 1
      %s869 = scalar_select %p868, %s14, 1
      %s870 = smul.addr %s869, 8
      %s871 = smul.addr %s870, 4
      %s872 = scalar_lea.vmem %s3, %s871
      // Predicated region
      $region33: #{_lambda_.8} parent=31 // pred_check
        %p873 = pneg %p100
      $region34: #{_lambda_.8} parent=31 // pred_check_branch
        %875 = sbr.rel (%p873) target = $region36
      $region35: #{_lambda_.8} parent=31 // pred_region
        _
      $region36: #{_lambda_.8} parent=31 // pred_fallthru
        _
    $region32: #{_lambda_.8} parent=5 // pred_fallthru
      _
    %p876 = scmp.le.s32.totalorder 2, %s9
    // Predicated region
    $region37: #{_lambda_.8} parent=5 // pred_check
      %p877 = pneg %p876
    $region38: #{_lambda_.8} parent=5 // pred_check_branch
      %879 = sbr.rel (%p877) target = $region40
    $region39: #{_lambda_.8} parent=5 // pred_region
      %s880 = ssub.s32 %s9, 2
      // Predicated region
      $region41: #{_lambda_.8} parent=39 // pred_check
        %p881 = pneg %p106
      $region42: #{_lambda_.8} parent=39 // pred_check_branch
        %883 = sbr.rel (%p881) target = $region44
      $region43: #{_lambda_.8} parent=39 // pred_region
        %p884 = scmp.lt.s32.totalorder %s15, 1
        %s885 = scalar_select %p884, %s15, 1
        %s886 = smul.addr %s885, 8
        %s887 = smul.addr %s886, 4
        %s888 = scalar_lea.vmem %s3, %s887
      $region44: #{_lambda_.8} parent=39 // pred_fallthru
        _
    $region40: #{_lambda_.8} parent=5 // pred_fallthru
      _
  $region6: #{_lambda_.8} parent=0 // loop_footer
    %s13 = sadd.s32 1, %s9
  $region7: #{_lambda_.8} parent=0 // loop_footer_branch
    %8 = sbr.rel target = $region3
  $region8: #{_lambda_.8} parent=0 // loop_exit
    _

// kernel: _lambda_.15
$region0: #{_lambda_.15}
  #allocation0 [shape = 'u32[]', space=smem, size = 0x4, offset = 0x4, fixed_abs, tag = 'smem constant byte address 0x4 - core index']
  #allocation1 [shape = 'u32[72,128]{1,0:T(1,128)}', space=vmem, size = 0x9000, scoped, tag = 'internal scratch']
  %s0 = inlined_call_operand.vmem [shape: bf16[128,128], index: 0, kind: input, shape index: {}]
  %s1 = inlined_call_operand.vmem [shape: bf16[128,128], index: 1, kind: input, shape index: {}]
  %s2 = inlined_call_operand.vmem [shape: bf16[128,128], index: 2, kind: input, shape index: {}]
  %s3 = inlined_call_operand.vmem [shape: bf16[128,128], index: 3, kind: input, shape index: {}]
  %s4 = inlined_call_operand.vmem [shape: f32[1,128], index: 4, kind: input, shape index: {}]
  %s5 = inlined_call_operand.vmem [shape: f32[128,128], index: 5, kind: output, shape index: {}]
  %s6 = sld [smem:[#allocation0]]
  $region53: #{_lambda_.15} parent=0
    _
  %s8 = ssub.s32 1, %s6
  %s9 = scalar_select 0, %s8, %s6
  loop: start=0, step=1, limit=4
  $region2: #{_lambda_.15} parent=0 // loop_pre_header
    _
  $region3: #{_lambda_.15} parent=0 // loop_header
    %s11 = sphi 0, %s15
    %p12 = scmp.ge.s32.totalorder %s11, 4
    %s21 = sphi 0, %s23
    %s24 = sphi 0, %s21
    %s25 = sphi 0, %s24
    %s41 = sphi 0, %s25
    %s47 = sphi 0, %s49
    %s50 = sphi 0, %s47
    %s51 = sphi 0, %s50
    %s67 = sphi 0, %s51
    %s71 = sphi 0, %s71
    %s73 = sphi 0, %s71
    %s74 = sphi 0, %s73
    %s88 = sphi 0, %s74
    %s92 = sphi 0, %s92
    %s94 = sphi 0, %s92
    %s95 = sphi 0, %s94
    %s109 = sphi 0, %s95
    %s113 = sphi 0, %s113
    %s115 = sphi 0, %s113
    %s116 = sphi 0, %s115
    %s130 = sphi 0, %s116
    %s136 = sphi 0, %s138
    %s139 = sphi 0, %s136
    %s140 = sphi 0, %s139
    %s156 = sphi 0, %s140
  $region4: #{_lambda_.15} parent=0 // loop_header_branch
    %14 = sbr.rel (%p12) target = $region8
  $region5: #{_lambda_.15} parent=0 // loop_body
    %s16 = ssub.s32 %s11, 1
    %s17 = ssub.s32 %s11, 2
    %s18 = sadd.s32 %s11, 1
    %s19 = ssub.s32 %s11, %s18
    %p20 = scmp.eq.s32.totalorder %s19, 0
    %s22 = sadd.s32 %s21, 1
    %s23 = scalar_select %p20, %s21, %s22
    %p26 = pneg %p20
    %p27 = scmp.eq.s32.totalorder %s11, 1
    %p28 = por %p26, %p27
    %p29 = scmp.ne.s32.totalorder %s21, %s24
    %p30 = scmp.eq.s32.totalorder %s11, 0
    %p31 = por %p29, %p30
    %p32 = scmp.ne.s32.totalorder %s21, %s24
    %p33 = scmp.eq.s32.totalorder %s16, 1
    %p34 = por %p32, %p33
    %p35 = scmp.ne.s32.totalorder %s24, %s25
    %p36 = scmp.eq.s32.totalorder %s16, 0
    %p37 = por %p35, %p36
    %p38 = scmp.ne.s32.totalorder %s24, %s25
    %p39 = scmp.eq.s32.totalorder %s17, 1
    %p40 = por %p38, %p39
    %p42 = scmp.ne.s32.totalorder %s25, %s41
    %p43 = scmp.eq.s32.totalorder %s17, 0
    %p44 = por %p42, %p43
    %s45 = ssub.s32 %s11, %s18
    %p46 = scmp.eq.s32.totalorder %s45, 0
    %s48 = sadd.s32 %s47, 1
    %s49 = scalar_select %p46, %s47, %s48
    %p52 = pneg %p46
    %p53 = scmp.eq.s32.totalorder %s11, 1
    %p54 = por %p52, %p53
    %p55 = scmp.ne.s32.totalorder %s47, %s50
    %p56 = scmp.eq.s32.totalorder %s11, 0
    %p57 = por %p55, %p56
    %p58 = scmp.ne.s32.totalorder %s47, %s50
    %p59 = scmp.eq.s32.totalorder %s16, 1
    %p60 = por %p58, %p59
    %p61 = scmp.ne.s32.totalorder %s50, %s51
    %p62 = scmp.eq.s32.totalorder %s16, 0
    %p63 = por %p61, %p62
    %p64 = scmp.ne.s32.totalorder %s50, %s51
    %p65 = scmp.eq.s32.totalorder %s17, 1
    %p66 = por %p64, %p65
    %p68 = scmp.ne.s32.totalorder %s51, %s67
    %p69 = scmp.eq.s32.totalorder %s17, 0
    %p70 = por %p68, %p69
    %s72 = sadd.s32 %s71, 1
    %p75 = scmp.eq.s32.totalorder %s11, 1
    %p76 = scmp.ne.s32.totalorder %s71, %s73
    %p77 = scmp.eq.s32.totalorder %s11, 0
    %p78 = por %p76, %p77
    %p79 = scmp.ne.s32.totalorder %s71, %s73
    %p80 = scmp.eq.s32.totalorder %s16, 1
    %p81 = por %p79, %p80
    %p82 = scmp.ne.s32.totalorder %s73, %s74
    %p83 = scmp.eq.s32.totalorder %s16, 0
    %p84 = por %p82, %p83
    %p85 = scmp.ne.s32.totalorder %s73, %s74
    %p86 = scmp.eq.s32.totalorder %s17, 1
    %p87 = por %p85, %p86
    %p89 = scmp.ne.s32.totalorder %s74, %s88
    %p90 = scmp.eq.s32.totalorder %s17, 0
    %p91 = por %p89, %p90
    %s93 = sadd.s32 %s92, 1
    %p96 = scmp.eq.s32.totalorder %s11, 1
    %p97 = scmp.ne.s32.totalorder %s92, %s94
    %p98 = scmp.eq.s32.totalorder %s11, 0
    %p99 = por %p97, %p98
    %p100 = scmp.ne.s32.totalorder %s92, %s94
    %p101 = scmp.eq.s32.totalorder %s16, 1
    %p102 = por %p100, %p101
    %p103 = scmp.ne.s32.totalorder %s94, %s95
    %p104 = scmp.eq.s32.totalorder %s16, 0
    %p105 = por %p103, %p104
    %p106 = scmp.ne.s32.totalorder %s94, %s95
    %p107 = scmp.eq.s32.totalorder %s17, 1
    %p108 = por %p106, %p107
    %p110 = scmp.ne.s32.totalorder %s95, %s109
    %p111 = scmp.eq.s32.totalorder %s17, 0
    %p112 = por %p110, %p111
    %s114 = sadd.s32 %s113, 1
    %p117 = scmp.eq.s32.totalorder %s11, 1
    %p118 = scmp.ne.s32.totalorder %s113, %s115
    %p119 = scmp.eq.s32.totalorder %s11, 0
    %p120 = por %p118, %p119
    %p121 = scmp.ne.s32.totalorder %s113, %s115
    %p122 = scmp.eq.s32.totalorder %s16, 1
    %p123 = por %p121, %p122
    %p124 = scmp.ne.s32.totalorder %s115, %s116
    %p125 = scmp.eq.s32.totalorder %s16, 0
    %p126 = por %p124, %p125
    %p127 = scmp.ne.s32.totalorder %s115, %s116
    %p128 = scmp.eq.s32.totalorder %s17, 1
    %p129 = por %p127, %p128
    %p131 = scmp.ne.s32.totalorder %s116, %s130
    %p132 = scmp.eq.s32.totalorder %s17, 0
    %p133 = por %p131, %p132
    %s134 = ssub.s32 %s11, %s18
    %p135 = scmp.eq.s32.totalorder %s134, 0
    %s137 = sadd.s32 %s136, 1
    %s138 = scalar_select %p135, %s136, %s137
    %p141 = pneg %p135
    %p142 = scmp.eq.s32.totalorder %s11, 1
    %p143 = por %p141, %p142
    %p144 = scmp.ne.s32.totalorder %s136, %s139
    %p145 = scmp.eq.s32.totalorder %s11, 0
    %p146 = por %p144, %p145
    %p147 = scmp.ne.s32.totalorder %s136, %s139
    %p148 = scmp.eq.s32.totalorder %s16, 1
    %p149 = por %p147, %p148
    %p150 = scmp.ne.s32.totalorder %s139, %s140
    %p151 = scmp.eq.s32.totalorder %s16, 0
    %p152 = por %p150, %p151
    %p153 = scmp.ne.s32.totalorder %s139, %s140
    %p154 = scmp.eq.s32.totalorder %s17, 1
    %p155 = por %p153, %p154
    %p157 = scmp.ne.s32.totalorder %s140, %s156
    %p158 = scmp.eq.s32.totalorder %s17, 0
    %p159 = por %p157, %p158
    %p160 = scmp.le.s32.totalorder 1, %s11
    %p161 = scmp.lt.s32.totalorder %s11, 3
    %p162 = pnand %p160, %p161
    %p163 = pneg %p162
    // Predicated region
    $region9: #{_lambda_.15} parent=5 // pred_check
      _
    $region10: #{_lambda_.15} parent=5 // pred_check_branch
      %165 = sbr.rel (%p162) target = $region12
    $region11: #{_lambda_.15} parent=5 // pred_region
      %s166 = ssub.s32 %s11, 1
      // Predicated region
      $region13: #{_lambda_.15} parent=11 // pred_check
        %p167 = pneg %p84
      $region14: #{_lambda_.15} parent=11 // pred_check_branch
        %169 = sbr.rel (%p167) target = $region16
      $region15: #{_lambda_.15} parent=11 // pred_region
        _
      $region16: #{_lambda_.15} parent=11 // pred_fallthru
        _
      // Predicated region
      $region17: #{_lambda_.15} parent=11 // pred_check
        %p170 = pneg %p105
      $region18: #{_lambda_.15} parent=11 // pred_check_branch
        %172 = sbr.rel (%p170) target = $region20
      $region19: #{_lambda_.15} parent=11 // pred_region
        _
      $region20: #{_lambda_.15} parent=11 // pred_fallthru
        _
      // Predicated region
      $region21: #{_lambda_.15} parent=11 // pred_check
        %p173 = pneg %p126
      $region22: #{_lambda_.15} parent=11 // pred_check_branch
        %175 = sbr.rel (%p173) target = $region24
      $region23: #{_lambda_.15} parent=11 // pred_region
        _
      $region24: #{_lambda_.15} parent=11 // pred_fallthru
        _
    $region12: #{_lambda_.15} parent=5 // pred_fallthru
      _
    %p176 = scmp.lt.s32.totalorder %s11, 2
    // Predicated region
    $region25: #{_lambda_.15} parent=5 // pred_check
      %p177 = pneg %p176
    $region26: #{_lambda_.15} parent=5 // pred_check_branch
      %179 = sbr.rel (%p177) target = $region28
    $region27: #{_lambda_.15} parent=5 // pred_region
      // Predicated region
      $region29: #{_lambda_.15} parent=27 // pred_check
        %p180 = pneg %p31
      $region30: #{_lambda_.15} parent=27 // pred_check_branch
        %182 = sbr.rel (%p180) target = $region32
      $region31: #{_lambda_.15} parent=27 // pred_region
        %s183 = smul.u32 8, %s11
        %p184 = scmp.lt.s32.totalorder %s183, 15
        %s185 = scalar_select %p184, %s183, 15
        %s186 = smul.addr %s185, 4
        %s187 = scalar_lea.vmem %s0, %s186
        %s188 = smul.u32 8, %s11
      $region32: #{_lambda_.15} parent=27 // pred_fallthru
        _
      // Predicated region
      $region33: #{_lambda_.15} parent=27 // pred_check
        %p189 = pneg %p57
      $region34: #{_lambda_.15} parent=27 // pred_check_branch
        %191 = sbr.rel (%p189) target = $region36
      $region35: #{_lambda_.15} parent=27 // pred_region
        %s192 = smul.u32 8, %s11
        %p193 = scmp.lt.s32.totalorder %s192, 15
        %s194 = scalar_select %p193, %s192, 15
        %s195 = smul.addr %s194, 4
        %s196 = scalar_lea.vmem %s1, %s195
        %s197 = smul.u32 8, %s11
      $region36: #{_lambda_.15} parent=27 // pred_fallthru
        _
    $region28: #{_lambda_.15} parent=5 // pred_fallthru
      _
    %p198 = scmp.le.s32.totalorder 1, %s11
    %p199 = scmp.lt.s32.totalorder %s11, 3
    %p200 = pnand %p198, %p199
    %p201 = pneg %p200
    // Predicated region
    $region37: #{_lambda_.15} parent=5 // pred_check
      _
    $region38: #{_lambda_.15} parent=5 // pred_check_branch
      %203 = sbr.rel (%p200) target = $region40
    $region39: #{_lambda_.15} parent=5 // pred_region
      %s204 = ssub.s32 %s11, 1
      %s205 = smul.u32 8, %s16
      %p206 = scmp.lt.s32.totalorder %s205, 15
      %s207 = scalar_select %p206, %s205, 15
      %s208 = smul.addr %s207, 4
      %s209 = scalar_lea.vmem %s0, %s208
      %p210 = pneg %p37
      %p211 = pneg %p34
      %s212 = smul.u32 8, %s16
      %p213 = scmp.lt.s32.totalorder %s212, 15
      %s214 = scalar_select %p213, %s212, 15
      %s215 = smul.addr %s214, 4
      %s216 = scalar_lea.vmem %s1, %s215
      %p217 = pneg %p63
      %p218 = pneg %p60
      %p219 = pneg %p84
      %p220 = pneg %p81
      %p221 = pneg %p105
      %p222 = pneg %p102
      %p223 = pneg %p126
      %p224 = pneg %p123
      %p225 = pneg %p152
      %p226 = pneg %p149
      %s227 = smul.u32 8, %s16
      %p228 = scmp.lt.s32.totalorder %s227, 15
      %s229 = scalar_select %p228, %s227, 15
      %s230 = smul.addr %s229, 8
      %s231 = scalar_lea.vmem %s5, %s230
      %s232 = smul.u32 8, %s16
      %p233 = scmp.lt.s32.totalorder %s232, 15
      %s234 = scalar_select %p233, %s232, 15
      %s235 = smul.addr %s234, 4
      %s236 = scalar_lea.vmem %s0, %s235
      %s237 = smul.u32 8, %s16
      %s238 = smul.u32 8, %s16
      %p239 = scmp.lt.s32.totalorder %s238, 15
      %s240 = scalar_select %p239, %s238, 15
      %s241 = smul.addr %s240, 4
      %s242 = scalar_lea.vmem %s1, %s241
      %s243 = smul.u32 8, %s16
      %s244 = smul.u32 8, %s16
      %p245 = scmp.lt.s32.totalorder %s244, 15
      %s246 = scalar_select %p245, %s244, 15
      %s247 = smul.addr %s246, 8
      %s248 = scalar_lea.vmem %s5, %s247
      %s249 = smul.u32 8, %s16
      %v250 = vld [vmem:[%s236] sm:$0xf]
      %v251 = vld [vmem:[%s236 + $0x4] sm:$0xf]
      %v252 = vld [vmem:[%s236 + $0x8] sm:$0xf]
      %v253 = vld [vmem:[%s236 + $0xc] sm:$0xf]
      %v254 = vld [vmem:[%s236 + $0x10] sm:$0xf]
      %v255 = vld [vmem:[%s236 + $0x14] sm:$0xf]
      %v256 = vld [vmem:[%s236 + $0x18] sm:$0xf]
      %v257 = vld [vmem:[%s236 + $0x1c] sm:$0xf]
      %v258 = vld [vmem:[%s2] sm:$0xf]
      %v259 = vld [vmem:[%s2 + $0x4] sm:$0xf]
      %v260 = vld [vmem:[%s2 + $0x8] sm:$0xf]
      %v261 = vld [vmem:[%s2 + $0xc] sm:$0xf]
      %v262 = vld [vmem:[%s2 + $0x10] sm:$0xf]
      %v263 = vld [vmem:[%s2 + $0x14] sm:$0xf]
      %v264 = vld [vmem:[%s2 + $0x18] sm:$0xf]
      %v265 = vld [vmem:[%s2 + $0x1c] sm:$0xf]
      %v266 = vld [vmem:[%s2 + $0x20] sm:$0xf]
      %v267 = vld [vmem:[%s2 + $0x24] sm:$0xf]
      %v268 = vld [vmem:[%s2 + $0x28] sm:$0xf]
      %v269 = vld [vmem:[%s2 + $0x2c] sm:$0xf]
      %v270 = vld [vmem:[%s2 + $0x30] sm:$0xf]
      %v271 = vld [vmem:[%s2 + $0x34] sm:$0xf]
      %v272 = vld [vmem:[%s2 + $0x38] sm:$0xf]
      %v273 = vld [vmem:[%s2 + $0x3c] sm:$0xf]
      %v274 = vld [vmem:[%s242] sm:$0xf]
      %v275 = vld [vmem:[%s242 + $0x4] sm:$0xf]
      %v276 = vld [vmem:[%s242 + $0x8] sm:$0xf]
      %v277 = vld [vmem:[%s242 + $0xc] sm:$0xf]
      %v278 = vld [vmem:[%s242 + $0x10] sm:$0xf]
      %v279 = vld [vmem:[%s242 + $0x14] sm:$0xf]
      %v280 = vld [vmem:[%s242 + $0x18] sm:$0xf]
      %v281 = vld [vmem:[%s242 + $0x1c] sm:$0xf]
      %v282 = vld [vmem:[%s3] sm:$0xf]
      %v283 = vld [vmem:[%s3 + $0x4] sm:$0xf]
      %v284 = vld [vmem:[%s3 + $0x8] sm:$0xf]
      %v285 = vld [vmem:[%s3 + $0xc] sm:$0xf]
      %v286 = vld [vmem:[%s3 + $0x10] sm:$0xf]
      %v287 = vld [vmem:[%s3 + $0x14] sm:$0xf]
      %v288 = vld [vmem:[%s3 + $0x18] sm:$0xf]
      %v289 = vld [vmem:[%s3 + $0x1c] sm:$0xf]
      %v290 = vld [vmem:[%s3 + $0x20] sm:$0xf]
      %v291 = vld [vmem:[%s3 + $0x24] sm:$0xf]
      %v292 = vld [vmem:[%s3 + $0x28] sm:$0xf]
      %v293 = vld [vmem:[%s3 + $0x2c] sm:$0xf]
      %v294 = vld [vmem:[%s3 + $0x30] sm:$0xf]
      %v295 = vld [vmem:[%s3 + $0x34] sm:$0xf]
      %v296 = vld [vmem:[%s3 + $0x38] sm:$0xf]
      %v297 = vld [vmem:[%s3 + $0x3c] sm:$0xf]
      %v306 = vunpack.c.l.b16 %v274
      %v307 = vunpack.c.l.b16 %v275
      %v308 = vunpack.c.l.b16 %v276
      %v309 = vunpack.c.l.b16 %v277
      %v310 = vunpack.c.l.b16 %v278
      %v311 = vunpack.c.l.b16 %v279
      %v312 = vunpack.c.l.b16 %v280
      %v313 = vunpack.c.l.b16 %v281
      %v314 = vpack.c.b16 %v307, %v306
      %v315 = vpack.c.b16 %v309, %v308
      %v316 = vpack.c.b16 %v311, %v310
      %v317 = vpack.c.b16 %v313, %v312
      %v338 = vunpack.c.l.b16 %v282
      %v339 = vunpack.c.l.b16 %v283
      %v340 = vunpack.c.l.b16 %v284
      %v341 = vunpack.c.l.b16 %v285
      %v342 = vunpack.c.l.b16 %v286
      %v343 = vunpack.c.l.b16 %v287
      %v344 = vunpack.c.l.b16 %v288
      %v345 = vunpack.c.l.b16 %v289
      %v346 = vunpack.c.l.b16 %v290
      %v347 = vunpack.c.l.b16 %v291
      %v348 = vunpack.c.l.b16 %v292
      %v349 = vunpack.c.l.b16 %v293
      %v350 = vunpack.c.l.b16 %v294
      %v351 = vunpack.c.l.b16 %v295
      %v352 = vunpack.c.l.b16 %v296
      %v353 = vunpack.c.l.b16 %v297
      %v354 = vpack.c.b16 %v339, %v338
      %v355 = vpack.c.b16 %v341, %v340
      %v356 = vpack.c.b16 %v343, %v342
      %v357 = vpack.c.b16 %v345, %v344
      %v358 = vpack.c.b16 %v347, %v346
      %v359 = vpack.c.b16 %v349, %v348
      %v360 = vpack.c.b16 %v351, %v350
      %v361 = vpack.c.b16 %v353, %v352
      %370 = vmatpush.bf16.msra.mxu0 %v361
      %371 = vmatpush.bf16.msra.mxu0 %v360
      %372 = vmatpush.bf16.msra.mxu0 %v359
      %373 = vmatpush.bf16.msra.mxu0 %v358
      %374 = vmatpush.bf16.msra.mxu0 %v357
      %375 = vmatpush.bf16.msra.mxu0 %v356
      %376 = vmatpush.bf16.msra.mxu0 %v355
      %377 = vmatpush.bf16.msra.mxu0 %v354
      %378 = vmatmul.bf16.gmra.mxu0 %v314
      %v379 = vpop.f32.mrf.mxu0
      %v380 = vadd.f32 0.0, %v379
      %v381 = vpop.f32.mrf.mxu0
      %v382 = vadd.f32 0.0, %v381
      %383 = vmatmul.bf16.gmra.mxu0 %v315
      %v384 = vpop.f32.mrf.mxu0
      %v385 = vadd.f32 0.0, %v384
      %v386 = vpop.f32.mrf.mxu0
      %v387 = vadd.f32 0.0, %v386
      %388 = vmatmul.bf16.gmra.mxu0 %v316
      %v389 = vpop.f32.mrf.mxu0
      %v390 = vadd.f32 0.0, %v389
      %v391 = vpop.f32.mrf.mxu0
      %v392 = vadd.f32 0.0, %v391
      %393 = vmatmul.bf16.gmra.mxu0 %v317
      %v394 = vpop.f32.mrf.mxu0
      %v395 = vadd.f32 0.0, %v394
      %v396 = vpop.f32.mrf.mxu0
      %v397 = vadd.f32 0.0, %v396
      %398 = vdwg.mxu0
      %v407 = vunpack.c.l.b16 %v250
      %v408 = vunpack.c.l.b16 %v251
      %v409 = vunpack.c.l.b16 %v252
      %v410 = vunpack.c.l.b16 %v253
      %v411 = vunpack.c.l.b16 %v254
      %v412 = vunpack.c.l.b16 %v255
      %v413 = vunpack.c.l.b16 %v256
      %v414 = vunpack.c.l.b16 %v257
      %v415 = vpack.c.b16 %v408, %v407
      %v416 = vpack.c.b16 %v410, %v409
      %v417 = vpack.c.b16 %v412, %v411
      %v418 = vpack.c.b16 %v414, %v413
      %v439 = vunpack.c.l.b16 %v258
      %v440 = vunpack.c.l.b16 %v259
      %v441 = vunpack.c.l.b16 %v260
      %v442 = vunpack.c.l.b16 %v261
      %v443 = vunpack.c.l.b16 %v262
      %v444 = vunpack.c.l.b16 %v263
      %v445 = vunpack.c.l.b16 %v264
      %v446 = vunpack.c.l.b16 %v265
      %v447 = vunpack.c.l.b16 %v266
      %v448 = vunpack.c.l.b16 %v267
      %v449 = vunpack.c.l.b16 %v268
      %v450 = vunpack.c.l.b16 %v269
      %v451 = vunpack.c.l.b16 %v270
      %v452 = vunpack.c.l.b16 %v271
      %v453 = vunpack.c.l.b16 %v272
      %v454 = vunpack.c.l.b16 %v273
      %v455 = vpack.c.b16 %v440, %v439
      %v456 = vpack.c.b16 %v442, %v441
      %v457 = vpack.c.b16 %v444, %v443
      %v458 = vpack.c.b16 %v446, %v445
      %v459 = vpack.c.b16 %v448, %v447
      %v460 = vpack.c.b16 %v450, %v449
      %v461 = vpack.c.b16 %v452, %v451
      %v462 = vpack.c.b16 %v454, %v453
      %471 = vmatpush.bf16.msra.mxu0 %v462
      %472 = vmatpush.bf16.msra.mxu0 %v461
      %473 = vmatpush.bf16.msra.mxu0 %v460
      %474 = vmatpush.bf16.msra.mxu0 %v459
      %475 = vmatpush.bf16.msra.mxu0 %v458
      %476 = vmatpush.bf16.msra.mxu0 %v457
      %477 = vmatpush.bf16.msra.mxu0 %v456
      %478 = vmatpush.bf16.msra.mxu0 %v455
      %479 = vmatmul.bf16.gmra.mxu0 %v415
      %v480 = vpop.f32.mrf.mxu0
      %v481 = vadd.f32 %v380, %v480
      %v482 = vpop.f32.mrf.mxu0
      %v483 = vadd.f32 %v382, %v482
      %484 = vmatmul.bf16.gmra.mxu0 %v416
      %v485 = vpop.f32.mrf.mxu0
      %v486 = vadd.f32 %v385, %v485
      %v487 = vpop.f32.mrf.mxu0
      %v488 = vadd.f32 %v387, %v487
      %489 = vmatmul.bf16.gmra.mxu0 %v417
      %v490 = vpop.f32.mrf.mxu0
      %v491 = vadd.f32 %v390, %v490
      %v492 = vpop.f32.mrf.mxu0
      %v493 = vadd.f32 %v392, %v492
      %494 = vmatmul.bf16.gmra.mxu0 %v418
      %v495 = vpop.f32.mrf.mxu0
      %v496 = vadd.f32 %v395, %v495
      %v497 = vpop.f32.mrf.mxu0
      %v498 = vadd.f32 %v397, %v497
      %499 = vdwg.mxu0
      %v500 = vld [vmem:[%s4] sm:$0x1]
      %v502 = vperm.slane %v500, 0
      %v504 = vadd.f32 %v481, %v502
      %v505 = vadd.f32 %v483, %v502
      %v506 = vadd.f32 %v486, %v502
      %v507 = vadd.f32 %v488, %v502
      %v508 = vadd.f32 %v491, %v502
      %v509 = vadd.f32 %v493, %v502
      %v510 = vadd.f32 %v496, %v502
      %v511 = vadd.f32 %v498, %v502
      %v512 = vmin.f32 %v504, 20.0
      %v513 = vmin.f32 %v505, 20.0
      %v514 = vmin.f32 %v506, 20.0
      %v515 = vmin.f32 %v507, 20.0
      %v516 = vmin.f32 %v508, 20.0
      %v517 = vmin.f32 %v509, 20.0
      %v518 = vmin.f32 %v510, 20.0
      %v519 = vmin.f32 %v511, 20.0
      %v520 = vmul.f32 %v512, 1.442695
      %v521 = vpow.pop %v520
      %v522 = vmul.f32 %v513, 1.442695
      %v523 = vpow.pop %v522
      %v524 = vmul.f32 %v514, 1.442695
      %v525 = vpow.pop %v524
      %v526 = vmul.f32 %v515, 1.442695
      %v527 = vpow.pop %v526
      %v528 = vmul.f32 %v516, 1.442695
      %v529 = vpow.pop %v528
      %v530 = vmul.f32 %v517, 1.442695
      %v531 = vpow.pop %v530
      %v532 = vmul.f32 %v518, 1.442695
      %v533 = vpow.pop %v532
      %v534 = vmul.f32 %v519, 1.442695
      %v535 = vpow.pop %v534
      %v536 = vadd.f32 %v521, 2.0
      %v537 = vadd.f32 %v523, 2.0
      %v538 = vadd.f32 %v525, 2.0
      %v539 = vadd.f32 %v527, 2.0
      %v540 = vadd.f32 %v529, 2.0
      %v541 = vadd.f32 %v531, 2.0
      %v542 = vadd.f32 %v533, 2.0
      %v543 = vadd.f32 %v535, 2.0
      %v544 = vmul.f32 %v521, %v536
      %v545 = vmul.f32 %v523, %v537
      %v546 = vmul.f32 %v525, %v538
      %v547 = vmul.f32 %v527, %v539
      %v548 = vmul.f32 %v529, %v540
      %v549 = vmul.f32 %v531, %v541
      %v550 = vmul.f32 %v533, %v542
      %v551 = vmul.f32 %v535, %v543
      %v552 = vmul.f32 %v504, %v544
      %v553 = vmul.f32 %v505, %v545
      %v554 = vmul.f32 %v506, %v546
      %v555 = vmul.f32 %v507, %v547
      %v556 = vmul.f32 %v508, %v548
      %v557 = vmul.f32 %v509, %v549
      %v558 = vmul.f32 %v510, %v550
      %v559 = vmul.f32 %v511, %v551
      %v560 = vadd.f32 %v544, 2.0
      %v561 = vadd.f32 %v545, 2.0
      %v562 = vadd.f32 %v546, 2.0
      %v563 = vadd.f32 %v547, 2.0
      %v564 = vadd.f32 %v548, 2.0
      %v565 = vadd.f32 %v549, 2.0
      %v566 = vadd.f32 %v550, 2.0
      %v567 = vadd.f32 %v551, 2.0
      %v568 = vrcp.pop %v560
      %v569 = vrcp.pop %v561
      %v570 = vrcp.pop %v562
      %v571 = vrcp.pop %v563
      %v572 = vrcp.pop %v564
      %v573 = vrcp.pop %v565
      %v574 = vrcp.pop %v566
      %v575 = vrcp.pop %v567
      %v576 = vmul.f32 %v552, %v568
      %v577 = vmul.f32 %v553, %v569
      %v578 = vmul.f32 %v554, %v570
      %v579 = vmul.f32 %v555, %v571
      %v580 = vmul.f32 %v556, %v572
      %v581 = vmul.f32 %v557, %v573
      %v582 = vmul.f32 %v558, %v574
      %v583 = vmul.f32 %v559, %v575
      %584 = vst [vmem:[%s248] sm:$0xff] %v576
      %585 = vst [vmem:[%s248 + $0x8] sm:$0xff] %v577
      %586 = vst [vmem:[%s248 + $0x10] sm:$0xff] %v578
      %587 = vst [vmem:[%s248 + $0x18] sm:$0xff] %v579
      %588 = vst [vmem:[%s248 + $0x20] sm:$0xff] %v580
      %589 = vst [vmem:[%s248 + $0x28] sm:$0xff] %v581
      %590 = vst [vmem:[%s248 + $0x30] sm:$0xff] %v582
      %591 = vst [vmem:[%s248 + $0x38] sm:$0xff] %v583
      %s592 = smul.u32 8, %s16
      %p593 = scmp.lt.s32.totalorder %s592, 15
      %s594 = scalar_select %p593, %s592, 15
      %s595 = smul.addr %s594, 8
      %s596 = scalar_lea.vmem %s5, %s595
      // Predicated region
      $region41: #{_lambda_.15} parent=39 // pred_check
        %p597 = pneg %p149
      $region42: #{_lambda_.15} parent=39 // pred_check_branch
        %599 = sbr.rel (%p597) target = $region44
      $region43: #{_lambda_.15} parent=39 // pred_region
        %s600 = smul.u32 8, %s16
      $region44: #{_lambda_.15} parent=39 // pred_fallthru
        _
    $region40: #{_lambda_.15} parent=5 // pred_fallthru
      _
    %p601 = scmp.le.s32.totalorder 2, %s11
    // Predicated region
    $region45: #{_lambda_.15} parent=5 // pred_check
      %p602 = pneg %p601
    $region46: #{_lambda_.15} parent=5 // pred_check_branch
      %604 = sbr.rel (%p602) target = $region48
    $region47: #{_lambda_.15} parent=5 // pred_region
      %s605 = ssub.s32 %s11, 2
      // Predicated region
      $region49: #{_lambda_.15} parent=47 // pred_check
        %p606 = pneg %p155
      $region50: #{_lambda_.15} parent=47 // pred_check_branch
        %608 = sbr.rel (%p606) target = $region52
      $region51: #{_lambda_.15} parent=47 // pred_region
        %s609 = smul.u32 8, %s17
        %p610 = scmp.lt.s32.totalorder %s609, 15
        %s611 = scalar_select %p610, %s609, 15
        %s612 = smul.addr %s611, 8
        %s613 = scalar_lea.vmem %s5, %s612
      $region52: #{_lambda_.15} parent=47 // pred_fallthru
        _
    $region48: #{_lambda_.15} parent=5 // pred_fallthru
      _
  $region6: #{_lambda_.15} parent=0 // loop_footer
    %s15 = sadd.s32 1, %s11
  $region7: #{_lambda_.15} parent=0 // loop_footer_branch
    %10 = sbr.rel target = $region3
  $region8: #{_lambda_.15} parent=0 // loop_exit
    _

// kernel: _lambda_.11
$region0: #{_lambda_.11}
  #allocation0 [shape = 'u32[]', space=smem, size = 0x4, offset = 0x4, fixed_abs, tag = 'smem constant byte address 0x4 - core index']
  #allocation1 [shape = 'u32[72,128]{1,0:T(1,128)}', space=vmem, size = 0x9000, scoped, tag = 'internal scratch']
  %s0 = inlined_call_operand.vmem [shape: bf16[2,10,10,128], index: 0, kind: input, shape index: {}]
  %s1 = inlined_call_operand.vmem [shape: bf16[9,128,128], index: 1, kind: input, shape index: {}]
  %s2 = inlined_call_operand.vmem [shape: f32[1,128], index: 2, kind: input, shape index: {}]
  %s3 = inlined_call_operand.vmem [shape: bf16[2,8,8,128], index: 3, kind: input, shape index: {}]
  %s4 = inlined_call_operand.vmem [shape: bf16[2,8,8,128], index: 4, kind: output, shape index: {}]
  %s5 = sld [smem:[#allocation0]]
  $region49: #{_lambda_.11} parent=0
    _
  %s7 = ssub.s32 1, %s5
  %s8 = scalar_select 0, %s7, %s5
  loop: start=0, step=1, limit=4
  $region2: #{_lambda_.11} parent=0 // loop_pre_header
    _
  $region3: #{_lambda_.11} parent=0 // loop_header
    %s10 = sphi 0, %s14
    %p11 = scmp.ge.s32.totalorder %s10, 4
    %s20 = sphi 0, %s22
    %s23 = sphi 0, %s20
    %s24 = sphi 0, %s23
    %s40 = sphi 0, %s24
    %s44 = sphi 0, %s44
    %s46 = sphi 0, %s44
    %s47 = sphi 0, %s46
    %s61 = sphi 0, %s47
    %s65 = sphi 0, %s65
    %s67 = sphi 0, %s65
    %s68 = sphi 0, %s67
    %s82 = sphi 0, %s68
    %s88 = sphi 0, %s90
    %s91 = sphi 0, %s88
    %s92 = sphi 0, %s91
    %s108 = sphi 0, %s92
    %s114 = sphi 0, %s116
    %s117 = sphi 0, %s114
    %s118 = sphi 0, %s117
    %s134 = sphi 0, %s118
  $region4: #{_lambda_.11} parent=0 // loop_header_branch
    %13 = sbr.rel (%p11) target = $region8
  $region5: #{_lambda_.11} parent=0 // loop_body
    %s15 = ssub.s32 %s10, 1
    %s16 = ssub.s32 %s10, 2
    %s17 = sadd.s32 %s10, 1
    %s18 = ssub.s32 %s10, %s17
    %p19 = scmp.eq.s32.totalorder %s18, 0
    %s21 = sadd.s32 %s20, 1
    %s22 = scalar_select %p19, %s20, %s21
    %p25 = pneg %p19
    %p26 = scmp.eq.s32.totalorder %s10, 1
    %p27 = por %p25, %p26
    %p28 = scmp.ne.s32.totalorder %s20, %s23
    %p29 = scmp.eq.s32.totalorder %s10, 0
    %p30 = por %p28, %p29
    %p31 = scmp.ne.s32.totalorder %s20, %s23
    %p32 = scmp.eq.s32.totalorder %s15, 1
    %p33 = por %p31, %p32
    %p34 = scmp.ne.s32.totalorder %s23, %s24
    %p35 = scmp.eq.s32.totalorder %s15, 0
    %p36 = por %p34, %p35
    %p37 = scmp.ne.s32.totalorder %s23, %s24
    %p38 = scmp.eq.s32.totalorder %s16, 1
    %p39 = por %p37, %p38
    %p41 = scmp.ne.s32.totalorder %s24, %s40
    %p42 = scmp.eq.s32.totalorder %s16, 0
    %p43 = por %p41, %p42
    %s45 = sadd.s32 %s44, 1
    %p48 = scmp.eq.s32.totalorder %s10, 1
    %p49 = scmp.ne.s32.totalorder %s44, %s46
    %p50 = scmp.eq.s32.totalorder %s10, 0
    %p51 = por %p49, %p50
    %p52 = scmp.ne.s32.totalorder %s44, %s46
    %p53 = scmp.eq.s32.totalorder %s15, 1
    %p54 = por %p52, %p53
    %p55 = scmp.ne.s32.totalorder %s46, %s47
    %p56 = scmp.eq.s32.totalorder %s15, 0
    %p57 = por %p55, %p56
    %p58 = scmp.ne.s32.totalorder %s46, %s47
    %p59 = scmp.eq.s32.totalorder %s16, 1
    %p60 = por %p58, %p59
    %p62 = scmp.ne.s32.totalorder %s47, %s61
    %p63 = scmp.eq.s32.totalorder %s16, 0
    %p64 = por %p62, %p63
    %s66 = sadd.s32 %s65, 1
    %p69 = scmp.eq.s32.totalorder %s10, 1
    %p70 = scmp.ne.s32.totalorder %s65, %s67
    %p71 = scmp.eq.s32.totalorder %s10, 0
    %p72 = por %p70, %p71
    %p73 = scmp.ne.s32.totalorder %s65, %s67
    %p74 = scmp.eq.s32.totalorder %s15, 1
    %p75 = por %p73, %p74
    %p76 = scmp.ne.s32.totalorder %s67, %s68
    %p77 = scmp.eq.s32.totalorder %s15, 0
    %p78 = por %p76, %p77
    %p79 = scmp.ne.s32.totalorder %s67, %s68
    %p80 = scmp.eq.s32.totalorder %s16, 1
    %p81 = por %p79, %p80
    %p83 = scmp.ne.s32.totalorder %s68, %s82
    %p84 = scmp.eq.s32.totalorder %s16, 0
    %p85 = por %p83, %p84
    %s86 = ssub.s32 %s10, %s17
    %p87 = scmp.eq.s32.totalorder %s86, 0
    %s89 = sadd.s32 %s88, 1
    %s90 = scalar_select %p87, %s88, %s89
    %p93 = pneg %p87
    %p94 = scmp.eq.s32.totalorder %s10, 1
    %p95 = por %p93, %p94
    %p96 = scmp.ne.s32.totalorder %s88, %s91
    %p97 = scmp.eq.s32.totalorder %s10, 0
    %p98 = por %p96, %p97
    %p99 = scmp.ne.s32.totalorder %s88, %s91
    %p100 = scmp.eq.s32.totalorder %s15, 1
    %p101 = por %p99, %p100
    %p102 = scmp.ne.s32.totalorder %s91, %s92
    %p103 = scmp.eq.s32.totalorder %s15, 0
    %p104 = por %p102, %p103
    %p105 = scmp.ne.s32.totalorder %s91, %s92
    %p106 = scmp.eq.s32.totalorder %s16, 1
    %p107 = por %p105, %p106
    %p109 = scmp.ne.s32.totalorder %s92, %s108
    %p110 = scmp.eq.s32.totalorder %s16, 0
    %p111 = por %p109, %p110
    %s112 = ssub.s32 %s10, %s17
    %p113 = scmp.eq.s32.totalorder %s112, 0
    %s115 = sadd.s32 %s114, 1
    %s116 = scalar_select %p113, %s114, %s115
    %p119 = pneg %p113
    %p120 = scmp.eq.s32.totalorder %s10, 1
    %p121 = por %p119, %p120
    %p122 = scmp.ne.s32.totalorder %s114, %s117
    %p123 = scmp.eq.s32.totalorder %s10, 0
    %p124 = por %p122, %p123
    %p125 = scmp.ne.s32.totalorder %s114, %s117
    %p126 = scmp.eq.s32.totalorder %s15, 1
    %p127 = por %p125, %p126
    %p128 = scmp.ne.s32.totalorder %s117, %s118
    %p129 = scmp.eq.s32.totalorder %s15, 0
    %p130 = por %p128, %p129
    %p131 = scmp.ne.s32.totalorder %s117, %s118
    %p132 = scmp.eq.s32.totalorder %s16, 1
    %p133 = por %p131, %p132
    %p135 = scmp.ne.s32.totalorder %s118, %s134
    %p136 = scmp.eq.s32.totalorder %s16, 0
    %p137 = por %p135, %p136
    %p138 = scmp.le.s32.totalorder 1, %s10
    %p139 = scmp.lt.s32.totalorder %s10, 3
    %p140 = pnand %p138, %p139
    %p141 = pneg %p140
    // Predicated region
    $region9: #{_lambda_.11} parent=5 // pred_check
      _
    $region10: #{_lambda_.11} parent=5 // pred_check_branch
      %143 = sbr.rel (%p140) target = $region12
    $region11: #{_lambda_.11} parent=5 // pred_region
      %s144 = ssub.s32 %s10, 1
      // Predicated region
      $region13: #{_lambda_.11} parent=11 // pred_check
        %p145 = pneg %p57
      $region14: #{_lambda_.11} parent=11 // pred_check_branch
        %147 = sbr.rel (%p145) target = $region16
      $region15: #{_lambda_.11} parent=11 // pred_region
        _
      $region16: #{_lambda_.11} parent=11 // pred_fallthru
        _
      // Predicated region
      $region17: #{_lambda_.11} parent=11 // pred_check
        %p148 = pneg %p78
      $region18: #{_lambda_.11} parent=11 // pred_check_branch
        %150 = sbr.rel (%p148) target = $region20
      $region19: #{_lambda_.11} parent=11 // pred_region
        _
      $region20: #{_lambda_.11} parent=11 // pred_fallthru
        _
    $region12: #{_lambda_.11} parent=5 // pred_fallthru
      _
    %p151 = scmp.lt.s32.totalorder %s10, 2
    // Predicated region
    $region21: #{_lambda_.11} parent=5 // pred_check
      %p152 = pneg %p151
    $region22: #{_lambda_.11} parent=5 // pred_check_branch
      %154 = sbr.rel (%p152) target = $region24
    $region23: #{_lambda_.11} parent=5 // pred_region
      // Predicated region
      $region25: #{_lambda_.11} parent=23 // pred_check
        %p155 = pneg %p30
      $region26: #{_lambda_.11} parent=23 // pred_check_branch
        %157 = sbr.rel (%p155) target = $region28
      $region27: #{_lambda_.11} parent=23 // pred_region
        %p158 = scmp.lt.s32.totalorder %s10, 1
        %s159 = scalar_select %p158, %s10, 1
        %s160 = smul.addr %s159, 20
        %s161 = smul.addr %s160, 4
        %s162 = scalar_lea.vmem %s0, %s161
      $region28: #{_lambda_.11} parent=23 // pred_fallthru
        _
      // Predicated region
      $region29: #{_lambda_.11} parent=23 // pred_check
        %p163 = pneg %p98
      $region30: #{_lambda_.11} parent=23 // pred_check_branch
        %165 = sbr.rel (%p163) target = $region32
      $region31: #{_lambda_.11} parent=23 // pred_region
        %p166 = scmp.lt.s32.totalorder %s10, 1
        %s167 = scalar_select %p166, %s10, 1
        %s168 = smul.addr %s167, 8
        %s169 = smul.addr %s168, 4
        %s170 = scalar_lea.vmem %s3, %s169
      $region32: #{_lambda_.11} parent=23 // pred_fallthru
        _
    $region24: #{_lambda_.11} parent=5 // pred_fallthru
      _
    %p171 = scmp.le.s32.totalorder 1, %s10
    %p172 = scmp.lt.s32.totalorder %s10, 3
    %p173 = pnand %p171, %p172
    %p174 = pneg %p173
    // Predicated region
    $region33: #{_lambda_.11} parent=5 // pred_check
      _
    $region34: #{_lambda_.11} parent=5 // pred_check_branch
      %176 = sbr.rel (%p173) target = $region36
    $region35: #{_lambda_.11} parent=5 // pred_region
      %s177 = ssub.s32 %s10, 1
      %p178 = scmp.lt.s32.totalorder %s15, 1
      %s179 = scalar_select %p178, %s15, 1
      %s180 = smul.addr %s179, 20
      %s181 = smul.addr %s180, 4
      %s182 = scalar_lea.vmem %s0, %s181
      %p183 = pneg %p36
      %p184 = pneg %p33
      %p185 = pneg %p57
      %p186 = pneg %p54
      %p187 = pneg %p78
      %p188 = pneg %p75
      %p189 = scmp.lt.s32.totalorder %s15, 1
      %s190 = scalar_select %p189, %s15, 1
      %s191 = smul.addr %s190, 8
      %s192 = smul.addr %s191, 4
      %s193 = scalar_lea.vmem %s3, %s192
      %p194 = pneg %p104
      %p195 = pneg %p101
      %p196 = pneg %p130
      %p197 = pneg %p127
      %p198 = scmp.lt.s32.totalorder %s15, 1
      %s199 = scalar_select %p198, %s15, 1
      %s200 = smul.addr %s199, 8
      %s201 = smul.addr %s200, 4
      %s202 = scalar_lea.vmem %s4, %s201
      %p203 = scmp.lt.s32.totalorder %s15, 1
      %s204 = scalar_select %p203, %s15, 1
      %s205 = smul.addr %s204, 20
      %s206 = smul.addr %s205, 4
      %s207 = scalar_lea.vmem %s0, %s206
      %p208 = scmp.lt.s32.totalorder %s15, 1
      %s209 = scalar_select %p208, %s15, 1
      %s210 = smul.addr %s209, 8
      %s211 = smul.addr %s210, 4
      %s212 = scalar_lea.vmem %s3, %s211
      %p213 = scmp.lt.s32.totalorder %s15, 1
      %s214 = scalar_select %p213, %s15, 1
      %s215 = smul.addr %s214, 8
      %s216 = smul.addr %s215, 4
      %s217 = scalar_lea.vmem %s4, %s216
      %v218 = vld [vmem:[%s207] sm:$0xf]
      %v219 = vld [vmem:[%s207 + $0x4] sm:$0x1]
      %v220 = vld [vmem:[%s207 + $0x8] sm:$0xf]
      %v221 = vld [vmem:[%s207 + $0xc] sm:$0x1]
      %v222 = vld [vmem:[%s207 + $0x10] sm:$0xf]
      %v223 = vld [vmem:[%s207 + $0x14] sm:$0x1]
      %v224 = vld [vmem:[%s207 + $0x18] sm:$0xf]
      %v225 = vld [vmem:[%s207 + $0x1c] sm:$0x1]
      %v226 = vld [vmem:[%s207 + $0x20] sm:$0xf]
      %v227 = vld [vmem:[%s207 + $0x24] sm:$0x1]
      %v228 = vld [vmem:[%s207 + $0x28] sm:$0xf]
      %v229 = vld [vmem:[%s207 + $0x2c] sm:$0x1]
      %v230 = vld [vmem:[%s207 + $0x30] sm:$0xf]
      %v231 = vld [vmem:[%s207 + $0x34] sm:$0x1]
      %v232 = vld [vmem:[%s207 + $0x38] sm:$0xf]
      %v233 = vld [vmem:[%s207 + $0x3c] sm:$0x1]
      %v234 = vld [vmem:[%s207 + $0x40] sm:$0xf]
      %v235 = vld [vmem:[%s207 + $0x44] sm:$0x1]
      %v236 = vld [vmem:[%s207 + $0x48] sm:$0xf]
      %v237 = vld [vmem:[%s207 + $0x4c] sm:$0x1]
      %v238 = vld [vmem:[%s1] sm:$0xf]
      %v239 = vld [vmem:[%s1 + $0x4] sm:$0xf]
      %v240 = vld [vmem:[%s1 + $0x8] sm:$0xf]
      %v241 = vld [vmem:[%s1 + $0xc] sm:$0xf]
      %v242 = vld [vmem:[%s1 + $0x10] sm:$0xf]
      %v243 = vld [vmem:[%s1 + $0x14] sm:$0xf]
      %v244 = vld [vmem:[%s1 + $0x18] sm:$0xf]
      %v245 = vld [vmem:[%s1 + $0x1c] sm:$0xf]
      %v246 = vld [vmem:[%s1 + $0x20] sm:$0xf]
      %v247 = vld [vmem:[%s1 + $0x24] sm:$0xf]
      %v248 = vld [vmem:[%s1 + $0x28] sm:$0xf]
      %v249 = vld [vmem:[%s1 + $0x2c] sm:$0xf]
      %v250 = vld [vmem:[%s1 + $0x30] sm:$0xf]
      %v251 = vld [vmem:[%s1 + $0x34] sm:$0xf]
      %v252 = vld [vmem:[%s1 + $0x38] sm:$0xf]
      %v253 = vld [vmem:[%s1 + $0x3c] sm:$0xf]
      %vm254 = vsmask.f32 3328
      %vm255 = vsmask.f32 7440
      %vm256 = vmor %vm254, %vm255
      %v258 = vshrl.u32 %v218, 16
      %v260 = vrot.slane %v258, 4
      %v261 = vshll.u32 %v218, 16
      %v263 = vrot.slane %v261, 5
      %v264 = vor.u32 %v260, %v263
      %v265 = vrot.slane %v264, 4
      %v267 = vshll.u32 %v219, 16
      %v269 = vrot.slane %v267, 5
      %v270 = vsel %vm256, %v265, %v269
      %v272 = vshrl.u32 %v220, 16
      %v274 = vrot.slane %v272, 4
      %v275 = vshll.u32 %v220, 16
      %v277 = vrot.slane %v275, 5
      %v278 = vor.u32 %v274, %v277
      %v279 = vrot.slane %v278, 4
      %v281 = vshll.u32 %v221, 16
      %v283 = vrot.slane %v281, 5
      %v284 = vsel %vm256, %v279, %v283
      %v286 = vshrl.u32 %v222, 16
      %v288 = vrot.slane %v286, 4
      %v289 = vshll.u32 %v222, 16
      %v291 = vrot.slane %v289, 5
      %v292 = vor.u32 %v288, %v291
      %v293 = vrot.slane %v292, 4
      %v295 = vshll.u32 %v223, 16
      %v297 = vrot.slane %v295, 5
      %v298 = vsel %vm256, %v293, %v297
      %v300 = vshrl.u32 %v224, 16
      %v302 = vrot.slane %v300, 4
      %v303 = vshll.u32 %v224, 16
      %v305 = vrot.slane %v303, 5
      %v306 = vor.u32 %v302, %v305
      %v307 = vrot.slane %v306, 4
      %v309 = vshll.u32 %v225, 16
      %v311 = vrot.slane %v309, 5
      %v312 = vsel %vm256, %v307, %v311
      %v314 = vshrl.u32 %v226, 16
      %v316 = vrot.slane %v314, 4
      %v317 = vshll.u32 %v226, 16
      %v319 = vrot.slane %v317, 5
      %v320 = vor.u32 %v316, %v319
      %v321 = vrot.slane %v320, 4
      %v323 = vshll.u32 %v227, 16
      %v325 = vrot.slane %v323, 5
      %v326 = vsel %vm256, %v321, %v325
      %v328 = vshrl.u32 %v228, 16
      %v330 = vrot.slane %v328, 4
      %v331 = vshll.u32 %v228, 16
      %v333 = vrot.slane %v331, 5
      %v334 = vor.u32 %v330, %v333
      %v335 = vrot.slane %v334, 4
      %v337 = vshll.u32 %v229, 16
      %v339 = vrot.slane %v337, 5
      %v340 = vsel %vm256, %v335, %v339
      %v342 = vshrl.u32 %v230, 16
      %v344 = vrot.slane %v342, 4
      %v345 = vshll.u32 %v230, 16
      %v347 = vrot.slane %v345, 5
      %v348 = vor.u32 %v344, %v347
      %v349 = vrot.slane %v348, 4
      %v351 = vshll.u32 %v231, 16
      %v353 = vrot.slane %v351, 5
      %v354 = vsel %vm256, %v349, %v353
      %v356 = vshrl.u32 %v232, 16
      %v358 = vrot.slane %v356, 4
      %v359 = vshll.u32 %v232, 16
      %v361 = vrot.slane %v359, 5
      %v362 = vor.u32 %v358, %v361
      %v363 = vrot.slane %v362, 4
      %v365 = vshll.u32 %v233, 16
      %v367 = vrot.slane %v365, 5
      %v368 = vsel %vm256, %v363, %v367
      %s369 = scalar_lea.vmem %s1, 64
      %v370 = vld [vmem:[%s369] sm:$0xf]
      %v371 = vld [vmem:[%s369 + $0x4] sm:$0xf]
      %v372 = vld [vmem:[%s369 + $0x8] sm:$0xf]
      %v373 = vld [vmem:[%s369 + $0xc] sm:$0xf]
      %v374 = vld [vmem:[%s369 + $0x10] sm:$0xf]
      %v375 = vld [vmem:[%s369 + $0x14] sm:$0xf]
      %v376 = vld [vmem:[%s369 + $0x18] sm:$0xf]
      %v377 = vld [vmem:[%s369 + $0x1c] sm:$0xf]
      %v378 = vld [vmem:[%s369 + $0x20] sm:$0xf]
      %v379 = vld [vmem:[%s369 + $0x24] sm:$0xf]
      %v380 = vld [vmem:[%s369 + $0x28] sm:$0xf]
      %v381 = vld [vmem:[%s369 + $0x2c] sm:$0xf]
      %v382 = vld [vmem:[%s369 + $0x30] sm:$0xf]
      %v383 = vld [vmem:[%s369 + $0x34] sm:$0xf]
      %v384 = vld [vmem:[%s369 + $0x38] sm:$0xf]
      %v385 = vld [vmem:[%s369 + $0x3c] sm:$0xf]
      %v386 = vunpack.c.l.b16 %v270
      %v387 = vunpack.c.l.b16 %v284
      %v388 = vunpack.c.l.b16 %v298
      %v389 = vunpack.c.l.b16 %v312
      %v390 = vunpack.c.l.b16 %v326
      %v391 = vunpack.c.l.b16 %v340
      %v392 = vunpack.c.l.b16 %v354
      %v393 = vunpack.c.l.b16 %v368
      %v394 = vpack.c.b16 %v387, %v386
      %v395 = vpack.c.b16 %v389, %v388
      %v396 = vpack.c.b16 %v391, %v390
      %v397 = vpack.c.b16 %v393, %v392
      %v418 = vunpack.c.l.b16 %v370
      %v419 = vunpack.c.l.b16 %v371
      %v420 = vunpack.c.l.b16 %v372
      %v421 = vunpack.c.l.b16 %v373
      %v422 = vunpack.c.l.b16 %v374
      %v423 = vunpack.c.l.b16 %v375
      %v424 = vunpack.c.l.b16 %v376
      %v425 = vunpack.c.l.b16 %v377
      %v426 = vunpack.c.l.b16 %v378
      %v427 = vunpack.c.l.b16 %v379
      %v428 = vunpack.c.l.b16 %v380
      %v429 = vunpack.c.l.b16 %v381
      %v430 = vunpack.c.l.b16 %v382
      %v431 = vunpack.c.l.b16 %v383
      %v432 = vunpack.c.l.b16 %v384
      %v433 = vunpack.c.l.b16 %v385
      %v434 = vpack.c.b16 %v419, %v418
      %v435 = vpack.c.b16 %v421, %v420
      %v436 = vpack.c.b16 %v423, %v422
      %v437 = vpack.c.b16 %v425, %v424
      %v438 = vpack.c.b16 %v427, %v426
      %v439 = vpack.c.b16 %v429, %v428
      %v440 = vpack.c.b16 %v431, %v430
      %v441 = vpack.c.b16 %v433, %v432
      %450 = vmatpush.bf16.msra.mxu0 %v441
      %451 = vmatpush.bf16.msra.mxu0 %v440
      %452 = vmatpush.bf16.msra.mxu0 %v439
      %453 = vmatpush.bf16.msra.mxu0 %v438
      %454 = vmatpush.bf16.msra.mxu0 %v437
      %455 = vmatpush.bf16.msra.mxu0 %v436
      %456 = vmatpush.bf16.msra.mxu0 %v435
      %457 = vmatpush.bf16.msra.mxu0 %v434
      %458 = vmatmul.bf16.gmra.mxu0 %v394
      %v459 = vpop.f32.mrf.mxu0
      %v460 = vadd.f32 0.0, %v459
      %v461 = vpop.f32.mrf.mxu0
      %v462 = vadd.f32 0.0, %v461
      %463 = vmatmul.bf16.gmra.mxu0 %v395
      %v464 = vpop.f32.mrf.mxu0
      %v465 = vadd.f32 0.0, %v464
      %v466 = vpop.f32.mrf.mxu0
      %v467 = vadd.f32 0.0, %v466
      %468 = vmatmul.bf16.gmra.mxu0 %v396
      %v469 = vpop.f32.mrf.mxu0
      %v470 = vadd.f32 0.0, %v469
      %v471 = vpop.f32.mrf.mxu0
      %v472 = vadd.f32 0.0, %v471
      %473 = vmatmul.bf16.gmra.mxu0 %v397
      %v474 = vpop.f32.mrf.mxu0
      %v475 = vadd.f32 0.0, %v474
      %v476 = vpop.f32.mrf.mxu0
      %v477 = vadd.f32 0.0, %v476
      %478 = vdwg.mxu0
      %v487 = vunpack.c.l.b16 %v218
      %v488 = vunpack.c.l.b16 %v220
      %v489 = vunpack.c.l.b16 %v222
      %v490 = vunpack.c.l.b16 %v224
      %v491 = vunpack.c.l.b16 %v226
      %v492 = vunpack.c.l.b16 %v228
      %v493 = vunpack.c.l.b16 %v230
      %v494 = vunpack.c.l.b16 %v232
      %v495 = vpack.c.b16 %v488, %v487
      %v496 = vpack.c.b16 %v490, %v489
      %v497 = vpack.c.b16 %v492, %v491
      %v498 = vpack.c.b16 %v494, %v493
      %v519 = vunpack.c.l.b16 %v238
      %v520 = vunpack.c.l.b16 %v239
      %v521 = vunpack.c.l.b16 %v240
      %v522 = vunpack.c.l.b16 %v241
      %v523 = vunpack.c.l.b16 %v242
      %v524 = vunpack.c.l.b16 %v243
      %v525 = vunpack.c.l.b16 %v244
      %v526 = vunpack.c.l.b16 %v245
      %v527 = vunpack.c.l.b16 %v246
      %v528 = vunpack.c.l.b16 %v247
      %v529 = vunpack.c.l.b16 %v248
      %v530 = vunpack.c.l.b16 %v249
      %v531 = vunpack.c.l.b16 %v250
      %v532 = vunpack.c.l.b16 %v251
      %v533 = vunpack.c.l.b16 %v252
      %v534 = vunpack.c.l.b16 %v253
      %v535 = vpack.c.b16 %v520, %v519
      %v536 = vpack.c.b16 %v522, %v521
      %v537 = vpack.c.b16 %v524, %v523
      %v538 = vpack.c.b16 %v526, %v525
      %v539 = vpack.c.b16 %v528, %v527
      %v540 = vpack.c.b16 %v530, %v529
      %v541 = vpack.c.b16 %v532, %v531
      %v542 = vpack.c.b16 %v534, %v533
      %551 = vmatpush.bf16.msra.mxu0 %v542
      %552 = vmatpush.bf16.msra.mxu0 %v541
      %553 = vmatpush.bf16.msra.mxu0 %v540
      %554 = vmatpush.bf16.msra.mxu0 %v539
      %555 = vmatpush.bf16.msra.mxu0 %v538
      %556 = vmatpush.bf16.msra.mxu0 %v537
      %557 = vmatpush.bf16.msra.mxu0 %v536
      %558 = vmatpush.bf16.msra.mxu0 %v535
      %559 = vmatmul.bf16.gmra.mxu0 %v495
      %v560 = vpop.f32.mrf.mxu0
      %v561 = vadd.f32 %v460, %v560
      %v562 = vpop.f32.mrf.mxu0
      %v563 = vadd.f32 %v462, %v562
      %564 = vmatmul.bf16.gmra.mxu0 %v496
      %v565 = vpop.f32.mrf.mxu0
      %v566 = vadd.f32 %v465, %v565
      %v567 = vpop.f32.mrf.mxu0
      %v568 = vadd.f32 %v467, %v567
      %569 = vmatmul.bf16.gmra.mxu0 %v497
      %v570 = vpop.f32.mrf.mxu0
      %v571 = vadd.f32 %v470, %v570
      %v572 = vpop.f32.mrf.mxu0
      %v573 = vadd.f32 %v472, %v572
      %574 = vmatmul.bf16.gmra.mxu0 %v498
      %v575 = vpop.f32.mrf.mxu0
      %v576 = vadd.f32 %v475, %v575
      %v577 = vpop.f32.mrf.mxu0
      %v578 = vadd.f32 %v477, %v577
      %579 = vdwg.mxu0
      %vm588 = vcmask 1042432
      %vm589 = vcmask 1046532
      %vm590 = vmor %vm588, %vm589
      %v591 = vrot.slane %v218, 5
      %v592 = vrot.slane %v591, 4
      %v593 = vrot.slane %v219, 5
      %v594 = vsel %vm590, %v592, %v593
      %v595 = vrot.slane %v220, 5
      %v596 = vrot.slane %v595, 4
      %v597 = vrot.slane %v221, 5
      %v598 = vsel %vm590, %v596, %v597
      %v599 = vrot.slane %v222, 5
      %v600 = vrot.slane %v599, 4
      %v601 = vrot.slane %v223, 5
      %v602 = vsel %vm590, %v600, %v601
      %v603 = vrot.slane %v224, 5
      %v604 = vrot.slane %v603, 4
      %v605 = vrot.slane %v225, 5
      %v606 = vsel %vm590, %v604, %v605
      %v607 = vrot.slane %v226, 5
      %v608 = vrot.slane %v607, 4
      %v609 = vrot.slane %v227, 5
      %v610 = vsel %vm590, %v608, %v609
      %v611 = vrot.slane %v228, 5
      %v612 = vrot.slane %v611, 4
      %v613 = vrot.slane %v229, 5
      %v614 = vsel %vm590, %v612, %v613
      %v615 = vrot.slane %v230, 5
      %v616 = vrot.slane %v615, 4
      %v617 = vrot.slane %v231, 5
      %v618 = vsel %vm590, %v616, %v617
      %v619 = vrot.slane %v232, 5
      %v620 = vrot.slane %v619, 4
      %v621 = vrot.slane %v233, 5
      %v622 = vsel %vm590, %v620, %v621
      %s623 = scalar_lea.vmem %s1, 128
      %v624 = vld [vmem:[%s623] sm:$0xf]
      %v625 = vld [vmem:[%s623 + $0x4] sm:$0xf]
      %v626 = vld [vmem:[%s623 + $0x8] sm:$0xf]
      %v627 = vld [vmem:[%s623 + $0xc] sm:$0xf]
      %v628 = vld [vmem:[%s623 + $0x10] sm:$0xf]
      %v629 = vld [vmem:[%s623 + $0x14] sm:$0xf]
      %v630 = vld [vmem:[%s623 + $0x18] sm:$0xf]
      %v631 = vld [vmem:[%s623 + $0x1c] sm:$0xf]
      %v632 = vld [vmem:[%s623 + $0x20] sm:$0xf]
      %v633 = vld [vmem:[%s623 + $0x24] sm:$0xf]
      %v634 = vld [vmem:[%s623 + $0x28] sm:$0xf]
      %v635 = vld [vmem:[%s623 + $0x2c] sm:$0xf]
      %v636 = vld [vmem:[%s623 + $0x30] sm:$0xf]
      %v637 = vld [vmem:[%s623 + $0x34] sm:$0xf]
      %v638 = vld [vmem:[%s623 + $0x38] sm:$0xf]
      %v639 = vld [vmem:[%s623 + $0x3c] sm:$0xf]
      %v640 = vunpack.c.l.b16 %v594
      %v641 = vunpack.c.l.b16 %v598
      %v642 = vunpack.c.l.b16 %v602
      %v643 = vunpack.c.l.b16 %v606
      %v644 = vunpack.c.l.b16 %v610
      %v645 = vunpack.c.l.b16 %v614
      %v646 = vunpack.c.l.b16 %v618
      %v647 = vunpack.c.l.b16 %v622
      %v648 = vpack.c.b16 %v641, %v640
      %v649 = vpack.c.b16 %v643, %v642
      %v650 = vpack.c.b16 %v645, %v644
      %v651 = vpack.c.b16 %v647, %v646
      %v672 = vunpack.c.l.b16 %v624
      %v673 = vunpack.c.l.b16 %v625
      %v674 = vunpack.c.l.b16 %v626
      %v675 = vunpack.c.l.b16 %v627
      %v676 = vunpack.c.l.b16 %v628
      %v677 = vunpack.c.l.b16 %v629
      %v678 = vunpack.c.l.b16 %v630
      %v679 = vunpack.c.l.b16 %v631
      %v680 = vunpack.c.l.b16 %v632
      %v681 = vunpack.c.l.b16 %v633
      %v682 = vunpack.c.l.b16 %v634
      %v683 = vunpack.c.l.b16 %v635
      %v684 = vunpack.c.l.b16 %v636
      %v685 = vunpack.c.l.b16 %v637
      %v686 = vunpack.c.l.b16 %v638
      %v687 = vunpack.c.l.b16 %v639
      %v688 = vpack.c.b16 %v673, %v672
      %v689 = vpack.c.b16 %v675, %v674
      %v690 = vpack.c.b16 %v677, %v676
      %v691 = vpack.c.b16 %v679, %v678
      %v692 = vpack.c.b16 %v681, %v680
      %v693 = vpack.c.b16 %v683, %v682
      %v694 = vpack.c.b16 %v685, %v684
      %v695 = vpack.c.b16 %v687, %v686
      %704 = vmatpush.bf16.msra.mxu0 %v695
      %705 = vmatpush.bf16.msra.mxu0 %v694
      %706 = vmatpush.bf16.msra.mxu0 %v693
      %707 = vmatpush.bf16.msra.mxu0 %v692
      %708 = vmatpush.bf16.msra.mxu0 %v691
      %709 = vmatpush.bf16.msra.mxu0 %v690
      %710 = vmatpush.bf16.msra.mxu0 %v689
      %711 = vmatpush.bf16.msra.mxu0 %v688
      %712 = vmatmul.bf16.gmra.mxu0 %v648
      %v713 = vpop.f32.mrf.mxu0
      %v714 = vadd.f32 0.0, %v713
      %v715 = vpop.f32.mrf.mxu0
      %v716 = vadd.f32 0.0, %v715
      %717 = vmatmul.bf16.gmra.mxu0 %v649
      %v718 = vpop.f32.mrf.mxu0
      %v719 = vadd.f32 0.0, %v718
      %v720 = vpop.f32.mrf.mxu0
      %v721 = vadd.f32 0.0, %v720
      %722 = vmatmul.bf16.gmra.mxu0 %v650
      %v723 = vpop.f32.mrf.mxu0
      %v724 = vadd.f32 0.0, %v723
      %v725 = vpop.f32.mrf.mxu0
      %v726 = vadd.f32 0.0, %v725
      %727 = vmatmul.bf16.gmra.mxu0 %v651
      %v728 = vpop.f32.mrf.mxu0
      %v729 = vadd.f32 0.0, %v728
      %v730 = vpop.f32.mrf.mxu0
      %v731 = vadd.f32 0.0, %v730
      %732 = vdwg.mxu0
      %v733 = vadd.f32 %v561, %v714
      %v734 = vadd.f32 %v563, %v716
      %v735 = vadd.f32 %v566, %v719
      %v736 = vadd.f32 %v568, %v721
      %v737 = vadd.f32 %v571, %v724
      %v738 = vadd.f32 %v573, %v726
      %v739 = vadd.f32 %v576, %v729
      %v740 = vadd.f32 %v578, %v731
      %s741 = scalar_lea.vmem %s1, 192
      %v742 = vld [vmem:[%s741] sm:$0xf]
      %v743 = vld [vmem:[%s741 + $0x4] sm:$0xf]
      %v744 = vld [vmem:[%s741 + $0x8] sm:$0xf]
      %v745 = vld [vmem:[%s741 + $0xc] sm:$0xf]
      %v746 = vld [vmem:[%s741 + $0x10] sm:$0xf]
      %v747 = vld [vmem:[%s741 + $0x14] sm:$0xf]
      %v748 = vld [vmem:[%s741 + $0x18] sm:$0xf]
      %v749 = vld [vmem:[%s741 + $0x1c] sm:$0xf]
      %v750 = vld [vmem:[%s741 + $0x20] sm:$0xf]
      %v751 = vld [vmem:[%s741 + $0x24] sm:$0xf]
      %v752 = vld [vmem:[%s741 + $0x28] sm:$0xf]
      %v753 = vld [vmem:[%s741 + $0x2c] sm:$0xf]
      %v754 = vld [vmem:[%s741 + $0x30] sm:$0xf]
      %v755 = vld [vmem:[%s741 + $0x34] sm:$0xf]
      %v756 = vld [vmem:[%s741 + $0x38] sm:$0xf]
      %v757 = vld [vmem:[%s741 + $0x3c] sm:$0xf]
      %v759 = vunpack.c.l.b16 %v234
      %v760 = vpack.c.b16 %v489, %v488
      %v761 = vpack.c.b16 %v491, %v490
      %v762 = vpack.c.b16 %v493, %v492
      %v763 = vpack.c.b16 %v759, %v494
      %v784 = vunpack.c.l.b16 %v742
      %v785 = vunpack.c.l.b16 %v743
      %v786 = vunpack.c.l.b16 %v744
      %v787 = vunpack.c.l.b16 %v745
      %v788 = vunpack.c.l.b16 %v746
      %v789 = vunpack.c.l.b16 %v747
      %v790 = vunpack.c.l.b16 %v748
      %v791 = vunpack.c.l.b16 %v749
      %v792 = vunpack.c.l.b16 %v750
      %v793 = vunpack.c.l.b16 %v751
      %v794 = vunpack.c.l.b16 %v752
      %v795 = vunpack.c.l.b16 %v753
      %v796 = vunpack.c.l.b16 %v754
      %v797 = vunpack.c.l.b16 %v755
      %v798 = vunpack.c.l.b16 %v756
      %v799 = vunpack.c.l.b16 %v757
      %v800 = vpack.c.b16 %v785, %v784
      %v801 = vpack.c.b16 %v787, %v786
      %v802 = vpack.c.b16 %v789, %v788
      %v803 = vpack.c.b16 %v791, %v790
      %v804 = vpack.c.b16 %v793, %v792
      %v805 = vpack.c.b16 %v795, %v794
      %v806 = vpack.c.b16 %v797, %v796
      %v807 = vpack.c.b16 %v799, %v798
      %816 = vmatpush.bf16.msra.mxu0 %v807
      %817 = vmatpush.bf16.msra.mxu0 %v806
      %818 = vmatpush.bf16.msra.mxu0 %v805
      %819 = vmatpush.bf16.msra.mxu0 %v804
      %820 = vmatpush.bf16.msra.mxu0 %v803
      %821 = vmatpush.bf16.msra.mxu0 %v802
      %822 = vmatpush.bf16.msra.mxu0 %v801
      %823 = vmatpush.bf16.msra.mxu0 %v800
      %824 = vmatmul.bf16.gmra.mxu0 %v760
      %v825 = vpop.f32.mrf.mxu0
      %v826 = vadd.f32 0.0, %v825
      %v827 = vpop.f32.mrf.mxu0
      %v828 = vadd.f32 0.0, %v827
      %829 = vmatmul.bf16.gmra.mxu0 %v761
      %v830 = vpop.f32.mrf.mxu0
      %v831 = vadd.f32 0.0, %v830
      %v832 = vpop.f32.mrf.mxu0
      %v833 = vadd.f32 0.0, %v832
      %834 = vmatmul.bf16.gmra.mxu0 %v762
      %v835 = vpop.f32.mrf.mxu0
      %v836 = vadd.f32 0.0, %v835
      %v837 = vpop.f32.mrf.mxu0
      %v838 = vadd.f32 0.0, %v837
      %839 = vmatmul.bf16.gmra.mxu0 %v763
      %v840 = vpop.f32.mrf.mxu0
      %v841 = vadd.f32 0.0, %v840
      %v842 = vpop.f32.mrf.mxu0
      %v843 = vadd.f32 0.0, %v842
      %844 = vdwg.mxu0
      %v845 = vadd.f32 %v733, %v826
      %v846 = vadd.f32 %v734, %v828
      %v847 = vadd.f32 %v735, %v831
      %v848 = vadd.f32 %v736, %v833
      %v849 = vadd.f32 %v737, %v836
      %v850 = vadd.f32 %v738, %v838
      %v851 = vadd.f32 %v739, %v841
      %v852 = vadd.f32 %v740, %v843
      %v854 = vshrl.u32 %v234, 16
      %v856 = vrot.slane %v854, 4
      %v857 = vshll.u32 %v234, 16
      %v859 = vrot.slane %v857, 5
      %v860 = vor.u32 %v856, %v859
      %v861 = vrot.slane %v860, 4
      %v863 = vshll.u32 %v235, 16
      %v865 = vrot.slane %v863, 5
      %v866 = vsel %vm256, %v861, %v865
      %s867 = scalar_lea.vmem %s1, 256
      %v868 = vld [vmem:[%s867] sm:$0xf]
      %v869 = vld [vmem:[%s867 + $0x4] sm:$0xf]
      %v870 = vld [vmem:[%s867 + $0x8] sm:$0xf]
      %v871 = vld [vmem:[%s867 + $0xc] sm:$0xf]
      %v872 = vld [vmem:[%s867 + $0x10] sm:$0xf]
      %v873 = vld [vmem:[%s867 + $0x14] sm:$0xf]
      %v874 = vld [vmem:[%s867 + $0x18] sm:$0xf]
      %v875 = vld [vmem:[%s867 + $0x1c] sm:$0xf]
      %v876 = vld [vmem:[%s867 + $0x20] sm:$0xf]
      %v877 = vld [vmem:[%s867 + $0x24] sm:$0xf]
      %v878 = vld [vmem:[%s867 + $0x28] sm:$0xf]
      %v879 = vld [vmem:[%s867 + $0x2c] sm:$0xf]
      %v880 = vld [vmem:[%s867 + $0x30] sm:$0xf]
      %v881 = vld [vmem:[%s867 + $0x34] sm:$0xf]
      %v882 = vld [vmem:[%s867 + $0x38] sm:$0xf]
      %v883 = vld [vmem:[%s867 + $0x3c] sm:$0xf]
      %v884 = vunpack.c.l.b16 %v866
      %v885 = vpack.c.b16 %v388, %v387
      %v886 = vpack.c.b16 %v390, %v389
      %v887 = vpack.c.b16 %v392, %v391
      %v888 = vpack.c.b16 %v884, %v393
      %v909 = vunpack.c.l.b16 %v868
      %v910 = vunpack.c.l.b16 %v869
      %v911 = vunpack.c.l.b16 %v870
      %v912 = vunpack.c.l.b16 %v871
      %v913 = vunpack.c.l.b16 %v872
      %v914 = vunpack.c.l.b16 %v873
      %v915 = vunpack.c.l.b16 %v874
      %v916 = vunpack.c.l.b16 %v875
      %v917 = vunpack.c.l.b16 %v876
      %v918 = vunpack.c.l.b16 %v877
      %v919 = vunpack.c.l.b16 %v878
      %v920 = vunpack.c.l.b16 %v879
      %v921 = vunpack.c.l.b16 %v880
      %v922 = vunpack.c.l.b16 %v881
      %v923 = vunpack.c.l.b16 %v882
      %v924 = vunpack.c.l.b16 %v883
      %v925 = vpack.c.b16 %v910, %v909
      %v926 = vpack.c.b16 %v912, %v911
      %v927 = vpack.c.b16 %v914, %v913
      %v928 = vpack.c.b16 %v916, %v915
      %v929 = vpack.c.b16 %v918, %v917
      %v930 = vpack.c.b16 %v920, %v919
      %v931 = vpack.c.b16 %v922, %v921
      %v932 = vpack.c.b16 %v924, %v923
      %941 = vmatpush.bf16.msra.mxu0 %v932
      %942 = vmatpush.bf16.msra.mxu0 %v931
      %943 = vmatpush.bf16.msra.mxu0 %v930
      %944 = vmatpush.bf16.msra.mxu0 %v929
      %945 = vmatpush.bf16.msra.mxu0 %v928
      %946 = vmatpush.bf16.msra.mxu0 %v927
      %947 = vmatpush.bf16.msra.mxu0 %v926
      %948 = vmatpush.bf16.msra.mxu0 %v925
      %949 = vmatmul.bf16.gmra.mxu0 %v885
      %v950 = vpop.f32.mrf.mxu0
      %v951 = vadd.f32 0.0, %v950
      %v952 = vpop.f32.mrf.mxu0
      %v953 = vadd.f32 0.0, %v952
      %954 = vmatmul.bf16.gmra.mxu0 %v886
      %v955 = vpop.f32.mrf.mxu0
      %v956 = vadd.f32 0.0, %v955
      %v957 = vpop.f32.mrf.mxu0
      %v958 = vadd.f32 0.0, %v957
      %959 = vmatmul.bf16.gmra.mxu0 %v887
      %v960 = vpop.f32.mrf.mxu0
      %v961 = vadd.f32 0.0, %v960
      %v962 = vpop.f32.mrf.mxu0
      %v963 = vadd.f32 0.0, %v962
      %964 = vmatmul.bf16.gmra.mxu0 %v888
      %v965 = vpop.f32.mrf.mxu0
      %v966 = vadd.f32 0.0, %v965
      %v967 = vpop.f32.mrf.mxu0
      %v968 = vadd.f32 0.0, %v967
      %969 = vdwg.mxu0
      %v970 = vadd.f32 %v845, %v951
      %v971 = vadd.f32 %v846, %v953
      %v972 = vadd.f32 %v847, %v956
      %v973 = vadd.f32 %v848, %v958
      %v974 = vadd.f32 %v849, %v961
      %v975 = vadd.f32 %v850, %v963
      %v976 = vadd.f32 %v851, %v966
      %v977 = vadd.f32 %v852, %v968
      %v979 = vrot.slane %v234, 5
      %v980 = vrot.slane %v979, 4
      %v981 = vrot.slane %v235, 5
      %v982 = vsel %vm590, %v980, %v981
      %s983 = scalar_lea.vmem %s1, 320
      %v984 = vld [vmem:[%s983] sm:$0xf]
      %v985 = vld [vmem:[%s983 + $0x4] sm:$0xf]
      %v986 = vld [vmem:[%s983 + $0x8] sm:$0xf]
      %v987 = vld [vmem:[%s983 + $0xc] sm:$0xf]
      %v988 = vld [vmem:[%s983 + $0x10] sm:$0xf]
      %v989 = vld [vmem:[%s983 + $0x14] sm:$0xf]
      %v990 = vld [vmem:[%s983 + $0x18] sm:$0xf]
      %v991 = vld [vmem:[%s983 + $0x1c] sm:$0xf]
      %v992 = vld [vmem:[%s983 + $0x20] sm:$0xf]
      %v993 = vld [vmem:[%s983 + $0x24] sm:$0xf]
      %v994 = vld [vmem:[%s983 + $0x28] sm:$0xf]
      %v995 = vld [vmem:[%s983 + $0x2c] sm:$0xf]
      %v996 = vld [vmem:[%s983 + $0x30] sm:$0xf]
      %v997 = vld [vmem:[%s983 + $0x34] sm:$0xf]
      %v998 = vld [vmem:[%s983 + $0x38] sm:$0xf]
      %v999 = vld [vmem:[%s983 + $0x3c] sm:$0xf]
      %v1000 = vunpack.c.l.b16 %v982
      %v1001 = vpack.c.b16 %v642, %v641
      %v1002 = vpack.c.b16 %v644, %v643
      %v1003 = vpack.c.b16 %v646, %v645
      %v1004 = vpack.c.b16 %v1000, %v647
      %v1025 = vunpack.c.l.b16 %v984
      %v1026 = vunpack.c.l.b16 %v985
      %v1027 = vunpack.c.l.b16 %v986
      %v1028 = vunpack.c.l.b16 %v987
      %v1029 = vunpack.c.l.b16 %v988
      %v1030 = vunpack.c.l.b16 %v989
      %v1031 = vunpack.c.l.b16 %v990
      %v1032 = vunpack.c.l.b16 %v991
      %v1033 = vunpack.c.l.b16 %v992
      %v1034 = vunpack.c.l.b16 %v993
      %v1035 = vunpack.c.l.b16 %v994
      %v1036 = vunpack.c.l.b16 %v995
      %v1037 = vunpack.c.l.b16 %v996
      %v1038 = vunpack.c.l.b16 %v997
      %v1039 = vunpack.c.l.b16 %v998
      %v1040 = vunpack.c.l.b16 %v999
      %v1041 = vpack.c.b16 %v1026, %v1025
      %v1042 = vpack.c.b16 %v1028, %v1027
      %v1043 = vpack.c.b16 %v1030, %v1029
      %v1044 = vpack.c.b16 %v1032, %v1031
      %v1045 = vpack.c.b16 %v1034, %v1033
      %v1046 = vpack.c.b16 %v1036, %v1035
      %v1047 = vpack.c.b16 %v1038, %v1037
      %v1048 = vpack.c.b16 %v1040, %v1039
      %1057 = vmatpush.bf16.msra.mxu0 %v1048
      %1058 = vmatpush.bf16.msra.mxu0 %v1047
      %1059 = vmatpush.bf16.msra.mxu0 %v1046
      %1060 = vmatpush.bf16.msra.mxu0 %v1045
      %1061 = vmatpush.bf16.msra.mxu0 %v1044
      %1062 = vmatpush.bf16.msra.mxu0 %v1043
      %1063 = vmatpush.bf16.msra.mxu0 %v1042
      %1064 = vmatpush.bf16.msra.mxu0 %v1041
      %1065 = vmatmul.bf16.gmra.mxu0 %v1001
      %v1066 = vpop.f32.mrf.mxu0
      %v1067 = vadd.f32 0.0, %v1066
      %v1068 = vpop.f32.mrf.mxu0
      %v1069 = vadd.f32 0.0, %v1068
      %1070 = vmatmul.bf16.gmra.mxu0 %v1002
      %v1071 = vpop.f32.mrf.mxu0
      %v1072 = vadd.f32 0.0, %v1071
      %v1073 = vpop.f32.mrf.mxu0
      %v1074 = vadd.f32 0.0, %v1073
      %1075 = vmatmul.bf16.gmra.mxu0 %v1003
      %v1076 = vpop.f32.mrf.mxu0
      %v1077 = vadd.f32 0.0, %v1076
      %v1078 = vpop.f32.mrf.mxu0
      %v1079 = vadd.f32 0.0, %v1078
      %1080 = vmatmul.bf16.gmra.mxu0 %v1004
      %v1081 = vpop.f32.mrf.mxu0
      %v1082 = vadd.f32 0.0, %v1081
      %v1083 = vpop.f32.mrf.mxu0
      %v1084 = vadd.f32 0.0, %v1083
      %1085 = vdwg.mxu0
      %v1086 = vadd.f32 %v970, %v1067
      %v1087 = vadd.f32 %v971, %v1069
      %v1088 = vadd.f32 %v972, %v1072
      %v1089 = vadd.f32 %v973, %v1074
      %v1090 = vadd.f32 %v974, %v1077
      %v1091 = vadd.f32 %v975, %v1079
      %v1092 = vadd.f32 %v976, %v1082
      %v1093 = vadd.f32 %v977, %v1084
      %s1094 = scalar_lea.vmem %s1, 384
      %v1095 = vld [vmem:[%s1094] sm:$0xf]
      %v1096 = vld [vmem:[%s1094 + $0x4] sm:$0xf]
      %v1097 = vld [vmem:[%s1094 + $0x8] sm:$0xf]
      %v1098 = vld [vmem:[%s1094 + $0xc] sm:$0xf]
      %v1099 = vld [vmem:[%s1094 + $0x10] sm:$0xf]
      %v1100 = vld [vmem:[%s1094 + $0x14] sm:$0xf]
      %v1101 = vld [vmem:[%s1094 + $0x18] sm:$0xf]
      %v1102 = vld [vmem:[%s1094 + $0x1c] sm:$0xf]
      %v1103 = vld [vmem:[%s1094 + $0x20] sm:$0xf]
      %v1104 = vld [vmem:[%s1094 + $0x24] sm:$0xf]
      %v1105 = vld [vmem:[%s1094 + $0x28] sm:$0xf]
      %v1106 = vld [vmem:[%s1094 + $0x2c] sm:$0xf]
      %v1107 = vld [vmem:[%s1094 + $0x30] sm:$0xf]
      %v1108 = vld [vmem:[%s1094 + $0x34] sm:$0xf]
      %v1109 = vld [vmem:[%s1094 + $0x38] sm:$0xf]
      %v1110 = vld [vmem:[%s1094 + $0x3c] sm:$0xf]
      %v1112 = vunpack.c.l.b16 %v236
      %v1113 = vpack.c.b16 %v1112, %v759
      %v1131 = vunpack.c.l.b16 %v1095
      %v1132 = vunpack.c.l.b16 %v1096
      %v1133 = vunpack.c.l.b16 %v1097
      %v1134 = vunpack.c.l.b16 %v1098
      %v1135 = vunpack.c.l.b16 %v1099
      %v1136 = vunpack.c.l.b16 %v1100
      %v1137 = vunpack.c.l.b16 %v1101
      %v1138 = vunpack.c.l.b16 %v1102
      %v1139 = vunpack.c.l.b16 %v1103
      %v1140 = vunpack.c.l.b16 %v1104
      %v1141 = vunpack.c.l.b16 %v1105
      %v1142 = vunpack.c.l.b16 %v1106
      %v1143 = vunpack.c.l.b16 %v1107
      %v1144 = vunpack.c.l.b16 %v1108
      %v1145 = vunpack.c.l.b16 %v1109
      %v1146 = vunpack.c.l.b16 %v1110
      %v1147 = vpack.c.b16 %v1132, %v1131
      %v1148 = vpack.c.b16 %v1134, %v1133
      %v1149 = vpack.c.b16 %v1136, %v1135
      %v1150 = vpack.c.b16 %v1138, %v1137
      %v1151 = vpack.c.b16 %v1140, %v1139
      %v1152 = vpack.c.b16 %v1142, %v1141
      %v1153 = vpack.c.b16 %v1144, %v1143
      %v1154 = vpack.c.b16 %v1146, %v1145
      %1163 = vmatpush.bf16.msra.mxu0 %v1154
      %1164 = vmatpush.bf16.msra.mxu0 %v1153
      %1165 = vmatpush.bf16.msra.mxu0 %v1152
      %1166 = vmatpush.bf16.msra.mxu0 %v1151
      %1167 = vmatpush.bf16.msra.mxu0 %v1150
      %1168 = vmatpush.bf16.msra.mxu0 %v1149
      %1169 = vmatpush.bf16.msra.mxu0 %v1148
      %1170 = vmatpush.bf16.msra.mxu0 %v1147
      %1171 = vmatmul.bf16.gmra.mxu0 %v496
      %v1172 = vpop.f32.mrf.mxu0
      %v1173 = vadd.f32 0.0, %v1172
      %v1174 = vpop.f32.mrf.mxu0
      %v1175 = vadd.f32 0.0, %v1174
      %1176 = vmatmul.bf16.gmra.mxu0 %v497
      %v1177 = vpop.f32.mrf.mxu0
      %v1178 = vadd.f32 0.0, %v1177
      %v1179 = vpop.f32.mrf.mxu0
      %v1180 = vadd.f32 0.0, %v1179
      %1181 = vmatmul.bf16.gmra.mxu0 %v498
      %v1182 = vpop.f32.mrf.mxu0
      %v1183 = vadd.f32 0.0, %v1182
      %v1184 = vpop.f32.mrf.mxu0
      %v1185 = vadd.f32 0.0, %v1184
      %1186 = vmatmul.bf16.gmra.mxu0 %v1113
      %v1187 = vpop.f32.mrf.mxu0
      %v1188 = vadd.f32 0.0, %v1187
      %v1189 = vpop.f32.mrf.mxu0
      %v1190 = vadd.f32 0.0, %v1189
      %1191 = vdwg.mxu0
      %v1192 = vadd.f32 %v1086, %v1173
      %v1193 = vadd.f32 %v1087, %v1175
      %v1194 = vadd.f32 %v1088, %v1178
      %v1195 = vadd.f32 %v1089, %v1180
      %v1196 = vadd.f32 %v1090, %v1183
      %v1197 = vadd.f32 %v1091, %v1185
      %v1198 = vadd.f32 %v1092, %v1188
      %v1199 = vadd.f32 %v1093, %v1190
      %v1201 = vshrl.u32 %v236, 16
      %v1203 = vrot.slane %v1201, 4
      %v1204 = vshll.u32 %v236, 16
      %v1206 = vrot.slane %v1204, 5
      %v1207 = vor.u32 %v1203, %v1206
      %v1208 = vrot.slane %v1207, 4
      %v1210 = vshll.u32 %v237, 16
      %v1212 = vrot.slane %v1210, 5
      %v1213 = vsel %vm256, %v1208, %v1212
      %s1214 = scalar_lea.vmem %s1, 448
      %v1215 = vld [vmem:[%s1214] sm:$0xf]
      %v1216 = vld [vmem:[%s1214 + $0x4] sm:$0xf]
      %v1217 = vld [vmem:[%s1214 + $0x8] sm:$0xf]
      %v1218 = vld [vmem:[%s1214 + $0xc] sm:$0xf]
      %v1219 = vld [vmem:[%s1214 + $0x10] sm:$0xf]
      %v1220 = vld [vmem:[%s1214 + $0x14] sm:$0xf]
      %v1221 = vld [vmem:[%s1214 + $0x18] sm:$0xf]
      %v1222 = vld [vmem:[%s1214 + $0x1c] sm:$0xf]
      %v1223 = vld [vmem:[%s1214 + $0x20] sm:$0xf]
      %v1224 = vld [vmem:[%s1214 + $0x24] sm:$0xf]
      %v1225 = vld [vmem:[%s1214 + $0x28] sm:$0xf]
      %v1226 = vld [vmem:[%s1214 + $0x2c] sm:$0xf]
      %v1227 = vld [vmem:[%s1214 + $0x30] sm:$0xf]
      %v1228 = vld [vmem:[%s1214 + $0x34] sm:$0xf]
      %v1229 = vld [vmem:[%s1214 + $0x38] sm:$0xf]
      %v1230 = vld [vmem:[%s1214 + $0x3c] sm:$0xf]
      %v1231 = vunpack.c.l.b16 %v1213
      %v1232 = vpack.c.b16 %v1231, %v884
      %v1250 = vunpack.c.l.b16 %v1215
      %v1251 = vunpack.c.l.b16 %v1216
      %v1252 = vunpack.c.l.b16 %v1217
      %v1253 = vunpack.c.l.b16 %v1218
      %v1254 = vunpack.c.l.b16 %v1219
      %v1255 = vunpack.c.l.b16 %v1220
      %v1256 = vunpack.c.l.b16 %v1221
      %v1257 = vunpack.c.l.b16 %v1222
      %v1258 = vunpack.c.l.b16 %v1223
      %v1259 = vunpack.c.l.b16 %v1224
      %v1260 = vunpack.c.l.b16 %v1225
      %v1261 = vunpack.c.l.b16 %v1226
      %v1262 = vunpack.c.l.b16 %v1227
      %v1263 = vunpack.c.l.b16 %v1228
      %v1264 = vunpack.c.l.b16 %v1229
      %v1265 = vunpack.c.l.b16 %v1230
      %v1266 = vpack.c.b16 %v1251, %v1250
      %v1267 = vpack.c.b16 %v1253, %v1252
      %v1268 = vpack.c.b16 %v1255, %v1254
      %v1269 = vpack.c.b16 %v1257, %v1256
      %v1270 = vpack.c.b16 %v1259, %v1258
      %v1271 = vpack.c.b16 %v1261, %v1260
      %v1272 = vpack.c.b16 %v1263, %v1262
      %v1273 = vpack.c.b16 %v1265, %v1264
      %1282 = vmatpush.bf16.msra.mxu0 %v1273
      %1283 = vmatpush.bf16.msra.mxu0 %v1272
      %1284 = vmatpush.bf16.msra.mxu0 %v1271
      %1285 = vmatpush.bf16.msra.mxu0 %v1270
      %1286 = vmatpush.bf16.msra.mxu0 %v1269
      %1287 = vmatpush.bf16.msra.mxu0 %v1268
      %1288 = vmatpush.bf16.msra.mxu0 %v1267
      %1289 = vmatpush.bf16.msra.mxu0 %v1266
      %1290 = vmatmul.bf16.gmra.mxu0 %v395
      %v1291 = vpop.f32.mrf.mxu0
      %v1292 = vadd.f32 0.0, %v1291
      %v1293 = vpop.f32.mrf.mxu0
      %v1294 = vadd.f32 0.0, %v1293
      %1295 = vmatmul.bf16.gmra.mxu0 %v396
      %v1296 = vpop.f32.mrf.mxu0
      %v1297 = vadd.f32 0.0, %v1296
      %v1298 = vpop.f32.mrf.mxu0
      %v1299 = vadd.f32 0.0, %v1298
      %1300 = vmatmul.bf16.gmra.mxu0 %v397
      %v1301 = vpop.f32.mrf.mxu0
      %v1302 = vadd.f32 0.0, %v1301
      %v1303 = vpop.f32.mrf.mxu0
      %v1304 = vadd.f32 0.0, %v1303
      %1305 = vmatmul.bf16.gmra.mxu0 %v1232
      %v1306 = vpop.f32.mrf.mxu0
      %v1307 = vadd.f32 0.0, %v1306
      %v1308 = vpop.f32.mrf.mxu0
      %v1309 = vadd.f32 0.0, %v1308
      %1310 = vdwg.mxu0
      %v1311 = vadd.f32 %v1192, %v1292
      %v1312 = vadd.f32 %v1193, %v1294
      %v1313 = vadd.f32 %v1194, %v1297
      %v1314 = vadd.f32 %v1195, %v1299
      %v1315 = vadd.f32 %v1196, %v1302
      %v1316 = vadd.f32 %v1197, %v1304
      %v1317 = vadd.f32 %v1198, %v1307
      %v1318 = vadd.f32 %v1199, %v1309
      %v1320 = vrot.slane %v236, 5
      %v1321 = vrot.slane %v1320, 4
      %v1322 = vrot.slane %v237, 5
      %v1323 = vsel %vm590, %v1321, %v1322
      %s1324 = scalar_lea.vmem %s1, 512
      %v1325 = vld [vmem:[%s1324] sm:$0xf]
      %v1326 = vld [vmem:[%s1324 + $0x4] sm:$0xf]
      %v1327 = vld [vmem:[%s1324 + $0x8] sm:$0xf]
      %v1328 = vld [vmem:[%s1324 + $0xc] sm:$0xf]
      %v1329 = vld [vmem:[%s1324 + $0x10] sm:$0xf]
      %v1330 = vld [vmem:[%s1324 + $0x14] sm:$0xf]
      %v1331 = vld [vmem:[%s1324 + $0x18] sm:$0xf]
      %v1332 = vld [vmem:[%s1324 + $0x1c] sm:$0xf]
      %v1333 = vld [vmem:[%s1324 + $0x20] sm:$0xf]
      %v1334 = vld [vmem:[%s1324 + $0x24] sm:$0xf]
      %v1335 = vld [vmem:[%s1324 + $0x28] sm:$0xf]
      %v1336 = vld [vmem:[%s1324 + $0x2c] sm:$0xf]
      %v1337 = vld [vmem:[%s1324 + $0x30] sm:$0xf]
      %v1338 = vld [vmem:[%s1324 + $0x34] sm:$0xf]
      %v1339 = vld [vmem:[%s1324 + $0x38] sm:$0xf]
      %v1340 = vld [vmem:[%s1324 + $0x3c] sm:$0xf]
      %v1341 = vunpack.c.l.b16 %v1323
      %v1342 = vpack.c.b16 %v1341, %v1000
      %v1360 = vunpack.c.l.b16 %v1325
      %v1361 = vunpack.c.l.b16 %v1326
      %v1362 = vunpack.c.l.b16 %v1327
      %v1363 = vunpack.c.l.b16 %v1328
      %v1364 = vunpack.c.l.b16 %v1329
      %v1365 = vunpack.c.l.b16 %v1330
      %v1366 = vunpack.c.l.b16 %v1331
      %v1367 = vunpack.c.l.b16 %v1332
      %v1368 = vunpack.c.l.b16 %v1333
      %v1369 = vunpack.c.l.b16 %v1334
      %v1370 = vunpack.c.l.b16 %v1335
      %v1371 = vunpack.c.l.b16 %v1336
      %v1372 = vunpack.c.l.b16 %v1337
      %v1373 = vunpack.c.l.b16 %v1338
      %v1374 = vunpack.c.l.b16 %v1339
      %v1375 = vunpack.c.l.b16 %v1340
      %v1376 = vpack.c.b16 %v1361, %v1360
      %v1377 = vpack.c.b16 %v1363, %v1362
      %v1378 = vpack.c.b16 %v1365, %v1364
      %v1379 = vpack.c.b16 %v1367, %v1366
      %v1380 = vpack.c.b16 %v1369, %v1368
      %v1381 = vpack.c.b16 %v1371, %v1370
      %v1382 = vpack.c.b16 %v1373, %v1372
      %v1383 = vpack.c.b16 %v1375, %v1374
      %1392 = vmatpush.bf16.msra.mxu0 %v1383
      %1393 = vmatpush.bf16.msra.mxu0 %v1382
      %1394 = vmatpush.bf16.msra.mxu0 %v1381
      %1395 = vmatpush.bf16.msra.mxu0 %v1380
      %1396 = vmatpush.bf16.msra.mxu0 %v1379
      %1397 = vmatpush.bf16.msra.mxu0 %v1378
      %1398 = vmatpush.bf16.msra.mxu0 %v1377
      %1399 = vmatpush.bf16.msra.mxu0 %v1376
      %1400 = vmatmul.bf16.gmra.mxu0 %v649
      %v1401 = vpop.f32.mrf.mxu0
      %v1402 = vadd.f32 0.0, %v1401
      %v1403 = vpop.f32.mrf.mxu0
      %v1404 = vadd.f32 0.0, %v1403
      %1405 = vmatmul.bf16.gmra.mxu0 %v650
      %v1406 = vpop.f32.mrf.mxu0
      %v1407 = vadd.f32 0.0, %v1406
      %v1408 = vpop.f32.mrf.mxu0
      %v1409 = vadd.f32 0.0, %v1408
      %1410 = vmatmul.bf16.gmra.mxu0 %v651
      %v1411 = vpop.f32.mrf.mxu0
      %v1412 = vadd.f32 0.0, %v1411
      %v1413 = vpop.f32.mrf.mxu0
      %v1414 = vadd.f32 0.0, %v1413
      %1415 = vmatmul.bf16.gmra.mxu0 %v1342
      %v1416 = vpop.f32.mrf.mxu0
      %v1417 = vadd.f32 0.0, %v1416
      %v1418 = vpop.f32.mrf.mxu0
      %v1419 = vadd.f32 0.0, %v1418
      %1420 = vdwg.mxu0
      %v1421 = vadd.f32 %v1311, %v1402
      %v1422 = vadd.f32 %v1312, %v1404
      %v1423 = vadd.f32 %v1313, %v1407
      %v1424 = vadd.f32 %v1314, %v1409
      %v1425 = vadd.f32 %v1315, %v1412
      %v1426 = vadd.f32 %v1316, %v1414
      %v1427 = vadd.f32 %v1317, %v1417
      %v1428 = vadd.f32 %v1318, %v1419
      %v1429 = vld [vmem:[%s2] sm:$0x1]
      %v1431 = vperm.slane %v1429, 0
      %v1433 = vadd.f32 %v1421, %v1431
      %v1434 = vadd.f32 %v1422, %v1431
      %v1435 = vadd.f32 %v1423, %v1431
      %v1436 = vadd.f32 %v1424, %v1431
      %v1437 = vadd.f32 %v1425, %v1431
      %v1438 = vadd.f32 %v1426, %v1431
      %v1439 = vadd.f32 %v1427, %v1431
      %v1440 = vadd.f32 %v1428, %v1431
      %v1441 = vmin.f32 %v1433, 20.0
      %v1442 = vmin.f32 %v1434, 20.0
      %v1443 = vmin.f32 %v1435, 20.0
      %v1444 = vmin.f32 %v1436, 20.0
      %v1445 = vmin.f32 %v1437, 20.0
      %v1446 = vmin.f32 %v1438, 20.0
      %v1447 = vmin.f32 %v1439, 20.0
      %v1448 = vmin.f32 %v1440, 20.0
      %v1449 = vmul.f32 %v1441, 1.442695
      %v1450 = vpow.pop %v1449
      %v1451 = vmul.f32 %v1442, 1.442695
      %v1452 = vpow.pop %v1451
      %v1453 = vmul.f32 %v1443, 1.442695
      %v1454 = vpow.pop %v1453
      %v1455 = vmul.f32 %v1444, 1.442695
      %v1456 = vpow.pop %v1455
      %v1457 = vmul.f32 %v1445, 1.442695
      %v1458 = vpow.pop %v1457
      %v1459 = vmul.f32 %v1446, 1.442695
      %v1460 = vpow.pop %v1459
      %v1461 = vmul.f32 %v1447, 1.442695
      %v1462 = vpow.pop %v1461
      %v1463 = vmul.f32 %v1448, 1.442695
      %v1464 = vpow.pop %v1463
      %v1465 = vadd.f32 %v1450, 2.0
      %v1466 = vadd.f32 %v1452, 2.0
      %v1467 = vadd.f32 %v1454, 2.0
      %v1468 = vadd.f32 %v1456, 2.0
      %v1469 = vadd.f32 %v1458, 2.0
      %v1470 = vadd.f32 %v1460, 2.0
      %v1471 = vadd.f32 %v1462, 2.0
      %v1472 = vadd.f32 %v1464, 2.0
      %v1473 = vmul.f32 %v1450, %v1465
      %v1474 = vmul.f32 %v1452, %v1466
      %v1475 = vmul.f32 %v1454, %v1467
      %v1476 = vmul.f32 %v1456, %v1468
      %v1477 = vmul.f32 %v1458, %v1469
      %v1478 = vmul.f32 %v1460, %v1470
      %v1479 = vmul.f32 %v1462, %v1471
      %v1480 = vmul.f32 %v1464, %v1472
      %v1481 = vmul.f32 %v1433, %v1473
      %v1482 = vmul.f32 %v1434, %v1474
      %v1483 = vmul.f32 %v1435, %v1475
      %v1484 = vmul.f32 %v1436, %v1476
      %v1485 = vmul.f32 %v1437, %v1477
      %v1486 = vmul.f32 %v1438, %v1478
      %v1487 = vmul.f32 %v1439, %v1479
      %v1488 = vmul.f32 %v1440, %v1480
      %v1489 = vadd.f32 %v1473, 2.0
      %v1490 = vadd.f32 %v1474, 2.0
      %v1491 = vadd.f32 %v1475, 2.0
      %v1492 = vadd.f32 %v1476, 2.0
      %v1493 = vadd.f32 %v1477, 2.0
      %v1494 = vadd.f32 %v1478, 2.0
      %v1495 = vadd.f32 %v1479, 2.0
      %v1496 = vadd.f32 %v1480, 2.0
      %v1497 = vrcp.pop %v1489
      %v1498 = vrcp.pop %v1490
      %v1499 = vrcp.pop %v1491
      %v1500 = vrcp.pop %v1492
      %v1501 = vrcp.pop %v1493
      %v1502 = vrcp.pop %v1494
      %v1503 = vrcp.pop %v1495
      %v1504 = vrcp.pop %v1496
      %v1505 = vmul.f32 %v1481, %v1497
      %v1506 = vmul.f32 %v1482, %v1498
      %v1507 = vmul.f32 %v1483, %v1499
      %v1508 = vmul.f32 %v1484, %v1500
      %v1509 = vmul.f32 %v1485, %v1501
      %v1510 = vmul.f32 %v1486, %v1502
      %v1511 = vmul.f32 %v1487, %v1503
      %v1512 = vmul.f32 %v1488, %v1504
      %v1513 = vld [vmem:[%s212] sm:$0xf]
      %v1514 = vld [vmem:[%s212 + $0x4] sm:$0xf]
      %v1515 = vld [vmem:[%s212 + $0x8] sm:$0xf]
      %v1516 = vld [vmem:[%s212 + $0xc] sm:$0xf]
      %v1517 = vld [vmem:[%s212 + $0x10] sm:$0xf]
      %v1518 = vld [vmem:[%s212 + $0x14] sm:$0xf]
      %v1519 = vld [vmem:[%s212 + $0x18] sm:$0xf]
      %v1520 = vld [vmem:[%s212 + $0x1c] sm:$0xf]
      %v1521 = vunpack.c.l.bf16 %v1513
      %v1522 = vunpack.c.l.bf16 %v1514
      %v1523 = vunpack.c.l.bf16 %v1515
      %v1524 = vunpack.c.l.bf16 %v1516
      %v1525 = vunpack.c.l.bf16 %v1517
      %v1526 = vunpack.c.l.bf16 %v1518
      %v1527 = vunpack.c.l.bf16 %v1519
      %v1528 = vunpack.c.l.bf16 %v1520
      %v1529 = vadd.f32 %v1505, %v1521
      %v1530 = vadd.f32 %v1506, %v1522
      %v1531 = vadd.f32 %v1507, %v1523
      %v1532 = vadd.f32 %v1508, %v1524
      %v1533 = vadd.f32 %v1509, %v1525
      %v1534 = vadd.f32 %v1510, %v1526
      %v1535 = vadd.f32 %v1511, %v1527
      %v1536 = vadd.f32 %v1512, %v1528
      %v1537 = vpack.c.bf16 %v1529, %v1529
      %v1538 = vpack.c.bf16 %v1530, %v1530
      %v1539 = vpack.c.bf16 %v1531, %v1531
      %v1540 = vpack.c.bf16 %v1532, %v1532
      %v1541 = vpack.c.bf16 %v1533, %v1533
      %v1542 = vpack.c.bf16 %v1534, %v1534
      %v1543 = vpack.c.bf16 %v1535, %v1535
      %v1544 = vpack.c.bf16 %v1536, %v1536
      %1545 = vst [vmem:[%s217] sm:$0xf] %v1537
      %1546 = vst [vmem:[%s217 + $0x4] sm:$0xf] %v1538
      %1547 = vst [vmem:[%s217 + $0x8] sm:$0xf] %v1539
      %1548 = vst [vmem:[%s217 + $0xc] sm:$0xf] %v1540
      %1549 = vst [vmem:[%s217 + $0x10] sm:$0xf] %v1541
      %1550 = vst [vmem:[%s217 + $0x14] sm:$0xf] %v1542
      %1551 = vst [vmem:[%s217 + $0x18] sm:$0xf] %v1543
      %1552 = vst [vmem:[%s217 + $0x1c] sm:$0xf] %v1544
      %p1553 = scmp.lt.s32.totalorder %s15, 1
      %s1554 = scalar_select %p1553, %s15, 1
      %s1555 = smul.addr %s1554, 8
      %s1556 = smul.addr %s1555, 4
      %s1557 = scalar_lea.vmem %s4, %s1556
      // Predicated region
      $region37: #{_lambda_.11} parent=35 // pred_check
        %p1558 = pneg %p127
      $region38: #{_lambda_.11} parent=35 // pred_check_branch
        %1560 = sbr.rel (%p1558) target = $region40
      $region39: #{_lambda_.11} parent=35 // pred_region
        _
      $region40: #{_lambda_.11} parent=35 // pred_fallthru
        _
    $region36: #{_lambda_.11} parent=5 // pred_fallthru
      _
    %p1561 = scmp.le.s32.totalorder 2, %s10
    // Predicated region
    $region41: #{_lambda_.11} parent=5 // pred_check
      %p1562 = pneg %p1561
    $region42: #{_lambda_.11} parent=5 // pred_check_branch
      %1564 = sbr.rel (%p1562) target = $region44
    $region43: #{_lambda_.11} parent=5 // pred_region
      %s1565 = ssub.s32 %s10, 2
      // Predicated region
      $region45: #{_lambda_.11} parent=43 // pred_check
        %p1566 = pneg %p133
      $region46: #{_lambda_.11} parent=43 // pred_check_branch
        %1568 = sbr.rel (%p1566) target = $region48
      $region47: #{_lambda_.11} parent=43 // pred_region
        %p1569 = scmp.lt.s32.totalorder %s16, 1
        %s1570 = scalar_select %p1569, %s16, 1
        %s1571 = smul.addr %s1570, 8
        %s1572 = smul.addr %s1571, 4
        %s1573 = scalar_lea.vmem %s4, %s1572
      $region48: #{_lambda_.11} parent=43 // pred_fallthru
        _
    $region44: #{_lambda_.11} parent=5 // pred_fallthru
      _
  $region6: #{_lambda_.11} parent=0 // loop_footer
    %s14 = sadd.s32 1, %s10
  $region7: #{_lambda_.11} parent=0 // loop_footer_branch
    %9 = sbr.rel target = $region3
  $region8: #{_lambda_.11} parent=0 // loop_exit
    _

</llo_original>
